<compile_context>
chip_gen: v6e
topology: v6e:2x2x1
jax: 0.10.0
libtpu: 0.0.40
codegen_flags: <defaults>
</compile_context>

<pallas_src>
import functools

import jax
import jax.numpy as jnp
from jax import lax
from jax.experimental import pallas as pl
from jax.experimental.pallas import tpu as pltpu

_MXU_DTYPE = jnp.bfloat16          # MXU operand dtype (f32 accumulation)


# ----------------------------- in-kernel math ------------------------------ #

def _mm(a, b):
    """a @ b on the MXU with bf16 operands and f32 accumulation."""
    return jnp.dot(a.astype(_MXU_DTYPE), b.astype(_MXU_DTYPE),
                   preferred_element_type=jnp.float32)


def _mm_nt(a, b):
    """a @ b.T (contract last dims of both operands), f32 accumulation."""
    return lax.dot_general(a.astype(_MXU_DTYPE), b.astype(_MXU_DTYPE),
                           (((1,), (1,)), ((), ())),
                           preferred_element_type=jnp.float32)


def _layer_norm(x, w, b, eps=1e-5):
    mu = jnp.mean(x, axis=-1, keepdims=True)
    var = jnp.mean((x - mu) ** 2, axis=-1, keepdims=True)
    return (x - mu) * lax.rsqrt(var + eps) * w + b


# ------------------------------ fused kernel ------------------------------- #

def _decoder_layer_kernel(nhead, num_layers, return_intermediate,
                          tgt_ref, qpos_ref, mem_ref, pos_ref,
                          qkv_w_ref, qkv_b_ref, out_w_ref, out_b_ref,
                          ffn_w1_ref, ffn_b1_ref, ffn_w2_ref, ffn_b2_ref,
                          ln_w_ref, ln_b_ref, fnorm_w_ref, fnorm_b_ref,
                          out_ref, state_ref, pv_ref):
    """One grid step = (batch element b, decoder layer l)."""
    layer = pl.program_id(1)
    D = state_ref.shape[-1]
    hd = D // nhead

    @pl.when(layer == 0)
    def _():
        state_ref[...] = tgt_ref[...]          # reset the carried decoder state

    qpos = qpos_ref[...]                       # (Tq, D) f32
    qkv_b = qkv_b_ref[...]                     # (6, D)  f32
    out_b = out_b_ref[...]                     # (2, D)  f32
    ln_w = ln_w_ref[...]                       # (3, D)  f32
    ln_b = ln_b_ref[...]                       # (3, D)  f32

    def mha(q_bf, k_bf, v_bf, a):
        """Multi-head attention.  a=0: self-attn slot, a=1: cross-attn slot."""
        base = 3 * a
        # projections (1/sqrt(hd) already folded into wq / bq)
        q = _mm(q_bf, qkv_w_ref[base + 0]) + qkv_b[base + 0:base + 1, :]
        k = _mm(k_bf, qkv_w_ref[base + 1]) + qkv_b[base + 1:base + 2, :]
        v = _mm(v_bf, qkv_w_ref[base + 2]) + qkv_b[base + 2:base + 3, :]
        qh = q.astype(_MXU_DTYPE)
        kh = k.astype(_MXU_DTYPE)
        vh = v.astype(_MXU_DTYPE)
        for h in range(nhead):                  # small static head loop
            sl = slice(h * hd, (h + 1) * hd)
            s = _mm_nt(qh[:, sl], kh[:, sl])    # (Tq, Tk) f32 scores
            s = s - jnp.max(s, axis=-1, keepdims=True)
            p = jnp.exp(s)
            p = p * pl.reciprocal(jnp.sum(p, axis=-1, keepdims=True),
                                  approx=True)
            pv_ref[:, sl] = _mm(p.astype(_MXU_DTYPE), vh[:, sl])
        # single fused output projection with full K=D contraction
        return _mm(pv_ref[...], out_w_ref[a]) + out_b[a:a + 1, :]

    state = state_ref[...]                     # (Tq, D) f32

    # --- self-attention block (q = k = tgt + query_pos, v = tgt) ---
    qk_bf = (state + qpos).astype(_MXU_DTYPE)
    sa = mha(qk_bf, qk_bf, state.astype(_MXU_DTYPE), 0)
    state = _layer_norm(state + sa, ln_w[0:1, :], ln_b[0:1, :])

    # --- cross-attention block (q = tgt + query_pos, k = mem + pos, v = mem) ---
    mem_v = mem_ref[...]
    mem_k_bf = (mem_v + pos_ref[...]).astype(_MXU_DTYPE)
    ca = mha((state + qpos).astype(_MXU_DTYPE), mem_k_bf,
             mem_v.astype(_MXU_DTYPE), 1)
    state = _layer_norm(state + ca, ln_w[1:2, :], ln_b[1:2, :])

    # --- feed-forward block (linear1 -> ReLU -> linear2) ---
    h = jnp.maximum(_mm(state.astype(_MXU_DTYPE), ffn_w1_ref[...])
                    + ffn_b1_ref[...], 0.0)
    ff = _mm(h, ffn_w2_ref[...]) + ffn_b2_ref[...]
    state = _layer_norm(state + ff, ln_w[2:3, :], ln_b[2:3, :])

    state_ref[...] = state                     # carry to next layer

    if return_intermediate:
        # PyTorch appends norm(output) per layer (last entry == final output).
        out_ref[...] = _layer_norm(state, fnorm_w_ref[...], fnorm_b_ref[...])
    else:
        @pl.when(layer == num_layers - 1)
        def _():
            out_ref[...] = _layer_norm(state, fnorm_w_ref[...], fnorm_b_ref[...])


# ------------------------------ wrappers ----------------------------------- #

def _vmem_limit_bytes(kp, Tq, Tm, D, num_layers):
    """Size VMEM from the actually resident (double-buffered) blocks."""
    f32 = 4
    act = (2 * Tq * D + 2 * Tm * D) * f32                      # tgt,qpos,mem,pos
    per_layer_w = (kp["qkv_w"].nbytes + kp["qkv_b"].nbytes +
                   kp["out_w"].nbytes + kp["out_b"].nbytes +
                   kp["ffn_w1"].nbytes + kp["ffn_b1"].nbytes +
                   kp["ffn_w2"].nbytes + kp["ffn_b2"].nbytes +
                   kp["ln_w"].nbytes + kp["ln_b"].nbytes) // num_layers
    out = Tq * D * f32
    scratch = 2 * Tq * D * f32
    norm = kp["norm_w"].nbytes + kp["norm_b"].nbytes
    resident = 2 * (act + per_layer_w + out + norm) + scratch   # double buffers
    return int(min(max(2 * resident + (4 << 20), 32 << 20), 100 << 20))


def _fused_decoder_call(tgt_b, qpos_b, mem_b, pos_b, kp,
                        nhead, num_layers, return_intermediate):
    B, Tq, D = tgt_b.shape
    Tm = mem_b.shape[1]

    def batch_spec(T):
        # one batch element's rows, resident across the layer axis
        return pl.BlockSpec((None, T, D), lambda b, l: (b, 0, 0))

    def layer_spec(arr):
        # one layer's slice of a stacked parameter array
        ndim = arr.ndim
        return pl.BlockSpec((None,) + arr.shape[1:],
                            lambda b, l: (l,) + (0,) * (ndim - 1))

    const_spec = pl.BlockSpec((1, D), lambda b, l: (0, 0))

    inputs = (tgt_b, qpos_b, mem_b, pos_b,
              kp["qkv_w"], kp["qkv_b"], kp["out_w"], kp["out_b"],
              kp["ffn_w1"], kp["ffn_b1"], kp["ffn_w2"], kp["ffn_b2"],
              kp["ln_w"], kp["ln_b"], kp["norm_w"], kp["norm_b"])

    in_specs = [batch_spec(Tq), batch_spec(Tq), batch_spec(Tm), batch_spec(Tm),
                layer_spec(kp["qkv_w"]), layer_spec(kp["qkv_b"]),
                layer_spec(kp["out_w"]), layer_spec(kp["out_b"]),
                layer_spec(kp["ffn_w1"]), layer_spec(kp["ffn_b1"]),
                layer_spec(kp["ffn_w2"]), layer_spec(kp["ffn_b2"]),
                layer_spec(kp["ln_w"]), layer_spec(kp["ln_b"]),
                const_spec, const_spec]

    if return_intermediate:
        out_shape = jax.ShapeDtypeStruct((num_layers, B, Tq, D), jnp.float32)
        out_spec = pl.BlockSpec((None, None, Tq, D), lambda b, l: (l, b, 0, 0))
    else:
        out_shape = jax.ShapeDtypeStruct((B, Tq, D), jnp.float32)
        out_spec = pl.BlockSpec((None, Tq, D), lambda b, l: (b, 0, 0))

    return pl.pallas_call(
        functools.partial(_decoder_layer_kernel, nhead, num_layers,
                          return_intermediate),
        out_shape=out_shape,
        grid=(B, num_layers),
        in_specs=in_specs,
        out_specs=out_spec,
        scratch_shapes=[pltpu.VMEM((Tq, D), jnp.float32),   # carried tgt state
                        pltpu.VMEM((Tq, D), jnp.float32)],  # head-concat PV buf
        compiler_params=pltpu.CompilerParams(
            dimension_semantics=("parallel", "arbitrary"),
            vmem_limit_bytes=_vmem_limit_bytes(kp, Tq, Tm, D, num_layers)),
    )(*inputs)


def prepare_kernel_params(params, nhead, mxu_dtype=_MXU_DTYPE):
    """PyTorch-layout params -> per-layer stacked, pre-transposed, scale-folded."""
    layers = params["layers"]
    D = layers[0]["sa_ow"].shape[0]
    hd = D // nhead
    scale = 1.0 / float(hd) ** 0.5
    qkv_w, qkv_b, out_w, out_b = [], [], [], []
    f1w, f1b, f2w, f2b = [], [], [], []
    ln_w, ln_b = [], []
    for p in layers:
        lw, lb, ow, ob = [], [], [], []
        for pre in ("sa", "ca"):
            in_w = p[pre + "_w"]                        # (3D, D) torch layout
            in_b = p[pre + "_b"].reshape(3 * D)
            lw += [in_w[0:D].T * scale,                 # fold 1/sqrt(hd) into wq
                   in_w[D:2 * D].T, in_w[2 * D:3 * D].T]
            lb += [in_b[0:D] * scale, in_b[D:2 * D], in_b[2 * D:3 * D]]
            ow.append(p[pre + "_ow"].T)                 # (D, D), "x @ w"-ready
            ob.append(p[pre + "_ob"].reshape(D))
        qkv_w.append(jnp.stack(lw))                     # (6, D, D)
        qkv_b.append(jnp.stack(lb))                     # (6, D)
        out_w.append(jnp.stack(ow))                     # (2, D, D)
        out_b.append(jnp.stack(ob))                     # (2, D)
        f1w.append(p["l1_w"].T)                         # (D, F)
        f1b.append(p["l1_b"].reshape(1, -1))            # (1, F)
        f2w.append(p["l2_w"].T)                         # (F, D)
        f2b.append(p["l2_b"].reshape(1, D))             # (1, D)
        ln_w.append(jnp.stack([p["n1_w"].reshape(D), p["n2_w"].reshape(D),
                               p["n3_w"].reshape(D)]))  # (3, D)
        ln_b.append(jnp.stack([p["n1_b"].reshape(D), p["n2_b"].reshape(D),
                               p["n3_b"].reshape(D)]))
    return dict(
        qkv_w=jnp.stack(qkv_w).astype(mxu_dtype),       # (L, 6, D, D) bf16
        qkv_b=jnp.stack(qkv_b).astype(jnp.float32),     # (L, 6, D)
        out_w=jnp.stack(out_w).astype(mxu_dtype),       # (L, 2, D, D) bf16
        out_b=jnp.stack(out_b).astype(jnp.float32),     # (L, 2, D)
        ffn_w1=jnp.stack(f1w).astype(mxu_dtype),        # (L, D, F) bf16
        ffn_b1=jnp.stack(f1b).astype(jnp.float32),      # (L, 1, F)
        ffn_w2=jnp.stack(f2w).astype(mxu_dtype),        # (L, F, D) bf16
        ffn_b2=jnp.stack(f2b).astype(jnp.float32),      # (L, 1, D)
        ln_w=jnp.stack(ln_w).astype(jnp.float32),       # (L, 3, D)
        ln_b=jnp.stack(ln_b).astype(jnp.float32),       # (L, 3, D)
        norm_w=params["norm_w"].reshape(1, D).astype(jnp.float32),
        norm_b=params["norm_b"].reshape(1, D).astype(jnp.float32),
    )


def transformer_decoder_forward(tgt, memory, params, nhead,
                                pos=None, query_pos=None,
                                transpose_swap=False,
                                return_intermediate=False):
    """Mirrors TransformerDecoder.forward (eval mode, no attention weights).

    tgt, query_pos : (Tq, B, D)   (PyTorch seq-first convention)
    memory, pos    : (Tm, B, D), or NCHW (B, C, H, W) when transpose_swap=True
    """
    # TODO(synk): tgt_mask/memory_mask/key_padding_mask and the
    # return_attn_weights (averaged per-head attention map) paths are not
    # emitted; only the None-mask eval path is implemented.
    if transpose_swap:
        bs, c, h, w = memory.shape
        memory = memory.reshape(bs, c, h * w).transpose(2, 0, 1)
        if pos is not None:
            pos = pos.reshape(bs, c, h * w).transpose(2, 0, 1)

    Tq, B, D = tgt.shape
    Tm = memory.shape[0]
    if query_pos is None:
        query_pos = jnp.zeros_like(tgt)
    if pos is None:
        pos = jnp.zeros_like(memory)

    # (T, B, D) -> batch-major (B, T, D): each grid step sees one batch element,
    # so no cross-batch attention and no mask/bias arrays are needed.
    tgt_b = jnp.transpose(tgt, (1, 0, 2)).astype(jnp.float32)
    qpos_b = jnp.transpose(query_pos, (1, 0, 2)).astype(jnp.float32)
    mem_b = jnp.transpose(memory, (1, 0, 2)).astype(jnp.float32)
    pos_b = jnp.transpose(pos, (1, 0, 2)).astype(jnp.float32)

    kp = prepare_kernel_params(params, nhead)
    num_layers = len(params["layers"])

    out = _fused_decoder_call(tgt_b, qpos_b, mem_b, pos_b, kp,
                              nhead, num_layers, return_intermediate)

    if return_intermediate:
        # (L, B, Tq, D) -> (L, Tq, B, D); last slice already equals final out.
        return jnp.transpose(out, (0, 2, 1, 3)), []
    return jnp.transpose(out, (1, 0, 2)), []          # (Tq, B, D)


# --------------------------- parameter creation ----------------------------- #

def _xavier_uniform(key, shape):
    fan_out, fan_in = shape
    bound = (6.0 / (fan_in + fan_out)) ** 0.5
    return jax.random.uniform(key, shape, jnp.float32, -bound, bound)


def make_params(key, num_layers, d_model, nhead, dim_feedforward):
    """Parameters in the PyTorch nn.MultiheadAttention / nn.Linear layout."""
    del nhead
    layers = []
    for _ in range(num_layers):
        keys = jax.random.split(key, 7)
        key = keys[0]
        layers.append(dict(
            sa_w=_xavier_uniform(keys[1], (3 * d_model, d_model)),
            sa_b=jnp.zeros((1, 3 * d_model), jnp.float32),
            sa_ow=_xavier_uniform(keys[2], (d_model, d_model)),
            sa_ob=jnp.zeros((1, d_model), jnp.float32),
            ca_w=_xavier_uniform(keys[3], (3 * d_model, d_model)),
            ca_b=jnp.zeros((1, 3 * d_model), jnp.float32),
            ca_ow=_xavier_uniform(keys[4], (d_model, d_model)),
            ca_ob=jnp.zeros((1, d_model), jnp.float32),
            l1_w=_xavier_uniform(keys[5], (dim_feedforward, d_model)),
            l1_b=jnp.zeros((1, dim_feedforward), jnp.float32),
            l2_w=_xavier_uniform(keys[6], (d_model, dim_feedforward)),
            l2_b=jnp.zeros((1, d_model), jnp.float32),
            n1_w=jnp.ones((1, d_model), jnp.float32),
            n1_b=jnp.zeros((1, d_model), jnp.float32),
            n2_w=jnp.ones((1, d_model), jnp.float32),
            n2_b=jnp.zeros((1, d_model), jnp.float32),
            n3_w=jnp.ones((1, d_model), jnp.float32),
            n3_b=jnp.zeros((1, d_model), jnp.float32),
        ))
    return dict(layers=layers,
                norm_w=jnp.ones((1, d_model), jnp.float32),
                norm_b=jnp.zeros((1, d_model), jnp.float32))


# ----------------------------------- main ----------------------------------- #

if __name__ == "__main__":
    num_layers = 2
    d_model = 128            # lane-dense last dim (multiple of 128)
    nhead = 4
    dim_feedforward = 256
    B, Tq, H, W = 2, 8, 4, 4

    root = jax.random.PRNGKey(0)
    k_p, k_tgt, k_mem, k_qp, k_pos = jax.random.split(root, 5)

    params = make_params(k_p, num_layers, d_model, nhead, dim_feedforward)

    tgt = jax.random.normal(k_tgt, (Tq, B, d_model), jnp.float32)       # (Tq, B, D)
    query_pos = jax.random.normal(k_qp, (Tq, B, d_model), jnp.float32)  # (Tq, B, D)
    memory = jax.random.normal(k_mem, (B, d_model, H, W), jnp.float32)  # NCHW
    pos = jax.random.normal(k_pos, (B, d_model, H, W), jnp.float32)     # NCHW

    out, attns = transformer_decoder_forward(
        tgt, memory, params, nhead,
        pos=pos, query_pos=query_pos,
        transpose_swap=True, return_intermediate=False)

    out = jax.block_until_ready(out)
    assert out.shape == (Tq, B, d_model)
    assert bool(jnp.all(jnp.isfinite(out)))
    print("KERNEL_OK")
</pallas_src>

<mosaic_0001>
module attributes {stable_mosaic.version = 11 : i64} {
  func.func @_decoder_layer_kernel(%arg0: i32, %arg1: i32, %arg2: memref<1x8x128xf32, #tpu.memory_space<vmem>>, %arg3: memref<1x8x128xf32, #tpu.memory_space<vmem>>, %arg4: memref<1x16x128xf32, #tpu.memory_space<vmem>>, %arg5: memref<1x16x128xf32, #tpu.memory_space<vmem>>, %arg6: memref<1x6x128x128xbf16, #tpu.memory_space<vmem>>, %arg7: memref<1x6x128xf32, #tpu.memory_space<vmem>>, %arg8: memref<1x2x128x128xbf16, #tpu.memory_space<vmem>>, %arg9: memref<1x2x128xf32, #tpu.memory_space<vmem>>, %arg10: memref<1x128x256xbf16, #tpu.memory_space<vmem>>, %arg11: memref<1x1x256xf32, #tpu.memory_space<vmem>>, %arg12: memref<1x256x128xbf16, #tpu.memory_space<vmem>>, %arg13: memref<1x1x128xf32, #tpu.memory_space<vmem>>, %arg14: memref<1x3x128xf32, #tpu.memory_space<vmem>>, %arg15: memref<1x3x128xf32, #tpu.memory_space<vmem>>, %arg16: memref<1x128xf32, #tpu.memory_space<vmem>>, %arg17: memref<1x128xf32, #tpu.memory_space<vmem>>, %arg18: memref<1x8x128xf32, #tpu.memory_space<vmem>>, %arg19: memref<8x128xf32, #tpu.memory_space<vmem>>, %arg20: memref<8x128xf32, #tpu.memory_space<vmem>>) attributes {dimension_semantics = [#tpu.dimension_semantics<parallel>, #tpu.dimension_semantics<arbitrary>], iteration_bounds = array<i64: 2, 2>, scalar_prefetch = 0 : i64, scratch_operands = 2 : i64, tpu.core_type = #tpu.core_type<tc>, window_params = [{transform_indices = @transform_0, window_bounds = array<i64: 1, 8, 128>}, {transform_indices = @transform_1, window_bounds = array<i64: 1, 8, 128>}, {transform_indices = @transform_2, window_bounds = array<i64: 1, 16, 128>}, {transform_indices = @transform_3, window_bounds = array<i64: 1, 16, 128>}, {transform_indices = @transform_4, window_bounds = array<i64: 1, 6, 128, 128>}, {transform_indices = @transform_5, window_bounds = array<i64: 1, 6, 128>}, {transform_indices = @transform_6, window_bounds = array<i64: 1, 2, 128, 128>}, {transform_indices = @transform_7, window_bounds = array<i64: 1, 2, 128>}, {transform_indices = @transform_8, window_bounds = array<i64: 1, 128, 256>}, {transform_indices = @transform_9, window_bounds = array<i64: 1, 1, 256>}, {transform_indices = @transform_10, window_bounds = array<i64: 1, 256, 128>}, {transform_indices = @transform_11, window_bounds = array<i64: 1, 1, 128>}, {transform_indices = @transform_12, window_bounds = array<i64: 1, 3, 128>}, {transform_indices = @transform_13, window_bounds = array<i64: 1, 3, 128>}, {pipeline_mode = #tpu.pipeline_mode<synchronous>, transform_indices = @transform_14, window_bounds = array<i64: 1, 128>}, {pipeline_mode = #tpu.pipeline_mode<synchronous>, transform_indices = @transform_15, window_bounds = array<i64: 1, 128>}, {transform_indices = @transform_16, window_bounds = array<i64: 1, 8, 128>}]} {
    %c0_i32 = arith.constant 0 : i32
    %0 = arith.cmpi eq, %arg1, %c0_i32 : i32
    %1 = arith.extui %0 : i1 to i32
    %c0_i32_0 = arith.constant 0 : i32
    %2 = arith.cmpi ne, %1, %c0_i32_0 : i32
    scf.if %2 {
      %c0_139 = arith.constant 0 : index
      %c0_140 = arith.constant 0 : index
      %c0_141 = arith.constant 0 : index
      %317 = vector.load %arg2[%c0_139, %c0_140, %c0_141] : memref<1x8x128xf32, #tpu.memory_space<vmem>>, vector<1x8x128xf32>
      %318 = vector.shape_cast %317 : vector<1x8x128xf32> to vector<8x128xf32>
      %c0_142 = arith.constant 0 : index
      %c0_143 = arith.constant 0 : index
      %319 = vector.load %arg19[%c0_142, %c0_143] : memref<8x128xf32, #tpu.memory_space<vmem>>, vector<8x128xf32>
      tpu.vector_store %arg19[%c0_142, %c0_143], %318 {strides = array<i32>} : memref<8x128xf32, #tpu.memory_space<vmem>>, vector<8x128xf32>,
    } else {
    }
    %c0 = arith.constant 0 : index
    %c0_1 = arith.constant 0 : index
    %c0_2 = arith.constant 0 : index
    %3 = vector.load %arg3[%c0, %c0_1, %c0_2] : memref<1x8x128xf32, #tpu.memory_space<vmem>>, vector<1x8x128xf32>
    %4 = vector.shape_cast %3 : vector<1x8x128xf32> to vector<8x128xf32>
    %c0_3 = arith.constant 0 : index
    %c0_4 = arith.constant 0 : index
    %c0_5 = arith.constant 0 : index
    %5 = vector.load %arg7[%c0_3, %c0_4, %c0_5] : memref<1x6x128xf32, #tpu.memory_space<vmem>>, vector<1x6x128xf32>
    %6 = vector.shape_cast %5 : vector<1x6x128xf32> to vector<6x128xf32>
    %c0_6 = arith.constant 0 : index
    %c0_7 = arith.constant 0 : index
    %c0_8 = arith.constant 0 : index
    %7 = vector.load %arg9[%c0_6, %c0_7, %c0_8] : memref<1x2x128xf32, #tpu.memory_space<vmem>>, vector<1x2x128xf32>
    %8 = vector.shape_cast %7 : vector<1x2x128xf32> to vector<2x128xf32>
    %c0_9 = arith.constant 0 : index
    %c0_10 = arith.constant 0 : index
    %c0_11 = arith.constant 0 : index
    %9 = vector.load %arg14[%c0_9, %c0_10, %c0_11] : memref<1x3x128xf32, #tpu.memory_space<vmem>>, vector<1x3x128xf32>
    %10 = vector.shape_cast %9 : vector<1x3x128xf32> to vector<3x128xf32>
    %c0_12 = arith.constant 0 : index
    %c0_13 = arith.constant 0 : index
    %c0_14 = arith.constant 0 : index
    %11 = vector.load %arg15[%c0_12, %c0_13, %c0_14] : memref<1x3x128xf32, #tpu.memory_space<vmem>>, vector<1x3x128xf32>
    %12 = vector.shape_cast %11 : vector<1x3x128xf32> to vector<3x128xf32>
    %c0_15 = arith.constant 0 : index
    %c0_16 = arith.constant 0 : index
    %13 = vector.load %arg19[%c0_15, %c0_16] : memref<8x128xf32, #tpu.memory_space<vmem>>, vector<8x128xf32>
    %14 = arith.addf %13, %4 : vector<8x128xf32>
    %15 = arith.truncf %14 : vector<8x128xf32> to vector<8x128xbf16>
    %16 = arith.truncf %13 : vector<8x128xf32> to vector<8x128xbf16>
    %c0_17 = arith.constant 0 : index
    %c0_18 = arith.constant 0 : index
    %c0_19 = arith.constant 0 : index
    %c0_20 = arith.constant 0 : index
    %17 = vector.load %arg6[%c0_17, %c0_18, %c0_19, %c0_20] : memref<1x6x128x128xbf16, #tpu.memory_space<vmem>>, vector<1x1x128x128xbf16>
    %18 = vector.shape_cast %17 : vector<1x1x128x128xbf16> to vector<128x128xbf16>
    %cst = arith.constant dense<0.000000e+00> : vector<8x128xf32>
    %19 = tpu.matmul %15, %18, %cst {dimension_numbers = #tpu.dot_dimension_numbers<[1], [0], [0], [1], [0, 0, 1, 1], [], []>} : vector<8x128xbf16>, vector<128x128xbf16>, vector<8x128xf32> -> vector<8x128xf32>
    %20 = vector.extract_strided_slice %6 {offsets = [0, 0], sizes = [1, 128], strides = [1, 1]} : vector<6x128xf32> to vector<1x128xf32>
    %21 = vector.broadcast %20 : vector<1x128xf32> to vector<8x128xf32>
    %22 = arith.addf %19, %21 : vector<8x128xf32>
    %c0_21 = arith.constant 0 : index
    %c1 = arith.constant 1 : index
    %c0_22 = arith.constant 0 : index
    %c0_23 = arith.constant 0 : index
    %23 = vector.load %arg6[%c0_21, %c1, %c0_22, %c0_23] : memref<1x6x128x128xbf16, #tpu.memory_space<vmem>>, vector<1x1x128x128xbf16>
    %24 = vector.shape_cast %23 : vector<1x1x128x128xbf16> to vector<128x128xbf16>
    %cst_24 = arith.constant dense<0.000000e+00> : vector<8x128xf32>
    %25 = tpu.matmul %15, %24, %cst_24 {dimension_numbers = #tpu.dot_dimension_numbers<[1], [0], [0], [1], [0, 0, 1, 1], [], []>} : vector<8x128xbf16>, vector<128x128xbf16>, vector<8x128xf32> -> vector<8x128xf32>
    %26 = vector.extract_strided_slice %6 {offsets = [1, 0], sizes = [1, 128], strides = [1, 1]} : vector<6x128xf32> to vector<1x128xf32>
    %27 = vector.broadcast %26 : vector<1x128xf32> to vector<8x128xf32>
    %28 = arith.addf %25, %27 : vector<8x128xf32>
    %c0_25 = arith.constant 0 : index
    %c2 = arith.constant 2 : index
    %c0_26 = arith.constant 0 : index
    %c0_27 = arith.constant 0 : index
    %29 = vector.load %arg6[%c0_25, %c2, %c0_26, %c0_27] : memref<1x6x128x128xbf16, #tpu.memory_space<vmem>>, vector<1x1x128x128xbf16>
    %30 = vector.shape_cast %29 : vector<1x1x128x128xbf16> to vector<128x128xbf16>
    %cst_28 = arith.constant dense<0.000000e+00> : vector<8x128xf32>
    %31 = tpu.matmul %16, %30, %cst_28 {dimension_numbers = #tpu.dot_dimension_numbers<[1], [0], [0], [1], [0, 0, 1, 1], [], []>} : vector<8x128xbf16>, vector<128x128xbf16>, vector<8x128xf32> -> vector<8x128xf32>
    %32 = vector.extract_strided_slice %6 {offsets = [2, 0], sizes = [1, 128], strides = [1, 1]} : vector<6x128xf32> to vector<1x128xf32>
    %33 = vector.broadcast %32 : vector<1x128xf32> to vector<8x128xf32>
    %34 = arith.addf %31, %33 : vector<8x128xf32>
    %35 = arith.truncf %22 : vector<8x128xf32> to vector<8x128xbf16>
    %36 = arith.truncf %28 : vector<8x128xf32> to vector<8x128xbf16>
    %37 = arith.truncf %34 : vector<8x128xf32> to vector<8x128xbf16>
    %38 = vector.extract_strided_slice %35 {offsets = [0, 0], sizes = [8, 32], strides = [1, 1]} : vector<8x128xbf16> to vector<8x32xbf16>
    %39 = vector.extract_strided_slice %36 {offsets = [0, 0], sizes = [8, 32], strides = [1, 1]} : vector<8x128xbf16> to vector<8x32xbf16>
    %cst_29 = arith.constant dense<0.000000e+00> : vector<8x8xf32>
    %40 = tpu.matmul %38, %39, %cst_29 {dimension_numbers = #tpu.dot_dimension_numbers<[1], [1], [0], [0], [0, 0, 1, 0], [], []>} : vector<8x32xbf16>, vector<8x32xbf16>, vector<8x8xf32> -> vector<8x8xf32>
    %cst_30 = arith.constant dense<0xFF800000> : vector<8xf32>
    %41 = vector.multi_reduction <maximumf>, %40, %cst_30 [1] : vector<8x8xf32> to vector<8xf32>
    %42 = vector.shape_cast %41 : vector<8xf32> to vector<8x1xf32>
    %43 = vector.broadcast %42 : vector<8x1xf32> to vector<8x8xf32>
    %44 = arith.subf %40, %43 : vector<8x8xf32>
    %45 = math.exp %44 : vector<8x8xf32>
    %cst_31 = arith.constant dense<0.000000e+00> : vector<8xf32>
    %46 = vector.multi_reduction <add>, %45, %cst_31 [1] : vector<8x8xf32> to vector<8xf32>
    %47 = vector.shape_cast %46 : vector<8xf32> to vector<8x1xf32>
    %48 = tpu.reciprocal %47 {approx = true} : vector<8x1xf32> -> vector<8x1xf32>
    %49 = vector.broadcast %48 : vector<8x1xf32> to vector<8x8xf32>
    %50 = arith.mulf %45, %49 : vector<8x8xf32>
    %51 = arith.truncf %50 : vector<8x8xf32> to vector<8x8xbf16>
    %52 = vector.extract_strided_slice %37 {offsets = [0, 0], sizes = [8, 32], strides = [1, 1]} : vector<8x128xbf16> to vector<8x32xbf16>
    %cst_32 = arith.constant dense<0.000000e+00> : vector<8x32xf32>
    %53 = tpu.matmul %51, %52, %cst_32 {dimension_numbers = #tpu.dot_dimension_numbers<[1], [0], [0], [1], [0, 0, 1, 1], [], []>} : vector<8x8xbf16>, vector<8x32xbf16>, vector<8x32xf32> -> vector<8x32xf32>
    %c0_33 = arith.constant 0 : index
    %c0_34 = arith.constant 0 : index
    %54 = vector.load %arg20[%c0_33, %c0_34] : memref<8x128xf32, #tpu.memory_space<vmem>>, vector<8x32xf32>
    tpu.vector_store %arg20[%c0_33, %c0_34], %53 {strides = array<i32>} : memref<8x128xf32, #tpu.memory_space<vmem>>, vector<8x32xf32>,
    %55 = vector.extract_strided_slice %35 {offsets = [0, 32], sizes = [8, 32], strides = [1, 1]} : vector<8x128xbf16> to vector<8x32xbf16>
    %56 = vector.extract_strided_slice %36 {offsets = [0, 32], sizes = [8, 32], strides = [1, 1]} : vector<8x128xbf16> to vector<8x32xbf16>
    %cst_35 = arith.constant dense<0.000000e+00> : vector<8x8xf32>
    %57 = tpu.matmul %55, %56, %cst_35 {dimension_numbers = #tpu.dot_dimension_numbers<[1], [1], [0], [0], [0, 0, 1, 0], [], []>} : vector<8x32xbf16>, vector<8x32xbf16>, vector<8x8xf32> -> vector<8x8xf32>
    %cst_36 = arith.constant dense<0xFF800000> : vector<8xf32>
    %58 = vector.multi_reduction <maximumf>, %57, %cst_36 [1] : vector<8x8xf32> to vector<8xf32>
    %59 = vector.shape_cast %58 : vector<8xf32> to vector<8x1xf32>
    %60 = vector.broadcast %59 : vector<8x1xf32> to vector<8x8xf32>
    %61 = arith.subf %57, %60 : vector<8x8xf32>
    %62 = math.exp %61 : vector<8x8xf32>
    %cst_37 = arith.constant dense<0.000000e+00> : vector<8xf32>
    %63 = vector.multi_reduction <add>, %62, %cst_37 [1] : vector<8x8xf32> to vector<8xf32>
    %64 = vector.shape_cast %63 : vector<8xf32> to vector<8x1xf32>
    %65 = tpu.reciprocal %64 {approx = true} : vector<8x1xf32> -> vector<8x1xf32>
    %66 = vector.broadcast %65 : vector<8x1xf32> to vector<8x8xf32>
    %67 = arith.mulf %62, %66 : vector<8x8xf32>
    %68 = arith.truncf %67 : vector<8x8xf32> to vector<8x8xbf16>
    %69 = vector.extract_strided_slice %37 {offsets = [0, 32], sizes = [8, 32], strides = [1, 1]} : vector<8x128xbf16> to vector<8x32xbf16>
    %cst_38 = arith.constant dense<0.000000e+00> : vector<8x32xf32>
    %70 = tpu.matmul %68, %69, %cst_38 {dimension_numbers = #tpu.dot_dimension_numbers<[1], [0], [0], [1], [0, 0, 1, 1], [], []>} : vector<8x8xbf16>, vector<8x32xbf16>, vector<8x32xf32> -> vector<8x32xf32>
    %c0_39 = arith.constant 0 : index
    %c32 = arith.constant 32 : index
    %71 = vector.load %arg20[%c0_39, %c32] : memref<8x128xf32, #tpu.memory_space<vmem>>, vector<8x32xf32>
    tpu.vector_store %arg20[%c0_39, %c32], %70 {strides = array<i32>} : memref<8x128xf32, #tpu.memory_space<vmem>>, vector<8x32xf32>,
    %72 = vector.extract_strided_slice %35 {offsets = [0, 64], sizes = [8, 32], strides = [1, 1]} : vector<8x128xbf16> to vector<8x32xbf16>
    %73 = vector.extract_strided_slice %36 {offsets = [0, 64], sizes = [8, 32], strides = [1, 1]} : vector<8x128xbf16> to vector<8x32xbf16>
    %cst_40 = arith.constant dense<0.000000e+00> : vector<8x8xf32>
    %74 = tpu.matmul %72, %73, %cst_40 {dimension_numbers = #tpu.dot_dimension_numbers<[1], [1], [0], [0], [0, 0, 1, 0], [], []>} : vector<8x32xbf16>, vector<8x32xbf16>, vector<8x8xf32> -> vector<8x8xf32>
    %cst_41 = arith.constant dense<0xFF800000> : vector<8xf32>
    %75 = vector.multi_reduction <maximumf>, %74, %cst_41 [1] : vector<8x8xf32> to vector<8xf32>
    %76 = vector.shape_cast %75 : vector<8xf32> to vector<8x1xf32>
    %77 = vector.broadcast %76 : vector<8x1xf32> to vector<8x8xf32>
    %78 = arith.subf %74, %77 : vector<8x8xf32>
    %79 = math.exp %78 : vector<8x8xf32>
    %cst_42 = arith.constant dense<0.000000e+00> : vector<8xf32>
    %80 = vector.multi_reduction <add>, %79, %cst_42 [1] : vector<8x8xf32> to vector<8xf32>
    %81 = vector.shape_cast %80 : vector<8xf32> to vector<8x1xf32>
    %82 = tpu.reciprocal %81 {approx = true} : vector<8x1xf32> -> vector<8x1xf32>
    %83 = vector.broadcast %82 : vector<8x1xf32> to vector<8x8xf32>
    %84 = arith.mulf %79, %83 : vector<8x8xf32>
    %85 = arith.truncf %84 : vector<8x8xf32> to vector<8x8xbf16>
    %86 = vector.extract_strided_slice %37 {offsets = [0, 64], sizes = [8, 32], strides = [1, 1]} : vector<8x128xbf16> to vector<8x32xbf16>
    %cst_43 = arith.constant dense<0.000000e+00> : vector<8x32xf32>
    %87 = tpu.matmul %85, %86, %cst_43 {dimension_numbers = #tpu.dot_dimension_numbers<[1], [0], [0], [1], [0, 0, 1, 1], [], []>} : vector<8x8xbf16>, vector<8x32xbf16>, vector<8x32xf32> -> vector<8x32xf32>
    %c0_44 = arith.constant 0 : index
    %c64 = arith.constant 64 : index
    %88 = vector.load %arg20[%c0_44, %c64] : memref<8x128xf32, #tpu.memory_space<vmem>>, vector<8x32xf32>
    tpu.vector_store %arg20[%c0_44, %c64], %87 {strides = array<i32>} : memref<8x128xf32, #tpu.memory_space<vmem>>, vector<8x32xf32>,
    %89 = vector.extract_strided_slice %35 {offsets = [0, 96], sizes = [8, 32], strides = [1, 1]} : vector<8x128xbf16> to vector<8x32xbf16>
    %90 = vector.extract_strided_slice %36 {offsets = [0, 96], sizes = [8, 32], strides = [1, 1]} : vector<8x128xbf16> to vector<8x32xbf16>
    %cst_45 = arith.constant dense<0.000000e+00> : vector<8x8xf32>
    %91 = tpu.matmul %89, %90, %cst_45 {dimension_numbers = #tpu.dot_dimension_numbers<[1], [1], [0], [0], [0, 0, 1, 0], [], []>} : vector<8x32xbf16>, vector<8x32xbf16>, vector<8x8xf32> -> vector<8x8xf32>
    %cst_46 = arith.constant dense<0xFF800000> : vector<8xf32>
    %92 = vector.multi_reduction <maximumf>, %91, %cst_46 [1] : vector<8x8xf32> to vector<8xf32>
    %93 = vector.shape_cast %92 : vector<8xf32> to vector<8x1xf32>
    %94 = vector.broadcast %93 : vector<8x1xf32> to vector<8x8xf32>
    %95 = arith.subf %91, %94 : vector<8x8xf32>
    %96 = math.exp %95 : vector<8x8xf32>
    %cst_47 = arith.constant dense<0.000000e+00> : vector<8xf32>
    %97 = vector.multi_reduction <add>, %96, %cst_47 [1] : vector<8x8xf32> to vector<8xf32>
    %98 = vector.shape_cast %97 : vector<8xf32> to vector<8x1xf32>
    %99 = tpu.reciprocal %98 {approx = true} : vector<8x1xf32> -> vector<8x1xf32>
    %100 = vector.broadcast %99 : vector<8x1xf32> to vector<8x8xf32>
    %101 = arith.mulf %96, %100 : vector<8x8xf32>
    %102 = arith.truncf %101 : vector<8x8xf32> to vector<8x8xbf16>
    %103 = vector.extract_strided_slice %37 {offsets = [0, 96], sizes = [8, 32], strides = [1, 1]} : vector<8x128xbf16> to vector<8x32xbf16>
    %cst_48 = arith.constant dense<0.000000e+00> : vector<8x32xf32>
    %104 = tpu.matmul %102, %103, %cst_48 {dimension_numbers = #tpu.dot_dimension_numbers<[1], [0], [0], [1], [0, 0, 1, 1], [], []>} : vector<8x8xbf16>, vector<8x32xbf16>, vector<8x32xf32> -> vector<8x32xf32>
    %c0_49 = arith.constant 0 : index
    %c96 = arith.constant 96 : index
    %105 = vector.load %arg20[%c0_49, %c96] : memref<8x128xf32, #tpu.memory_space<vmem>>, vector<8x32xf32>
    tpu.vector_store %arg20[%c0_49, %c96], %104 {strides = array<i32>} : memref<8x128xf32, #tpu.memory_space<vmem>>, vector<8x32xf32>,
    %c0_50 = arith.constant 0 : index
    %c0_51 = arith.constant 0 : index
    %106 = vector.load %arg20[%c0_50, %c0_51] : memref<8x128xf32, #tpu.memory_space<vmem>>, vector<8x128xf32>
    %c0_52 = arith.constant 0 : index
    %c0_53 = arith.constant 0 : index
    %c0_54 = arith.constant 0 : index
    %c0_55 = arith.constant 0 : index
    %107 = vector.load %arg8[%c0_52, %c0_53, %c0_54, %c0_55] : memref<1x2x128x128xbf16, #tpu.memory_space<vmem>>, vector<1x1x128x128xbf16>
    %108 = vector.shape_cast %107 : vector<1x1x128x128xbf16> to vector<128x128xbf16>
    %109 = arith.truncf %106 : vector<8x128xf32> to vector<8x128xbf16>
    %cst_56 = arith.constant dense<0.000000e+00> : vector<8x128xf32>
    %110 = tpu.matmul %109, %108, %cst_56 {dimension_numbers = #tpu.dot_dimension_numbers<[1], [0], [0], [1], [0, 0, 1, 1], [], []>} : vector<8x128xbf16>, vector<128x128xbf16>, vector<8x128xf32> -> vector<8x128xf32>
    %111 = vector.extract_strided_slice %8 {offsets = [0, 0], sizes = [1, 128], strides = [1, 1]} : vector<2x128xf32> to vector<1x128xf32>
    %112 = vector.broadcast %111 : vector<1x128xf32> to vector<8x128xf32>
    %113 = arith.addf %110, %112 : vector<8x128xf32>
    %114 = arith.addf %13, %113 : vector<8x128xf32>
    %115 = vector.extract_strided_slice %10 {offsets = [0, 0], sizes = [1, 128], strides = [1, 1]} : vector<3x128xf32> to vector<1x128xf32>
    %116 = vector.extract_strided_slice %12 {offsets = [0, 0], sizes = [1, 128], strides = [1, 1]} : vector<3x128xf32> to vector<1x128xf32>
    %cst_57 = arith.constant dense<0.000000e+00> : vector<8xf32>
    %117 = vector.multi_reduction <add>, %114, %cst_57 [1] : vector<8x128xf32> to vector<8xf32>
    %118 = vector.shape_cast %117 : vector<8xf32> to vector<8x1xf32>
    %cst_58 = arith.constant 1.280000e+02 : f32
    %119 = vector.broadcast %cst_58 : f32 to vector<8x1xf32>
    %120 = arith.divf %118, %119 : vector<8x1xf32>
    %121 = vector.broadcast %120 : vector<8x1xf32> to vector<8x128xf32>
    %122 = arith.subf %114, %121 : vector<8x128xf32>
    %123 = arith.mulf %122, %122 : vector<8x128xf32>
    %cst_59 = arith.constant dense<0.000000e+00> : vector<8xf32>
    %124 = vector.multi_reduction <add>, %123, %cst_59 [1] : vector<8x128xf32> to vector<8xf32>
    %125 = vector.shape_cast %124 : vector<8xf32> to vector<8x1xf32>
    %cst_60 = arith.constant 1.280000e+02 : f32
    %126 = vector.broadcast %cst_60 : f32 to vector<8x1xf32>
    %127 = arith.divf %125, %126 : vector<8x1xf32>
    %128 = vector.broadcast %120 : vector<8x1xf32> to vector<8x128xf32>
    %129 = arith.subf %114, %128 : vector<8x128xf32>
    %cst_61 = arith.constant 9.99999974E-6 : f32
    %130 = vector.broadcast %cst_61 : f32 to vector<8x1xf32>
    %131 = arith.addf %127, %130 : vector<8x1xf32>
    %132 = math.rsqrt %131 : vector<8x1xf32>
    %133 = vector.broadcast %132 : vector<8x1xf32> to vector<8x128xf32>
    %134 = arith.mulf %129, %133 : vector<8x128xf32>
    %135 = vector.broadcast %115 : vector<1x128xf32> to vector<8x128xf32>
    %136 = arith.mulf %134, %135 : vector<8x128xf32>
    %137 = vector.broadcast %116 : vector<1x128xf32> to vector<8x128xf32>
    %138 = arith.addf %136, %137 : vector<8x128xf32>
    %c0_62 = arith.constant 0 : index
    %c0_63 = arith.constant 0 : index
    %c0_64 = arith.constant 0 : index
    %139 = vector.load %arg4[%c0_62, %c0_63, %c0_64] : memref<1x16x128xf32, #tpu.memory_space<vmem>>, vector<1x16x128xf32>
    %140 = vector.shape_cast %139 : vector<1x16x128xf32> to vector<16x128xf32>
    %c0_65 = arith.constant 0 : index
    %c0_66 = arith.constant 0 : index
    %c0_67 = arith.constant 0 : index
    %141 = vector.load %arg5[%c0_65, %c0_66, %c0_67] : memref<1x16x128xf32, #tpu.memory_space<vmem>>, vector<1x16x128xf32>
    %142 = vector.shape_cast %141 : vector<1x16x128xf32> to vector<16x128xf32>
    %143 = arith.addf %140, %142 : vector<16x128xf32>
    %144 = arith.truncf %143 : vector<16x128xf32> to vector<16x128xbf16>
    %145 = arith.addf %138, %4 : vector<8x128xf32>
    %146 = arith.truncf %145 : vector<8x128xf32> to vector<8x128xbf16>
    %147 = arith.truncf %140 : vector<16x128xf32> to vector<16x128xbf16>
    %c0_68 = arith.constant 0 : index
    %c3 = arith.constant 3 : index
    %c0_69 = arith.constant 0 : index
    %c0_70 = arith.constant 0 : index
    %148 = vector.load %arg6[%c0_68, %c3, %c0_69, %c0_70] : memref<1x6x128x128xbf16, #tpu.memory_space<vmem>>, vector<1x1x128x128xbf16>
    %149 = vector.shape_cast %148 : vector<1x1x128x128xbf16> to vector<128x128xbf16>
    %cst_71 = arith.constant dense<0.000000e+00> : vector<8x128xf32>
    %150 = tpu.matmul %146, %149, %cst_71 {dimension_numbers = #tpu.dot_dimension_numbers<[1], [0], [0], [1], [0, 0, 1, 1], [], []>} : vector<8x128xbf16>, vector<128x128xbf16>, vector<8x128xf32> -> vector<8x128xf32>
    %151 = vector.extract_strided_slice %6 {offsets = [3, 0], sizes = [1, 128], strides = [1, 1]} : vector<6x128xf32> to vector<1x128xf32>
    %152 = vector.broadcast %151 : vector<1x128xf32> to vector<8x128xf32>
    %153 = arith.addf %150, %152 : vector<8x128xf32>
    %c0_72 = arith.constant 0 : index
    %c4 = arith.constant 4 : index
    %c0_73 = arith.constant 0 : index
    %c0_74 = arith.constant 0 : index
    %154 = vector.load %arg6[%c0_72, %c4, %c0_73, %c0_74] : memref<1x6x128x128xbf16, #tpu.memory_space<vmem>>, vector<1x1x128x128xbf16>
    %155 = vector.shape_cast %154 : vector<1x1x128x128xbf16> to vector<128x128xbf16>
    %cst_75 = arith.constant dense<0.000000e+00> : vector<16x128xf32>
    %156 = tpu.matmul %144, %155, %cst_75 {dimension_numbers = #tpu.dot_dimension_numbers<[1], [0], [0], [1], [0, 0, 1, 1], [], []>} : vector<16x128xbf16>, vector<128x128xbf16>, vector<16x128xf32> -> vector<16x128xf32>
    %157 = vector.extract_strided_slice %6 {offsets = [4, 0], sizes = [1, 128], strides = [1, 1]} : vector<6x128xf32> to vector<1x128xf32>
    %158 = vector.broadcast %157 : vector<1x128xf32> to vector<16x128xf32>
    %159 = arith.addf %156, %158 : vector<16x128xf32>
    %c0_76 = arith.constant 0 : index
    %c5 = arith.constant 5 : index
    %c0_77 = arith.constant 0 : index
    %c0_78 = arith.constant 0 : index
    %160 = vector.load %arg6[%c0_76, %c5, %c0_77, %c0_78] : memref<1x6x128x128xbf16, #tpu.memory_space<vmem>>, vector<1x1x128x128xbf16>
    %161 = vector.shape_cast %160 : vector<1x1x128x128xbf16> to vector<128x128xbf16>
    %cst_79 = arith.constant dense<0.000000e+00> : vector<16x128xf32>
    %162 = tpu.matmul %147, %161, %cst_79 {dimension_numbers = #tpu.dot_dimension_numbers<[1], [0], [0], [1], [0, 0, 1, 1], [], []>} : vector<16x128xbf16>, vector<128x128xbf16>, vector<16x128xf32> -> vector<16x128xf32>
    %163 = vector.extract_strided_slice %6 {offsets = [5, 0], sizes = [1, 128], strides = [1, 1]} : vector<6x128xf32> to vector<1x128xf32>
    %164 = vector.broadcast %163 : vector<1x128xf32> to vector<16x128xf32>
    %165 = arith.addf %162, %164 : vector<16x128xf32>
    %166 = arith.truncf %153 : vector<8x128xf32> to vector<8x128xbf16>
    %167 = arith.truncf %159 : vector<16x128xf32> to vector<16x128xbf16>
    %168 = arith.truncf %165 : vector<16x128xf32> to vector<16x128xbf16>
    %169 = vector.extract_strided_slice %166 {offsets = [0, 0], sizes = [8, 32], strides = [1, 1]} : vector<8x128xbf16> to vector<8x32xbf16>
    %170 = vector.extract_strided_slice %167 {offsets = [0, 0], sizes = [16, 32], strides = [1, 1]} : vector<16x128xbf16> to vector<16x32xbf16>
    %cst_80 = arith.constant dense<0.000000e+00> : vector<8x16xf32>
    %171 = tpu.matmul %169, %170, %cst_80 {dimension_numbers = #tpu.dot_dimension_numbers<[1], [1], [0], [0], [0, 0, 1, 0], [], []>} : vector<8x32xbf16>, vector<16x32xbf16>, vector<8x16xf32> -> vector<8x16xf32>
    %cst_81 = arith.constant dense<0xFF800000> : vector<8xf32>
    %172 = vector.multi_reduction <maximumf>, %171, %cst_81 [1] : vector<8x16xf32> to vector<8xf32>
    %173 = vector.shape_cast %172 : vector<8xf32> to vector<8x1xf32>
    %174 = vector.broadcast %173 : vector<8x1xf32> to vector<8x16xf32>
    %175 = arith.subf %171, %174 : vector<8x16xf32>
    %176 = math.exp %175 : vector<8x16xf32>
    %cst_82 = arith.constant dense<0.000000e+00> : vector<8xf32>
    %177 = vector.multi_reduction <add>, %176, %cst_82 [1] : vector<8x16xf32> to vector<8xf32>
    %178 = vector.shape_cast %177 : vector<8xf32> to vector<8x1xf32>
    %179 = tpu.reciprocal %178 {approx = true} : vector<8x1xf32> -> vector<8x1xf32>
    %180 = vector.broadcast %179 : vector<8x1xf32> to vector<8x16xf32>
    %181 = arith.mulf %176, %180 : vector<8x16xf32>
    %182 = arith.truncf %181 : vector<8x16xf32> to vector<8x16xbf16>
    %183 = vector.extract_strided_slice %168 {offsets = [0, 0], sizes = [16, 32], strides = [1, 1]} : vector<16x128xbf16> to vector<16x32xbf16>
    %cst_83 = arith.constant dense<0.000000e+00> : vector<8x32xf32>
    %184 = tpu.matmul %182, %183, %cst_83 {dimension_numbers = #tpu.dot_dimension_numbers<[1], [0], [0], [1], [0, 0, 1, 1], [], []>} : vector<8x16xbf16>, vector<16x32xbf16>, vector<8x32xf32> -> vector<8x32xf32>
    %c0_84 = arith.constant 0 : index
    %c0_85 = arith.constant 0 : index
    %185 = vector.load %arg20[%c0_84, %c0_85] : memref<8x128xf32, #tpu.memory_space<vmem>>, vector<8x32xf32>
    tpu.vector_store %arg20[%c0_84, %c0_85], %184 {strides = array<i32>} : memref<8x128xf32, #tpu.memory_space<vmem>>, vector<8x32xf32>,
    %186 = vector.extract_strided_slice %166 {offsets = [0, 32], sizes = [8, 32], strides = [1, 1]} : vector<8x128xbf16> to vector<8x32xbf16>
    %187 = vector.extract_strided_slice %167 {offsets = [0, 32], sizes = [16, 32], strides = [1, 1]} : vector<16x128xbf16> to vector<16x32xbf16>
    %cst_86 = arith.constant dense<0.000000e+00> : vector<8x16xf32>
    %188 = tpu.matmul %186, %187, %cst_86 {dimension_numbers = #tpu.dot_dimension_numbers<[1], [1], [0], [0], [0, 0, 1, 0], [], []>} : vector<8x32xbf16>, vector<16x32xbf16>, vector<8x16xf32> -> vector<8x16xf32>
    %cst_87 = arith.constant dense<0xFF800000> : vector<8xf32>
    %189 = vector.multi_reduction <maximumf>, %188, %cst_87 [1] : vector<8x16xf32> to vector<8xf32>
    %190 = vector.shape_cast %189 : vector<8xf32> to vector<8x1xf32>
    %191 = vector.broadcast %190 : vector<8x1xf32> to vector<8x16xf32>
    %192 = arith.subf %188, %191 : vector<8x16xf32>
    %193 = math.exp %192 : vector<8x16xf32>
    %cst_88 = arith.constant dense<0.000000e+00> : vector<8xf32>
    %194 = vector.multi_reduction <add>, %193, %cst_88 [1] : vector<8x16xf32> to vector<8xf32>
    %195 = vector.shape_cast %194 : vector<8xf32> to vector<8x1xf32>
    %196 = tpu.reciprocal %195 {approx = true} : vector<8x1xf32> -> vector<8x1xf32>
    %197 = vector.broadcast %196 : vector<8x1xf32> to vector<8x16xf32>
    %198 = arith.mulf %193, %197 : vector<8x16xf32>
    %199 = arith.truncf %198 : vector<8x16xf32> to vector<8x16xbf16>
    %200 = vector.extract_strided_slice %168 {offsets = [0, 32], sizes = [16, 32], strides = [1, 1]} : vector<16x128xbf16> to vector<16x32xbf16>
    %cst_89 = arith.constant dense<0.000000e+00> : vector<8x32xf32>
    %201 = tpu.matmul %199, %200, %cst_89 {dimension_numbers = #tpu.dot_dimension_numbers<[1], [0], [0], [1], [0, 0, 1, 1], [], []>} : vector<8x16xbf16>, vector<16x32xbf16>, vector<8x32xf32> -> vector<8x32xf32>
    %c0_90 = arith.constant 0 : index
    %c32_91 = arith.constant 32 : index
    %202 = vector.load %arg20[%c0_90, %c32_91] : memref<8x128xf32, #tpu.memory_space<vmem>>, vector<8x32xf32>
    tpu.vector_store %arg20[%c0_90, %c32_91], %201 {strides = array<i32>} : memref<8x128xf32, #tpu.memory_space<vmem>>, vector<8x32xf32>,
    %203 = vector.extract_strided_slice %166 {offsets = [0, 64], sizes = [8, 32], strides = [1, 1]} : vector<8x128xbf16> to vector<8x32xbf16>
    %204 = vector.extract_strided_slice %167 {offsets = [0, 64], sizes = [16, 32], strides = [1, 1]} : vector<16x128xbf16> to vector<16x32xbf16>
    %cst_92 = arith.constant dense<0.000000e+00> : vector<8x16xf32>
    %205 = tpu.matmul %203, %204, %cst_92 {dimension_numbers = #tpu.dot_dimension_numbers<[1], [1], [0], [0], [0, 0, 1, 0], [], []>} : vector<8x32xbf16>, vector<16x32xbf16>, vector<8x16xf32> -> vector<8x16xf32>
    %cst_93 = arith.constant dense<0xFF800000> : vector<8xf32>
    %206 = vector.multi_reduction <maximumf>, %205, %cst_93 [1] : vector<8x16xf32> to vector<8xf32>
    %207 = vector.shape_cast %206 : vector<8xf32> to vector<8x1xf32>
    %208 = vector.broadcast %207 : vector<8x1xf32> to vector<8x16xf32>
    %209 = arith.subf %205, %208 : vector<8x16xf32>
    %210 = math.exp %209 : vector<8x16xf32>
    %cst_94 = arith.constant dense<0.000000e+00> : vector<8xf32>
    %211 = vector.multi_reduction <add>, %210, %cst_94 [1] : vector<8x16xf32> to vector<8xf32>
    %212 = vector.shape_cast %211 : vector<8xf32> to vector<8x1xf32>
    %213 = tpu.reciprocal %212 {approx = true} : vector<8x1xf32> -> vector<8x1xf32>
    %214 = vector.broadcast %213 : vector<8x1xf32> to vector<8x16xf32>
    %215 = arith.mulf %210, %214 : vector<8x16xf32>
    %216 = arith.truncf %215 : vector<8x16xf32> to vector<8x16xbf16>
    %217 = vector.extract_strided_slice %168 {offsets = [0, 64], sizes = [16, 32], strides = [1, 1]} : vector<16x128xbf16> to vector<16x32xbf16>
    %cst_95 = arith.constant dense<0.000000e+00> : vector<8x32xf32>
    %218 = tpu.matmul %216, %217, %cst_95 {dimension_numbers = #tpu.dot_dimension_numbers<[1], [0], [0], [1], [0, 0, 1, 1], [], []>} : vector<8x16xbf16>, vector<16x32xbf16>, vector<8x32xf32> -> vector<8x32xf32>
    %c0_96 = arith.constant 0 : index
    %c64_97 = arith.constant 64 : index
    %219 = vector.load %arg20[%c0_96, %c64_97] : memref<8x128xf32, #tpu.memory_space<vmem>>, vector<8x32xf32>
    tpu.vector_store %arg20[%c0_96, %c64_97], %218 {strides = array<i32>} : memref<8x128xf32, #tpu.memory_space<vmem>>, vector<8x32xf32>,
    %220 = vector.extract_strided_slice %166 {offsets = [0, 96], sizes = [8, 32], strides = [1, 1]} : vector<8x128xbf16> to vector<8x32xbf16>
    %221 = vector.extract_strided_slice %167 {offsets = [0, 96], sizes = [16, 32], strides = [1, 1]} : vector<16x128xbf16> to vector<16x32xbf16>
    %cst_98 = arith.constant dense<0.000000e+00> : vector<8x16xf32>
    %222 = tpu.matmul %220, %221, %cst_98 {dimension_numbers = #tpu.dot_dimension_numbers<[1], [1], [0], [0], [0, 0, 1, 0], [], []>} : vector<8x32xbf16>, vector<16x32xbf16>, vector<8x16xf32> -> vector<8x16xf32>
    %cst_99 = arith.constant dense<0xFF800000> : vector<8xf32>
    %223 = vector.multi_reduction <maximumf>, %222, %cst_99 [1] : vector<8x16xf32> to vector<8xf32>
    %224 = vector.shape_cast %223 : vector<8xf32> to vector<8x1xf32>
    %225 = vector.broadcast %224 : vector<8x1xf32> to vector<8x16xf32>
    %226 = arith.subf %222, %225 : vector<8x16xf32>
    %227 = math.exp %226 : vector<8x16xf32>
    %cst_100 = arith.constant dense<0.000000e+00> : vector<8xf32>
    %228 = vector.multi_reduction <add>, %227, %cst_100 [1] : vector<8x16xf32> to vector<8xf32>
    %229 = vector.shape_cast %228 : vector<8xf32> to vector<8x1xf32>
    %230 = tpu.reciprocal %229 {approx = true} : vector<8x1xf32> -> vector<8x1xf32>
    %231 = vector.broadcast %230 : vector<8x1xf32> to vector<8x16xf32>
    %232 = arith.mulf %227, %231 : vector<8x16xf32>
    %233 = arith.truncf %232 : vector<8x16xf32> to vector<8x16xbf16>
    %234 = vector.extract_strided_slice %168 {offsets = [0, 96], sizes = [16, 32], strides = [1, 1]} : vector<16x128xbf16> to vector<16x32xbf16>
    %cst_101 = arith.constant dense<0.000000e+00> : vector<8x32xf32>
    %235 = tpu.matmul %233, %234, %cst_101 {dimension_numbers = #tpu.dot_dimension_numbers<[1], [0], [0], [1], [0, 0, 1, 1], [], []>} : vector<8x16xbf16>, vector<16x32xbf16>, vector<8x32xf32> -> vector<8x32xf32>
    %c0_102 = arith.constant 0 : index
    %c96_103 = arith.constant 96 : index
    %236 = vector.load %arg20[%c0_102, %c96_103] : memref<8x128xf32, #tpu.memory_space<vmem>>, vector<8x32xf32>
    tpu.vector_store %arg20[%c0_102, %c96_103], %235 {strides = array<i32>} : memref<8x128xf32, #tpu.memory_space<vmem>>, vector<8x32xf32>,
    %c0_104 = arith.constant 0 : index
    %c0_105 = arith.constant 0 : index
    %237 = vector.load %arg20[%c0_104, %c0_105] : memref<8x128xf32, #tpu.memory_space<vmem>>, vector<8x128xf32>
    %c0_106 = arith.constant 0 : index
    %c1_107 = arith.constant 1 : index
    %c0_108 = arith.constant 0 : index
    %c0_109 = arith.constant 0 : index
    %238 = vector.load %arg8[%c0_106, %c1_107, %c0_108, %c0_109] : memref<1x2x128x128xbf16, #tpu.memory_space<vmem>>, vector<1x1x128x128xbf16>
    %239 = vector.shape_cast %238 : vector<1x1x128x128xbf16> to vector<128x128xbf16>
    %240 = arith.truncf %237 : vector<8x128xf32> to vector<8x128xbf16>
    %cst_110 = arith.constant dense<0.000000e+00> : vector<8x128xf32>
    %241 = tpu.matmul %240, %239, %cst_110 {dimension_numbers = #tpu.dot_dimension_numbers<[1], [0], [0], [1], [0, 0, 1, 1], [], []>} : vector<8x128xbf16>, vector<128x128xbf16>, vector<8x128xf32> -> vector<8x128xf32>
    %242 = vector.extract_strided_slice %8 {offsets = [1, 0], sizes = [1, 128], strides = [1, 1]} : vector<2x128xf32> to vector<1x128xf32>
    %243 = vector.broadcast %242 : vector<1x128xf32> to vector<8x128xf32>
    %244 = arith.addf %241, %243 : vector<8x128xf32>
    %245 = arith.addf %138, %244 : vector<8x128xf32>
    %246 = vector.extract_strided_slice %10 {offsets = [1, 0], sizes = [1, 128], strides = [1, 1]} : vector<3x128xf32> to vector<1x128xf32>
    %247 = vector.extract_strided_slice %12 {offsets = [1, 0], sizes = [1, 128], strides = [1, 1]} : vector<3x128xf32> to vector<1x128xf32>
    %cst_111 = arith.constant dense<0.000000e+00> : vector<8xf32>
    %248 = vector.multi_reduction <add>, %245, %cst_111 [1] : vector<8x128xf32> to vector<8xf32>
    %249 = vector.shape_cast %248 : vector<8xf32> to vector<8x1xf32>
    %cst_112 = arith.constant 1.280000e+02 : f32
    %250 = vector.broadcast %cst_112 : f32 to vector<8x1xf32>
    %251 = arith.divf %249, %250 : vector<8x1xf32>
    %252 = vector.broadcast %251 : vector<8x1xf32> to vector<8x128xf32>
    %253 = arith.subf %245, %252 : vector<8x128xf32>
    %254 = arith.mulf %253, %253 : vector<8x128xf32>
    %cst_113 = arith.constant dense<0.000000e+00> : vector<8xf32>
    %255 = vector.multi_reduction <add>, %254, %cst_113 [1] : vector<8x128xf32> to vector<8xf32>
    %256 = vector.shape_cast %255 : vector<8xf32> to vector<8x1xf32>
    %cst_114 = arith.constant 1.280000e+02 : f32
    %257 = vector.broadcast %cst_114 : f32 to vector<8x1xf32>
    %258 = arith.divf %256, %257 : vector<8x1xf32>
    %259 = vector.broadcast %251 : vector<8x1xf32> to vector<8x128xf32>
    %260 = arith.subf %245, %259 : vector<8x128xf32>
    %cst_115 = arith.constant 9.99999974E-6 : f32
    %261 = vector.broadcast %cst_115 : f32 to vector<8x1xf32>
    %262 = arith.addf %258, %261 : vector<8x1xf32>
    %263 = math.rsqrt %262 : vector<8x1xf32>
    %264 = vector.broadcast %263 : vector<8x1xf32> to vector<8x128xf32>
    %265 = arith.mulf %260, %264 : vector<8x128xf32>
    %266 = vector.broadcast %246 : vector<1x128xf32> to vector<8x128xf32>
    %267 = arith.mulf %265, %266 : vector<8x128xf32>
    %268 = vector.broadcast %247 : vector<1x128xf32> to vector<8x128xf32>
    %269 = arith.addf %267, %268 : vector<8x128xf32>
    %270 = arith.truncf %269 : vector<8x128xf32> to vector<8x128xbf16>
    %c0_116 = arith.constant 0 : index
    %c0_117 = arith.constant 0 : index
    %c0_118 = arith.constant 0 : index
    %271 = vector.load %arg10[%c0_116, %c0_117, %c0_118] : memref<1x128x256xbf16, #tpu.memory_space<vmem>>, vector<1x128x256xbf16>
    %272 = vector.shape_cast %271 : vector<1x128x256xbf16> to vector<128x256xbf16>
    %cst_119 = arith.constant dense<0.000000e+00> : vector<8x256xf32>
    %273 = tpu.matmul %270, %272, %cst_119 {dimension_numbers = #tpu.dot_dimension_numbers<[1], [0], [0], [1], [0, 0, 1, 1], [], []>} : vector<8x128xbf16>, vector<128x256xbf16>, vector<8x256xf32> -> vector<8x256xf32>
    %c0_120 = arith.constant 0 : index
    %c0_121 = arith.constant 0 : index
    %c0_122 = arith.constant 0 : index
    %274 = vector.load %arg11[%c0_120, %c0_121, %c0_122] : memref<1x1x256xf32, #tpu.memory_space<vmem>>, vector<1x1x256xf32>
    %275 = vector.shape_cast %274 : vector<1x1x256xf32> to vector<1x256xf32>
    %276 = vector.broadcast %275 : vector<1x256xf32> to vector<8x256xf32>
    %277 = arith.addf %273, %276 : vector<8x256xf32>
    %cst_123 = arith.constant 0.000000e+00 : f32
    %278 = vector.broadcast %cst_123 : f32 to vector<8x256xf32>
    %279 = arith.maximumf %277, %278 : vector<8x256xf32>
    %c0_124 = arith.constant 0 : index
    %c0_125 = arith.constant 0 : index
    %c0_126 = arith.constant 0 : index
    %280 = vector.load %arg12[%c0_124, %c0_125, %c0_126] : memref<1x256x128xbf16, #tpu.memory_space<vmem>>, vector<1x256x128xbf16>
    %281 = vector.shape_cast %280 : vector<1x256x128xbf16> to vector<256x128xbf16>
    %282 = arith.truncf %279 : vector<8x256xf32> to vector<8x256xbf16>
    %cst_127 = arith.constant dense<0.000000e+00> : vector<8x128xf32>
    %283 = tpu.matmul %282, %281, %cst_127 {dimension_numbers = #tpu.dot_dimension_numbers<[1], [0], [0], [1], [0, 0, 1, 1], [], []>} : vector<8x256xbf16>, vector<256x128xbf16>, vector<8x128xf32> -> vector<8x128xf32>
    %c0_128 = arith.constant 0 : index
    %c0_129 = arith.constant 0 : index
    %c0_130 = arith.constant 0 : index
    %284 = vector.load %arg13[%c0_128, %c0_129, %c0_130] : memref<1x1x128xf32, #tpu.memory_space<vmem>>, vector<1x1x128xf32>
    %285 = vector.shape_cast %284 : vector<1x1x128xf32> to vector<1x128xf32>
    %286 = vector.broadcast %285 : vector<1x128xf32> to vector<8x128xf32>
    %287 = arith.addf %283, %286 : vector<8x128xf32>
    %288 = arith.addf %269, %287 : vector<8x128xf32>
    %289 = vector.extract_strided_slice %10 {offsets = [2, 0], sizes = [1, 128], strides = [1, 1]} : vector<3x128xf32> to vector<1x128xf32>
    %290 = vector.extract_strided_slice %12 {offsets = [2, 0], sizes = [1, 128], strides = [1, 1]} : vector<3x128xf32> to vector<1x128xf32>
    %cst_131 = arith.constant dense<0.000000e+00> : vector<8xf32>
    %291 = vector.multi_reduction <add>, %288, %cst_131 [1] : vector<8x128xf32> to vector<8xf32>
    %292 = vector.shape_cast %291 : vector<8xf32> to vector<8x1xf32>
    %cst_132 = arith.constant 1.280000e+02 : f32
    %293 = vector.broadcast %cst_132 : f32 to vector<8x1xf32>
    %294 = arith.divf %292, %293 : vector<8x1xf32>
    %295 = vector.broadcast %294 : vector<8x1xf32> to vector<8x128xf32>
    %296 = arith.subf %288, %295 : vector<8x128xf32>
    %297 = arith.mulf %296, %296 : vector<8x128xf32>
    %cst_133 = arith.constant dense<0.000000e+00> : vector<8xf32>
    %298 = vector.multi_reduction <add>, %297, %cst_133 [1] : vector<8x128xf32> to vector<8xf32>
    %299 = vector.shape_cast %298 : vector<8xf32> to vector<8x1xf32>
    %cst_134 = arith.constant 1.280000e+02 : f32
    %300 = vector.broadcast %cst_134 : f32 to vector<8x1xf32>
    %301 = arith.divf %299, %300 : vector<8x1xf32>
    %302 = vector.broadcast %294 : vector<8x1xf32> to vector<8x128xf32>
    %303 = arith.subf %288, %302 : vector<8x128xf32>
    %cst_135 = arith.constant 9.99999974E-6 : f32
    %304 = vector.broadcast %cst_135 : f32 to vector<8x1xf32>
    %305 = arith.addf %301, %304 : vector<8x1xf32>
    %306 = math.rsqrt %305 : vector<8x1xf32>
    %307 = vector.broadcast %306 : vector<8x1xf32> to vector<8x128xf32>
    %308 = arith.mulf %303, %307 : vector<8x128xf32>
    %309 = vector.broadcast %289 : vector<1x128xf32> to vector<8x128xf32>
    %310 = arith.mulf %308, %309 : vector<8x128xf32>
    %311 = vector.broadcast %290 : vector<1x128xf32> to vector<8x128xf32>
    %312 = arith.addf %310, %311 : vector<8x128xf32>
    %c0_136 = arith.constant 0 : index
    %c0_137 = arith.constant 0 : index
    %313 = vector.load %arg19[%c0_136, %c0_137] : memref<8x128xf32, #tpu.memory_space<vmem>>, vector<8x128xf32>
    tpu.vector_store %arg19[%c0_136, %c0_137], %312 {strides = array<i32>} : memref<8x128xf32, #tpu.memory_space<vmem>>, vector<8x128xf32>,
    %c1_i32 = arith.constant 1 : i32
    %314 = arith.cmpi eq, %arg1, %c1_i32 : i32
    %315 = arith.extui %314 : i1 to i32
    %c0_i32_138 = arith.constant 0 : i32
    %316 = arith.cmpi ne, %315, %c0_i32_138 : i32
    scf.if %316 {
      %c0_139 = arith.constant 0 : index
      %c0_140 = arith.constant 0 : index
      %317 = vector.load %arg16[%c0_139, %c0_140] : memref<1x128xf32, #tpu.memory_space<vmem>>, vector<1x128xf32>
      %c0_141 = arith.constant 0 : index
      %c0_142 = arith.constant 0 : index
      %318 = vector.load %arg17[%c0_141, %c0_142] : memref<1x128xf32, #tpu.memory_space<vmem>>, vector<1x128xf32>
      %cst_143 = arith.constant dense<0.000000e+00> : vector<8xf32>
      %319 = vector.multi_reduction <add>, %312, %cst_143 [1] : vector<8x128xf32> to vector<8xf32>
      %320 = vector.shape_cast %319 : vector<8xf32> to vector<8x1xf32>
      %cst_144 = arith.constant 1.280000e+02 : f32
      %321 = vector.broadcast %cst_144 : f32 to vector<8x1xf32>
      %322 = arith.divf %320, %321 : vector<8x1xf32>
      %323 = vector.broadcast %322 : vector<8x1xf32> to vector<8x128xf32>
      %324 = arith.subf %312, %323 : vector<8x128xf32>
      %325 = arith.mulf %324, %324 : vector<8x128xf32>
      %cst_145 = arith.constant dense<0.000000e+00> : vector<8xf32>
      %326 = vector.multi_reduction <add>, %325, %cst_145 [1] : vector<8x128xf32> to vector<8xf32>
      %327 = vector.shape_cast %326 : vector<8xf32> to vector<8x1xf32>
      %cst_146 = arith.constant 1.280000e+02 : f32
      %328 = vector.broadcast %cst_146 : f32 to vector<8x1xf32>
      %329 = arith.divf %327, %328 : vector<8x1xf32>
      %330 = vector.broadcast %322 : vector<8x1xf32> to vector<8x128xf32>
      %331 = arith.subf %312, %330 : vector<8x128xf32>
      %cst_147 = arith.constant 9.99999974E-6 : f32
      %332 = vector.broadcast %cst_147 : f32 to vector<8x1xf32>
      %333 = arith.addf %329, %332 : vector<8x1xf32>
      %334 = math.rsqrt %333 : vector<8x1xf32>
      %335 = vector.broadcast %334 : vector<8x1xf32> to vector<8x128xf32>
      %336 = arith.mulf %331, %335 : vector<8x128xf32>
      %337 = vector.broadcast %317 : vector<1x128xf32> to vector<8x128xf32>
      %338 = arith.mulf %336, %337 : vector<8x128xf32>
      %339 = vector.broadcast %318 : vector<1x128xf32> to vector<8x128xf32>
      %340 = arith.addf %338, %339 : vector<8x128xf32>
      %c0_148 = arith.constant 0 : index
      %c0_149 = arith.constant 0 : index
      %c0_150 = arith.constant 0 : index
      %341 = vector.load %arg18[%c0_148, %c0_149, %c0_150] : memref<1x8x128xf32, #tpu.memory_space<vmem>>, vector<1x8x128xf32>
      %342 = vector.shape_cast %341 : vector<1x8x128xf32> to vector<8x128xf32>
      %343 = vector.shape_cast %340 : vector<8x128xf32> to vector<1x8x128xf32>
      tpu.vector_store %arg18[%c0_148, %c0_149, %c0_150], %343 {strides = array<i32>} : memref<1x8x128xf32, #tpu.memory_space<vmem>>, vector<1x8x128xf32>,
    } else {
    }
    return
  }
  func.func @transform_0(%arg0: i32, %arg1: i32) -> (i32, i32, i32) {
    %c0_i32 = arith.constant 0 : i32
    %c0_i32_0 = arith.constant 0 : i32
    %c0_i32_1 = arith.constant 0 : i32
    return %arg0, %c0_i32, %c0_i32_0 : i32, i32, i32
  }
  func.func @transform_1(%arg0: i32, %arg1: i32) -> (i32, i32, i32) {
    %c0_i32 = arith.constant 0 : i32
    %c0_i32_0 = arith.constant 0 : i32
    %c0_i32_1 = arith.constant 0 : i32
    return %arg0, %c0_i32, %c0_i32_0 : i32, i32, i32
  }
  func.func @transform_2(%arg0: i32, %arg1: i32) -> (i32, i32, i32) {
    %c0_i32 = arith.constant 0 : i32
    %c0_i32_0 = arith.constant 0 : i32
    %c0_i32_1 = arith.constant 0 : i32
    return %arg0, %c0_i32, %c0_i32_0 : i32, i32, i32
  }
  func.func @transform_3(%arg0: i32, %arg1: i32) -> (i32, i32, i32) {
    %c0_i32 = arith.constant 0 : i32
    %c0_i32_0 = arith.constant 0 : i32
    %c0_i32_1 = arith.constant 0 : i32
    return %arg0, %c0_i32, %c0_i32_0 : i32, i32, i32
  }
  func.func @transform_4(%arg0: i32, %arg1: i32) -> (i32, i32, i32, i32) {
    %c0_i32 = arith.constant 0 : i32
    %c0_i32_0 = arith.constant 0 : i32
    %c0_i32_1 = arith.constant 0 : i32
    %c0_i32_2 = arith.constant 0 : i32
    return %arg1, %c0_i32, %c0_i32_0, %c0_i32_1 : i32, i32, i32, i32
  }
  func.func @transform_5(%arg0: i32, %arg1: i32) -> (i32, i32, i32) {
    %c0_i32 = arith.constant 0 : i32
    %c0_i32_0 = arith.constant 0 : i32
    %c0_i32_1 = arith.constant 0 : i32
    return %arg1, %c0_i32, %c0_i32_0 : i32, i32, i32
  }
  func.func @transform_6(%arg0: i32, %arg1: i32) -> (i32, i32, i32, i32) {
    %c0_i32 = arith.constant 0 : i32
    %c0_i32_0 = arith.constant 0 : i32
    %c0_i32_1 = arith.constant 0 : i32
    %c0_i32_2 = arith.constant 0 : i32
    return %arg1, %c0_i32, %c0_i32_0, %c0_i32_1 : i32, i32, i32, i32
  }
  func.func @transform_7(%arg0: i32, %arg1: i32) -> (i32, i32, i32) {
    %c0_i32 = arith.constant 0 : i32
    %c0_i32_0 = arith.constant 0 : i32
    %c0_i32_1 = arith.constant 0 : i32
    return %arg1, %c0_i32, %c0_i32_0 : i32, i32, i32
  }
  func.func @transform_8(%arg0: i32, %arg1: i32) -> (i32, i32, i32) {
    %c0_i32 = arith.constant 0 : i32
    %c0_i32_0 = arith.constant 0 : i32
    %c0_i32_1 = arith.constant 0 : i32
    return %arg1, %c0_i32, %c0_i32_0 : i32, i32, i32
  }
  func.func @transform_9(%arg0: i32, %arg1: i32) -> (i32, i32, i32) {
    %c0_i32 = arith.constant 0 : i32
    %c0_i32_0 = arith.constant 0 : i32
    %c0_i32_1 = arith.constant 0 : i32
    return %arg1, %c0_i32, %c0_i32_0 : i32, i32, i32
  }
  func.func @transform_10(%arg0: i32, %arg1: i32) -> (i32, i32, i32) {
    %c0_i32 = arith.constant 0 : i32
    %c0_i32_0 = arith.constant 0 : i32
    %c0_i32_1 = arith.constant 0 : i32
    return %arg1, %c0_i32, %c0_i32_0 : i32, i32, i32
  }
  func.func @transform_11(%arg0: i32, %arg1: i32) -> (i32, i32, i32) {
    %c0_i32 = arith.constant 0 : i32
    %c0_i32_0 = arith.constant 0 : i32
    %c0_i32_1 = arith.constant 0 : i32
    return %arg1, %c0_i32, %c0_i32_0 : i32, i32, i32
  }
  func.func @transform_12(%arg0: i32, %arg1: i32) -> (i32, i32, i32) {
    %c0_i32 = arith.constant 0 : i32
    %c0_i32_0 = arith.constant 0 : i32
    %c0_i32_1 = arith.constant 0 : i32
    return %arg1, %c0_i32, %c0_i32_0 : i32, i32, i32
  }
  func.func @transform_13(%arg0: i32, %arg1: i32) -> (i32, i32, i32) {
    %c0_i32 = arith.constant 0 : i32
    %c0_i32_0 = arith.constant 0 : i32
    %c0_i32_1 = arith.constant 0 : i32
    return %arg1, %c0_i32, %c0_i32_0 : i32, i32, i32
  }
  func.func @transform_14(%arg0: i32, %arg1: i32) -> (i32, i32) {
    %c0_i32 = arith.constant 0 : i32
    %c0_i32_0 = arith.constant 0 : i32
    %c0_i32_1 = arith.constant 0 : i32
    return %c0_i32, %c0_i32_0 : i32, i32
  }
  func.func @transform_15(%arg0: i32, %arg1: i32) -> (i32, i32) {
    %c0_i32 = arith.constant 0 : i32
    %c0_i32_0 = arith.constant 0 : i32
    %c0_i32_1 = arith.constant 0 : i32
    return %c0_i32, %c0_i32_0 : i32, i32
  }
  func.func @transform_16(%arg0: i32, %arg1: i32) -> (i32, i32, i32) {
    %c0_i32 = arith.constant 0 : i32
    %c0_i32_0 = arith.constant 0 : i32
    %c0_i32_1 = arith.constant 0 : i32
    return %arg0, %c0_i32, %c0_i32_0 : i32, i32, i32
  }
}

</mosaic_0001>

<llo_original>
// kernel: tpu_custom_call.1
$region0: #{tpu_custom_call.1}
  #allocation0 [shape = 'u32[]', space=smem, size = 0x4, offset = 0x4, fixed_abs, tag = 'smem constant byte address 0x4 - core index']
  #allocation1 [shape = 'u32[144,128]{1,0:T(1,128)}', space=vmem, size = 0x12000, scoped, tag = 'internal scratch']
  #allocation2 [shape = 'f32[8,128]{1,0:T(8,128)}', space=vmem, size = 0x1000, scoped, tag = 'scratch operand']
  #allocation3 [shape = 'f32[8,128]{1,0:T(8,128)}', space=vmem, size = 0x1000, scoped, tag = 'scratch operand']
  %s0 = inlined_call_operand.vmem [shape: f32[2,8,128], index: 0, kind: input, shape index: {}]
  %s1 = inlined_call_operand.hbm [shape: f32[2,8,128], index: 1, kind: input, shape index: {}]
  %s2 = inlined_call_operand.vmem [shape: f32[2,16,128], index: 2, kind: input, shape index: {}]
  %s3 = inlined_call_operand.hbm [shape: f32[2,16,128], index: 3, kind: input, shape index: {}]
  %s4 = inlined_call_operand.hbm [shape: bf16[2,6,128,128], index: 4, kind: input, shape index: {}]
  %s5 = inlined_call_operand.vmem [shape: f32[2,6,128], index: 5, kind: input, shape index: {}]
  %s6 = inlined_call_operand.hbm [shape: bf16[2,2,128,128], index: 6, kind: input, shape index: {}]
  %s7 = inlined_call_operand.hbm [shape: f32[2,2,128], index: 7, kind: input, shape index: {}]
  %s8 = inlined_call_operand.hbm [shape: bf16[2,128,256], index: 8, kind: input, shape index: {}]
  %s9 = inlined_call_operand.hbm [shape: f32[2,1,256], index: 9, kind: input, shape index: {}]
  %s10 = inlined_call_operand.hbm [shape: bf16[2,256,128], index: 10, kind: input, shape index: {}]
  %s11 = inlined_call_operand.vmem [shape: f32[2,1,128], index: 11, kind: input, shape index: {}]
  %s12 = inlined_call_operand.vmem [shape: f32[2,3,128], index: 12, kind: input, shape index: {}]
  %s13 = inlined_call_operand.vmem [shape: f32[2,3,128], index: 13, kind: input, shape index: {}]
  %s14 = inlined_call_operand.vmem [shape: f32[1,128], index: 14, kind: input, shape index: {}]
  %s15 = inlined_call_operand.vmem [shape: f32[1,128], index: 15, kind: input, shape index: {}]
  %s16 = inlined_call_operand.hbm [shape: f32[2,8,128], index: 16, kind: output, shape index: {}]
  %s17 = sld [smem:[#allocation0]]
  $region137: #{tpu_custom_call.1} parent=0
    _
  %s19 = ssub.s32 1, %s17
  %s20 = scalar_select 0, %s19, %s17
  $region1: #{tpu_custom_call.1} parent=0
    #allocation4 [shape = 'u8[8192]{0}', space=vmem, size = 0x2000, scoped, tag = 'input window, operand 1']
    #allocation5 [shape = 's32[2]{0}', space=sflag, size = 0x8, scoped, tag = 'scoped memory for tpu_custom_call.1']
    #allocation6 [shape = 's32[2]{0}', space=sflag, size = 0x8, scoped, tag = 'scoped memory for tpu_custom_call.1']
    #allocation7 [shape = 'u8[16384]{0}', space=vmem, size = 0x4000, scoped, tag = 'input window, operand 3']
    #allocation8 [shape = 's32[2]{0}', space=sflag, size = 0x8, scoped, tag = 'scoped memory for tpu_custom_call.1']
    #allocation9 [shape = 'u8[393216]{0}', space=vmem, size = 0x60000, scoped, tag = 'input window, operand 4']
    #allocation10 [shape = 'u8[131072]{0}', space=vmem, size = 0x20000, scoped, tag = 'input window, operand 6']
    #allocation11 [shape = 's32[2]{0}', space=sflag, size = 0x8, scoped, tag = 'scoped memory for tpu_custom_call.1']
    #allocation12 [shape = 'u8[2048]{0}', space=vmem, size = 0x800, scoped, tag = 'input window, operand 7']
    #allocation13 [shape = 'u8[131072]{0}', space=vmem, size = 0x20000, scoped, tag = 'input window, operand 8']
    #allocation14 [shape = 's32[2]{0}', space=sflag, size = 0x8, scoped, tag = 'scoped memory for tpu_custom_call.1']
    #allocation15 [shape = 'u8[2048]{0}', space=vmem, size = 0x800, scoped, tag = 'input window, operand 9']
    #allocation16 [shape = 'u8[131072]{0}', space=vmem, size = 0x20000, scoped, tag = 'input window, operand 10']
    #allocation17 [shape = 's32[2]{0}', space=sflag, size = 0x8, scoped, tag = 'scoped memory for tpu_custom_call.1']
    #allocation18 [shape = 'u8[8192]{0}', space=vmem, size = 0x2000, scoped, tag = 'output window, operand 0']
    %21 = vsyncpa [#allocation5], 0
    %s22 = scalar_lea.sflag [#allocation5], 1
    %23 = vsyncpa %s22, 0
    %24 = vsyncpa [#allocation8], 0
    %s25 = scalar_lea.sflag [#allocation8], 1
    %26 = vsyncpa %s25, 0
    %27 = vsyncpa [#allocation11], 0
    %s28 = scalar_lea.sflag [#allocation11], 1
    %29 = vsyncpa %s28, 0
    %30 = vsyncpa [#allocation14], 0
    %s31 = scalar_lea.sflag [#allocation14], 1
    %32 = vsyncpa %s31, 0
    %33 = vsyncpa [#allocation17], 0
    %s34 = scalar_lea.sflag [#allocation17], 1
    %35 = vsyncpa %s34, 0
    %36 = vsyncpa [#allocation6], 0
    %s37 = scalar_lea.sflag [#allocation6], 1
    %38 = vsyncpa %s37, 0
    loop: start=0, step=1, limit=6
    $region2: #{tpu_custom_call.1} parent=1 // loop_pre_header
      _
    $region3: #{tpu_custom_call.1} parent=1 // loop_header
      %s40 = sphi 0, %s44
      %p41 = scmp.ge.s32.totalorder %s40, 6
      %s47 = sphi 0, %s59
      %s48 = sphi 0, %s55
      %s49 = sphi 0, %s47
      %s50 = sphi 0, %s48
      %s51 = sphi 0, %s49
      %s52 = sphi 0, %s50
      %s62 = sphi 0, %s64
      %s65 = sphi 0, %s62
      %s66 = sphi 0, %s65
      %s82 = sphi 0, %s66
      %s88 = sphi 0, %s90
      %s91 = sphi 0, %s88
      %s92 = sphi 0, %s91
      %s108 = sphi 0, %s92
      %s114 = sphi 0, %s116
      %s117 = sphi 0, %s114
      %s118 = sphi 0, %s117
      %s134 = sphi 0, %s118
      %s140 = sphi 0, %s142
      %s143 = sphi 0, %s140
      %s144 = sphi 0, %s143
      %s160 = sphi 0, %s144
      %s166 = sphi 0, %s168
      %s169 = sphi 0, %s166
      %s170 = sphi 0, %s169
      %s186 = sphi 0, %s170
      %s192 = sphi 0, %s194
      %s195 = sphi 0, %s192
      %s196 = sphi 0, %s195
      %s212 = sphi 0, %s196
      %s218 = sphi 0, %s220
      %s221 = sphi 0, %s218
      %s222 = sphi 0, %s221
      %s238 = sphi 0, %s222
      %s244 = sphi 0, %s246
      %s247 = sphi 0, %s244
      %s248 = sphi 0, %s247
      %s264 = sphi 0, %s248
      %s270 = sphi 0, %s272
      %s273 = sphi 0, %s270
      %s274 = sphi 0, %s273
      %s290 = sphi 0, %s274
      %s296 = sphi 0, %s298
      %s299 = sphi 0, %s296
      %s300 = sphi 0, %s299
      %s316 = sphi 0, %s300
      %s322 = sphi 0, %s324
      %s325 = sphi 0, %s322
      %s326 = sphi 0, %s325
      %s342 = sphi 0, %s326
      %s348 = sphi 0, %s350
      %s351 = sphi 0, %s348
      %s352 = sphi 0, %s351
      %s368 = sphi 0, %s352
      %s374 = sphi 0, %s376
      %s377 = sphi 0, %s374
      %s378 = sphi 0, %s377
      %s394 = sphi 0, %s378
      %s400 = sphi 0, %s402
      %s403 = sphi 0, %s400
      %s404 = sphi 0, %s403
      %s420 = sphi 0, %s404
      %s424 = sphi 0, %s424
      %s426 = sphi 0, %s424
      %s427 = sphi 0, %s426
      %s441 = sphi 0, %s427
      %s445 = sphi 0, %s445
      %s447 = sphi 0, %s445
      %s448 = sphi 0, %s447
      %s462 = sphi 0, %s448
      %s468 = sphi 0, %s470
      %s471 = sphi 0, %s468
      %s472 = sphi 0, %s471
      %s488 = sphi 0, %s472
    $region4: #{tpu_custom_call.1} parent=1 // loop_header_branch
      %43 = sbr.rel (%p41) target = $region8
    $region5: #{tpu_custom_call.1} parent=1 // loop_body
      %s45 = ssub.s32 %s40, 1
      %s46 = ssub.s32 %s40, 2
      %s53 = sadd.s32 1, %s48
      %p54 = scmp.ge.s32.totalorder %s53, 2
      %s55 = scalar_select %p54, 0, %s53
      %s56 = sadd.s32 1, %s47
      %s57 = scalar_select %p54, %s56, %s47
      %p58 = scmp.ge.s32.totalorder %s57, 2
      %s59 = scalar_select %p58, 0, %s57
      %s60 = ssub.s32 %s47, %s59
      %p61 = scmp.eq.s32.totalorder %s60, 0
      %s63 = sadd.s32 %s62, 1
      %s64 = scalar_select %p61, %s62, %s63
      %p67 = pneg %p61
      %p68 = scmp.eq.s32.totalorder %s40, 3
      %p69 = por %p67, %p68
      %p70 = scmp.ne.s32.totalorder %s62, %s65
      %p71 = scmp.eq.s32.totalorder %s40, 0
      %p72 = por %p70, %p71
      %p73 = scmp.ne.s32.totalorder %s62, %s65
      %p74 = scmp.eq.s32.totalorder %s45, 3
      %p75 = por %p73, %p74
      %p76 = scmp.ne.s32.totalorder %s65, %s66
      %p77 = scmp.eq.s32.totalorder %s45, 0
      %p78 = por %p76, %p77
      %p79 = scmp.ne.s32.totalorder %s65, %s66
      %p80 = scmp.eq.s32.totalorder %s46, 3
      %p81 = por %p79, %p80
      %p83 = scmp.ne.s32.totalorder %s66, %s82
      %p84 = scmp.eq.s32.totalorder %s46, 0
      %p85 = por %p83, %p84
      %s86 = ssub.s32 %s47, %s59
      %p87 = scmp.eq.s32.totalorder %s86, 0
      %s89 = sadd.s32 %s88, 1
      %s90 = scalar_select %p87, %s88, %s89
      %p93 = pneg %p87
      %p94 = scmp.eq.s32.totalorder %s40, 3
      %p95 = por %p93, %p94
      %p96 = scmp.ne.s32.totalorder %s88, %s91
      %p97 = scmp.eq.s32.totalorder %s40, 0
      %p98 = por %p96, %p97
      %p99 = scmp.ne.s32.totalorder %s88, %s91
      %p100 = scmp.eq.s32.totalorder %s45, 3
      %p101 = por %p99, %p100
      %p102 = scmp.ne.s32.totalorder %s91, %s92
      %p103 = scmp.eq.s32.totalorder %s45, 0
      %p104 = por %p102, %p103
      %p105 = scmp.ne.s32.totalorder %s91, %s92
      %p106 = scmp.eq.s32.totalorder %s46, 3
      %p107 = por %p105, %p106
      %p109 = scmp.ne.s32.totalorder %s92, %s108
      %p110 = scmp.eq.s32.totalorder %s46, 0
      %p111 = por %p109, %p110
      %s112 = ssub.s32 %s47, %s59
      %p113 = scmp.eq.s32.totalorder %s112, 0
      %s115 = sadd.s32 %s114, 1
      %s116 = scalar_select %p113, %s114, %s115
      %p119 = pneg %p113
      %p120 = scmp.eq.s32.totalorder %s40, 3
      %p121 = por %p119, %p120
      %p122 = scmp.ne.s32.totalorder %s114, %s117
      %p123 = scmp.eq.s32.totalorder %s40, 0
      %p124 = por %p122, %p123
      %p125 = scmp.ne.s32.totalorder %s114, %s117
      %p126 = scmp.eq.s32.totalorder %s45, 3
      %p127 = por %p125, %p126
      %p128 = scmp.ne.s32.totalorder %s117, %s118
      %p129 = scmp.eq.s32.totalorder %s45, 0
      %p130 = por %p128, %p129
      %p131 = scmp.ne.s32.totalorder %s117, %s118
      %p132 = scmp.eq.s32.totalorder %s46, 3
      %p133 = por %p131, %p132
      %p135 = scmp.ne.s32.totalorder %s118, %s134
      %p136 = scmp.eq.s32.totalorder %s46, 0
      %p137 = por %p135, %p136
      %s138 = ssub.s32 %s47, %s59
      %p139 = scmp.eq.s32.totalorder %s138, 0
      %s141 = sadd.s32 %s140, 1
      %s142 = scalar_select %p139, %s140, %s141
      %p145 = pneg %p139
      %p146 = scmp.eq.s32.totalorder %s40, 3
      %p147 = por %p145, %p146
      %p148 = scmp.ne.s32.totalorder %s140, %s143
      %p149 = scmp.eq.s32.totalorder %s40, 0
      %p150 = por %p148, %p149
      %p151 = scmp.ne.s32.totalorder %s140, %s143
      %p152 = scmp.eq.s32.totalorder %s45, 3
      %p153 = por %p151, %p152
      %p154 = scmp.ne.s32.totalorder %s143, %s144
      %p155 = scmp.eq.s32.totalorder %s45, 0
      %p156 = por %p154, %p155
      %p157 = scmp.ne.s32.totalorder %s143, %s144
      %p158 = scmp.eq.s32.totalorder %s46, 3
      %p159 = por %p157, %p158
      %p161 = scmp.ne.s32.totalorder %s144, %s160
      %p162 = scmp.eq.s32.totalorder %s46, 0
      %p163 = por %p161, %p162
      %s164 = ssub.s32 %s48, %s55
      %p165 = scmp.eq.s32.totalorder %s164, 0
      %s167 = sadd.s32 %s166, 1
      %s168 = scalar_select %p165, %s166, %s167
      %p171 = pneg %p165
      %p172 = scmp.eq.s32.totalorder %s40, 3
      %p173 = por %p171, %p172
      %p174 = scmp.ne.s32.totalorder %s166, %s169
      %p175 = scmp.eq.s32.totalorder %s40, 0
      %p176 = por %p174, %p175
      %p177 = scmp.ne.s32.totalorder %s166, %s169
      %p178 = scmp.eq.s32.totalorder %s45, 3
      %p179 = por %p177, %p178
      %p180 = scmp.ne.s32.totalorder %s169, %s170
      %p181 = scmp.eq.s32.totalorder %s45, 0
      %p182 = por %p180, %p181
      %p183 = scmp.ne.s32.totalorder %s169, %s170
      %p184 = scmp.eq.s32.totalorder %s46, 3
      %p185 = por %p183, %p184
      %p187 = scmp.ne.s32.totalorder %s170, %s186
      %p188 = scmp.eq.s32.totalorder %s46, 0
      %p189 = por %p187, %p188
      %s190 = ssub.s32 %s48, %s55
      %p191 = scmp.eq.s32.totalorder %s190, 0
      %s193 = sadd.s32 %s192, 1
      %s194 = scalar_select %p191, %s192, %s193
      %p197 = pneg %p191
      %p198 = scmp.eq.s32.totalorder %s40, 3
      %p199 = por %p197, %p198
      %p200 = scmp.ne.s32.totalorder %s192, %s195
      %p201 = scmp.eq.s32.totalorder %s40, 0
      %p202 = por %p200, %p201
      %p203 = scmp.ne.s32.totalorder %s192, %s195
      %p204 = scmp.eq.s32.totalorder %s45, 3
      %p205 = por %p203, %p204
      %p206 = scmp.ne.s32.totalorder %s195, %s196
      %p207 = scmp.eq.s32.totalorder %s45, 0
      %p208 = por %p206, %p207
      %p209 = scmp.ne.s32.totalorder %s195, %s196
      %p210 = scmp.eq.s32.totalorder %s46, 3
      %p211 = por %p209, %p210
      %p213 = scmp.ne.s32.totalorder %s196, %s212
      %p214 = scmp.eq.s32.totalorder %s46, 0
      %p215 = por %p213, %p214
      %s216 = ssub.s32 %s48, %s55
      %p217 = scmp.eq.s32.totalorder %s216, 0
      %s219 = sadd.s32 %s218, 1
      %s220 = scalar_select %p217, %s218, %s219
      %p223 = pneg %p217
      %p224 = scmp.eq.s32.totalorder %s40, 3
      %p225 = por %p223, %p224
      %p226 = scmp.ne.s32.totalorder %s218, %s221
      %p227 = scmp.eq.s32.totalorder %s40, 0
      %p228 = por %p226, %p227
      %p229 = scmp.ne.s32.totalorder %s218, %s221
      %p230 = scmp.eq.s32.totalorder %s45, 3
      %p231 = por %p229, %p230
      %p232 = scmp.ne.s32.totalorder %s221, %s222
      %p233 = scmp.eq.s32.totalorder %s45, 0
      %p234 = por %p232, %p233
      %p235 = scmp.ne.s32.totalorder %s221, %s222
      %p236 = scmp.eq.s32.totalorder %s46, 3
      %p237 = por %p235, %p236
      %p239 = scmp.ne.s32.totalorder %s222, %s238
      %p240 = scmp.eq.s32.totalorder %s46, 0
      %p241 = por %p239, %p240
      %s242 = ssub.s32 %s48, %s55
      %p243 = scmp.eq.s32.totalorder %s242, 0
      %s245 = sadd.s32 %s244, 1
      %s246 = scalar_select %p243, %s244, %s245
      %p249 = pneg %p243
      %p250 = scmp.eq.s32.totalorder %s40, 3
      %p251 = por %p249, %p250
      %p252 = scmp.ne.s32.totalorder %s244, %s247
      %p253 = scmp.eq.s32.totalorder %s40, 0
      %p254 = por %p252, %p253
      %p255 = scmp.ne.s32.totalorder %s244, %s247
      %p256 = scmp.eq.s32.totalorder %s45, 3
      %p257 = por %p255, %p256
      %p258 = scmp.ne.s32.totalorder %s247, %s248
      %p259 = scmp.eq.s32.totalorder %s45, 0
      %p260 = por %p258, %p259
      %p261 = scmp.ne.s32.totalorder %s247, %s248
      %p262 = scmp.eq.s32.totalorder %s46, 3
      %p263 = por %p261, %p262
      %p265 = scmp.ne.s32.totalorder %s248, %s264
      %p266 = scmp.eq.s32.totalorder %s46, 0
      %p267 = por %p265, %p266
      %s268 = ssub.s32 %s48, %s55
      %p269 = scmp.eq.s32.totalorder %s268, 0
      %s271 = sadd.s32 %s270, 1
      %s272 = scalar_select %p269, %s270, %s271
      %p275 = pneg %p269
      %p276 = scmp.eq.s32.totalorder %s40, 3
      %p277 = por %p275, %p276
      %p278 = scmp.ne.s32.totalorder %s270, %s273
      %p279 = scmp.eq.s32.totalorder %s40, 0
      %p280 = por %p278, %p279
      %p281 = scmp.ne.s32.totalorder %s270, %s273
      %p282 = scmp.eq.s32.totalorder %s45, 3
      %p283 = por %p281, %p282
      %p284 = scmp.ne.s32.totalorder %s273, %s274
      %p285 = scmp.eq.s32.totalorder %s45, 0
      %p286 = por %p284, %p285
      %p287 = scmp.ne.s32.totalorder %s273, %s274
      %p288 = scmp.eq.s32.totalorder %s46, 3
      %p289 = por %p287, %p288
      %p291 = scmp.ne.s32.totalorder %s274, %s290
      %p292 = scmp.eq.s32.totalorder %s46, 0
      %p293 = por %p291, %p292
      %s294 = ssub.s32 %s48, %s55
      %p295 = scmp.eq.s32.totalorder %s294, 0
      %s297 = sadd.s32 %s296, 1
      %s298 = scalar_select %p295, %s296, %s297
      %p301 = pneg %p295
      %p302 = scmp.eq.s32.totalorder %s40, 3
      %p303 = por %p301, %p302
      %p304 = scmp.ne.s32.totalorder %s296, %s299
      %p305 = scmp.eq.s32.totalorder %s40, 0
      %p306 = por %p304, %p305
      %p307 = scmp.ne.s32.totalorder %s296, %s299
      %p308 = scmp.eq.s32.totalorder %s45, 3
      %p309 = por %p307, %p308
      %p310 = scmp.ne.s32.totalorder %s299, %s300
      %p311 = scmp.eq.s32.totalorder %s45, 0
      %p312 = por %p310, %p311
      %p313 = scmp.ne.s32.totalorder %s299, %s300
      %p314 = scmp.eq.s32.totalorder %s46, 3
      %p315 = por %p313, %p314
      %p317 = scmp.ne.s32.totalorder %s300, %s316
      %p318 = scmp.eq.s32.totalorder %s46, 0
      %p319 = por %p317, %p318
      %s320 = ssub.s32 %s48, %s55
      %p321 = scmp.eq.s32.totalorder %s320, 0
      %s323 = sadd.s32 %s322, 1
      %s324 = scalar_select %p321, %s322, %s323
      %p327 = pneg %p321
      %p328 = scmp.eq.s32.totalorder %s40, 3
      %p329 = por %p327, %p328
      %p330 = scmp.ne.s32.totalorder %s322, %s325
      %p331 = scmp.eq.s32.totalorder %s40, 0
      %p332 = por %p330, %p331
      %p333 = scmp.ne.s32.totalorder %s322, %s325
      %p334 = scmp.eq.s32.totalorder %s45, 3
      %p335 = por %p333, %p334
      %p336 = scmp.ne.s32.totalorder %s325, %s326
      %p337 = scmp.eq.s32.totalorder %s45, 0
      %p338 = por %p336, %p337
      %p339 = scmp.ne.s32.totalorder %s325, %s326
      %p340 = scmp.eq.s32.totalorder %s46, 3
      %p341 = por %p339, %p340
      %p343 = scmp.ne.s32.totalorder %s326, %s342
      %p344 = scmp.eq.s32.totalorder %s46, 0
      %p345 = por %p343, %p344
      %s346 = ssub.s32 %s48, %s55
      %p347 = scmp.eq.s32.totalorder %s346, 0
      %s349 = sadd.s32 %s348, 1
      %s350 = scalar_select %p347, %s348, %s349
      %p353 = pneg %p347
      %p354 = scmp.eq.s32.totalorder %s40, 3
      %p355 = por %p353, %p354
      %p356 = scmp.ne.s32.totalorder %s348, %s351
      %p357 = scmp.eq.s32.totalorder %s40, 0
      %p358 = por %p356, %p357
      %p359 = scmp.ne.s32.totalorder %s348, %s351
      %p360 = scmp.eq.s32.totalorder %s45, 3
      %p361 = por %p359, %p360
      %p362 = scmp.ne.s32.totalorder %s351, %s352
      %p363 = scmp.eq.s32.totalorder %s45, 0
      %p364 = por %p362, %p363
      %p365 = scmp.ne.s32.totalorder %s351, %s352
      %p366 = scmp.eq.s32.totalorder %s46, 3
      %p367 = por %p365, %p366
      %p369 = scmp.ne.s32.totalorder %s352, %s368
      %p370 = scmp.eq.s32.totalorder %s46, 0
      %p371 = por %p369, %p370
      %s372 = ssub.s32 %s48, %s55
      %p373 = scmp.eq.s32.totalorder %s372, 0
      %s375 = sadd.s32 %s374, 1
      %s376 = scalar_select %p373, %s374, %s375
      %p379 = pneg %p373
      %p380 = scmp.eq.s32.totalorder %s40, 3
      %p381 = por %p379, %p380
      %p382 = scmp.ne.s32.totalorder %s374, %s377
      %p383 = scmp.eq.s32.totalorder %s40, 0
      %p384 = por %p382, %p383
      %p385 = scmp.ne.s32.totalorder %s374, %s377
      %p386 = scmp.eq.s32.totalorder %s45, 3
      %p387 = por %p385, %p386
      %p388 = scmp.ne.s32.totalorder %s377, %s378
      %p389 = scmp.eq.s32.totalorder %s45, 0
      %p390 = por %p388, %p389
      %p391 = scmp.ne.s32.totalorder %s377, %s378
      %p392 = scmp.eq.s32.totalorder %s46, 3
      %p393 = por %p391, %p392
      %p395 = scmp.ne.s32.totalorder %s378, %s394
      %p396 = scmp.eq.s32.totalorder %s46, 0
      %p397 = por %p395, %p396
      %s398 = ssub.s32 %s48, %s55
      %p399 = scmp.eq.s32.totalorder %s398, 0
      %s401 = sadd.s32 %s400, 1
      %s402 = scalar_select %p399, %s400, %s401
      %p405 = pneg %p399
      %p406 = scmp.eq.s32.totalorder %s40, 3
      %p407 = por %p405, %p406
      %p408 = scmp.ne.s32.totalorder %s400, %s403
      %p409 = scmp.eq.s32.totalorder %s40, 0
      %p410 = por %p408, %p409
      %p411 = scmp.ne.s32.totalorder %s400, %s403
      %p412 = scmp.eq.s32.totalorder %s45, 3
      %p413 = por %p411, %p412
      %p414 = scmp.ne.s32.totalorder %s403, %s404
      %p415 = scmp.eq.s32.totalorder %s45, 0
      %p416 = por %p414, %p415
      %p417 = scmp.ne.s32.totalorder %s403, %s404
      %p418 = scmp.eq.s32.totalorder %s46, 3
      %p419 = por %p417, %p418
      %p421 = scmp.ne.s32.totalorder %s404, %s420
      %p422 = scmp.eq.s32.totalorder %s46, 0
      %p423 = por %p421, %p422
      %s425 = sadd.s32 %s424, 1
      %p428 = scmp.eq.s32.totalorder %s40, 3
      %p429 = scmp.ne.s32.totalorder %s424, %s426
      %p430 = scmp.eq.s32.totalorder %s40, 0
      %p431 = por %p429, %p430
      %p432 = scmp.ne.s32.totalorder %s424, %s426
      %p433 = scmp.eq.s32.totalorder %s45, 3
      %p434 = por %p432, %p433
      %p435 = scmp.ne.s32.totalorder %s426, %s427
      %p436 = scmp.eq.s32.totalorder %s45, 0
      %p437 = por %p435, %p436
      %p438 = scmp.ne.s32.totalorder %s426, %s427
      %p439 = scmp.eq.s32.totalorder %s46, 3
      %p440 = por %p438, %p439
      %p442 = scmp.ne.s32.totalorder %s427, %s441
      %p443 = scmp.eq.s32.totalorder %s46, 0
      %p444 = por %p442, %p443
      %s446 = sadd.s32 %s445, 1
      %p449 = scmp.eq.s32.totalorder %s40, 3
      %p450 = scmp.ne.s32.totalorder %s445, %s447
      %p451 = scmp.eq.s32.totalorder %s40, 0
      %p452 = por %p450, %p451
      %p453 = scmp.ne.s32.totalorder %s445, %s447
      %p454 = scmp.eq.s32.totalorder %s45, 3
      %p455 = por %p453, %p454
      %p456 = scmp.ne.s32.totalorder %s447, %s448
      %p457 = scmp.eq.s32.totalorder %s45, 0
      %p458 = por %p456, %p457
      %p459 = scmp.ne.s32.totalorder %s447, %s448
      %p460 = scmp.eq.s32.totalorder %s46, 3
      %p461 = por %p459, %p460
      %p463 = scmp.ne.s32.totalorder %s448, %s462
      %p464 = scmp.eq.s32.totalorder %s46, 0
      %p465 = por %p463, %p464
      %s466 = ssub.s32 %s47, %s59
      %p467 = scmp.eq.s32.totalorder %s466, 0
      %s469 = sadd.s32 %s468, 1
      %s470 = scalar_select %p467, %s468, %s469
      %p473 = pneg %p467
      %p474 = scmp.eq.s32.totalorder %s40, 3
      %p475 = por %p473, %p474
      %p476 = scmp.ne.s32.totalorder %s468, %s471
      %p477 = scmp.eq.s32.totalorder %s40, 0
      %p478 = por %p476, %p477
      %p479 = scmp.ne.s32.totalorder %s468, %s471
      %p480 = scmp.eq.s32.totalorder %s45, 3
      %p481 = por %p479, %p480
      %p482 = scmp.ne.s32.totalorder %s471, %s472
      %p483 = scmp.eq.s32.totalorder %s45, 0
      %p484 = por %p482, %p483
      %p485 = scmp.ne.s32.totalorder %s471, %s472
      %p486 = scmp.eq.s32.totalorder %s46, 3
      %p487 = por %p485, %p486
      %p489 = scmp.ne.s32.totalorder %s472, %s488
      %p490 = scmp.eq.s32.totalorder %s46, 0
      %p491 = por %p489, %p490
      %p492 = scmp.le.s32.totalorder 1, %s40
      %p493 = scmp.lt.s32.totalorder %s40, 5
      %p494 = pnand %p492, %p493
      %p495 = pneg %p494
      // Predicated region
      $region9: #{tpu_custom_call.1} parent=5 // pred_check
        _
      $region10: #{tpu_custom_call.1} parent=5 // pred_check_branch
        %497 = sbr.rel (%p494) target = $region12
      $region11: #{tpu_custom_call.1} parent=5 // pred_region
        %s498 = ssub.s32 %s40, 1
        // Predicated region
        $region13: #{tpu_custom_call.1} parent=11 // pred_check
          %p499 = pneg %p437
        $region14: #{tpu_custom_call.1} parent=11 // pred_check_branch
          %501 = sbr.rel (%p499) target = $region16
        $region15: #{tpu_custom_call.1} parent=11 // pred_region
          _
        $region16: #{tpu_custom_call.1} parent=11 // pred_fallthru
          _
        // Predicated region
        $region17: #{tpu_custom_call.1} parent=11 // pred_check
          %p502 = pneg %p458
        $region18: #{tpu_custom_call.1} parent=11 // pred_check_branch
          %504 = sbr.rel (%p502) target = $region20
        $region19: #{tpu_custom_call.1} parent=11 // pred_region
          _
        $region20: #{tpu_custom_call.1} parent=11 // pred_fallthru
          _
      $region12: #{tpu_custom_call.1} parent=5 // pred_fallthru
        _
      %p505 = scmp.lt.s32.totalorder %s40, 4
      // Predicated region
      $region21: #{tpu_custom_call.1} parent=5 // pred_check
        %p506 = pneg %p505
      $region22: #{tpu_custom_call.1} parent=5 // pred_check_branch
        %508 = sbr.rel (%p506) target = $region24
      $region23: #{tpu_custom_call.1} parent=5 // pred_region
        // Predicated region
        $region25: #{tpu_custom_call.1} parent=23 // pred_check
          %p509 = pneg %p72
        $region26: #{tpu_custom_call.1} parent=23 // pred_check_branch
          %511 = sbr.rel (%p509) target = $region28
        $region27: #{tpu_custom_call.1} parent=23 // pred_region
          %p512 = scmp.lt.s32.totalorder %s47, 1
          %s513 = scalar_select %p512, %s47, 1
          %s514 = smul.addr %s513, 8
          %s515 = scalar_lea.vmem %s0, %s514
        $region28: #{tpu_custom_call.1} parent=23 // pred_fallthru
          _
        // Predicated region
        $region29: #{tpu_custom_call.1} parent=23 // pred_check
          %p516 = pneg %p98
        $region30: #{tpu_custom_call.1} parent=23 // pred_check_branch
          %518 = sbr.rel (%p516) target = $region32
        $region31: #{tpu_custom_call.1} parent=23 // pred_region
          %s519 = sand.u32 %s88, 1
          %s520 = scalar_lea.sflag [#allocation5], %s519
          %s521 = sand.u32 %s88, 1
          %s522 = smul.addr %s521, 8
          %s523 = scalar_lea.vmem [#allocation4], %s522
          %s525 = ssub.s32 128, 128
          %526 = vsyncadd %s520, %s525
          %s527 = smul.addr %s47, 128
          %s528 = scalar_lea.hbm %s1, %s527
          %s530 = sshll.u32 %s523, 4
          %s531 = int_to_ptr.vmem [resolvable:$true] %s530
          %533 = dma.hbm_to_vmem [thread:$0]  %s528, 128, %s531, %s520
        $region32: #{tpu_custom_call.1} parent=23 // pred_fallthru
          _
        // Predicated region
        $region33: #{tpu_custom_call.1} parent=23 // pred_check
          %p534 = pneg %p124
        $region34: #{tpu_custom_call.1} parent=23 // pred_check_branch
          %536 = sbr.rel (%p534) target = $region36
        $region35: #{tpu_custom_call.1} parent=23 // pred_region
          %p537 = scmp.lt.s32.totalorder %s47, 1
          %s538 = scalar_select %p537, %s47, 1
          %s539 = smul.addr %s538, 2
          %s540 = smul.addr %s539, 8
          %s541 = scalar_lea.vmem %s2, %s540
        $region36: #{tpu_custom_call.1} parent=23 // pred_fallthru
          _
        // Predicated region
        $region37: #{tpu_custom_call.1} parent=23 // pred_check
          %p542 = pneg %p150
        $region38: #{tpu_custom_call.1} parent=23 // pred_check_branch
          %544 = sbr.rel (%p542) target = $region40
        $region39: #{tpu_custom_call.1} parent=23 // pred_region
          %s545 = sand.u32 %s40, 1
          %s546 = scalar_lea.sflag [#allocation8], %s545
          %s547 = sand.u32 %s140, 1
          %s548 = smul.addr %s547, 16
          %s549 = scalar_lea.vmem [#allocation7], %s548
          %s551 = ssub.s32 256, 256
          %552 = vsyncadd %s546, %s551
          %s553 = smul.addr %s47, 2
          %s554 = smul.addr %s553, 128
          %s555 = scalar_lea.hbm %s3, %s554
          %s556 = sshll.u32 %s549, 4
          %s557 = int_to_ptr.vmem [resolvable:$true] %s556
          %562 = dma.hbm_to_vmem [thread:$0]  %s555, 256, %s557, %s546, 128, 128, 8
        $region40: #{tpu_custom_call.1} parent=23 // pred_fallthru
          _
        // Predicated region
        $region41: #{tpu_custom_call.1} parent=23 // pred_check
          %p563 = pneg %p176
        $region42: #{tpu_custom_call.1} parent=23 // pred_check_branch
          %565 = sbr.rel (%p563) target = $region44
        $region43: #{tpu_custom_call.1} parent=23 // pred_region
          %s566 = sand.u32 %s40, 1
          %s567 = scalar_lea.sflag [#allocation8], %s566
          %s568 = sand.u32 %s166, 1
          %s569 = smul.addr %s568, 384
          %s570 = scalar_lea.vmem [#allocation9], %s569
          %s572 = ssub.s32 6144, 6144
          %573 = vsyncadd %s567, %s572
          %s574 = smul.addr %s48, 96
          %s575 = smul.addr %s574, 64
          %s576 = scalar_lea.hbm %s4, %s575
          %s577 = sshll.u32 %s570, 4
          %s578 = int_to_ptr.vmem [resolvable:$true] %s577
          %583 = dma.hbm_to_vmem [thread:$0]  %s576, 6144, %s578, %s567, 64, 64, 4
        $region44: #{tpu_custom_call.1} parent=23 // pred_fallthru
          _
        // Predicated region
        $region45: #{tpu_custom_call.1} parent=23 // pred_check
          %p584 = pneg %p202
        $region46: #{tpu_custom_call.1} parent=23 // pred_check_branch
          %586 = sbr.rel (%p584) target = $region48
        $region47: #{tpu_custom_call.1} parent=23 // pred_region
          %p587 = scmp.lt.s32.totalorder %s48, 1
          %s588 = scalar_select %p587, %s48, 1
          %s589 = smul.addr %s588, 8
          %s590 = scalar_lea.vmem %s5, %s589
        $region48: #{tpu_custom_call.1} parent=23 // pred_fallthru
          _
        // Predicated region
        $region49: #{tpu_custom_call.1} parent=23 // pred_check
          %p591 = pneg %p228
        $region50: #{tpu_custom_call.1} parent=23 // pred_check_branch
          %593 = sbr.rel (%p591) target = $region52
        $region51: #{tpu_custom_call.1} parent=23 // pred_region
          %s594 = sand.u32 %s40, 1
          %s595 = scalar_lea.sflag [#allocation11], %s594
          %s596 = sand.u32 %s218, 1
          %s597 = smul.addr %s596, 128
          %s598 = scalar_lea.vmem [#allocation10], %s597
          %s600 = ssub.s32 2048, 2048
          %601 = vsyncadd %s595, %s600
          %s602 = smul.addr %s48, 32
          %s603 = smul.addr %s602, 64
          %s604 = scalar_lea.hbm %s6, %s603
          %s605 = sshll.u32 %s598, 4
          %s606 = int_to_ptr.vmem [resolvable:$true] %s605
          %611 = dma.hbm_to_vmem [thread:$0]  %s604, 2048, %s606, %s595, 64, 64, 4
        $region52: #{tpu_custom_call.1} parent=23 // pred_fallthru
          _
        // Predicated region
        $region53: #{tpu_custom_call.1} parent=23 // pred_check
          %p612 = pneg %p254
        $region54: #{tpu_custom_call.1} parent=23 // pred_check_branch
          %614 = sbr.rel (%p612) target = $region56
        $region55: #{tpu_custom_call.1} parent=23 // pred_region
          %s615 = sand.u32 %s40, 1
          %s616 = scalar_lea.sflag [#allocation11], %s615
          %s617 = sand.u32 %s244, 1
          %s618 = smul.addr %s617, 2
          %s619 = scalar_lea.vmem [#allocation12], %s618
          %s621 = ssub.s32 32, 32
          %622 = vsyncadd %s616, %s621
          %s623 = smul.addr %s48, 32
          %s624 = scalar_lea.hbm %s7, %s623
          %s626 = sshll.u32 %s619, 4
          %s627 = int_to_ptr.vmem [resolvable:$true] %s626
          %629 = dma.hbm_to_vmem [thread:$0]  %s624, 32, %s627, %s616
        $region56: #{tpu_custom_call.1} parent=23 // pred_fallthru
          _
        // Predicated region
        $region57: #{tpu_custom_call.1} parent=23 // pred_check
          %p630 = pneg %p280
        $region58: #{tpu_custom_call.1} parent=23 // pred_check_branch
          %632 = sbr.rel (%p630) target = $region60
        $region59: #{tpu_custom_call.1} parent=23 // pred_region
          %s633 = sand.u32 %s40, 1
          %s634 = scalar_lea.sflag [#allocation14], %s633
          %s635 = sand.u32 %s270, 1
          %s636 = smul.addr %s635, 128
          %s637 = scalar_lea.vmem [#allocation13], %s636
          %s639 = ssub.s32 2048, 2048
          %640 = vsyncadd %s634, %s639
          %s641 = smul.addr %s48, 32
          %s642 = smul.addr %s641, 64
          %s643 = scalar_lea.hbm %s8, %s642
          %s644 = sshll.u32 %s637, 4
          %s645 = int_to_ptr.vmem [resolvable:$true] %s644
          %650 = dma.hbm_to_vmem [thread:$0]  %s643, 2048, %s645, %s634, 128, 128, 8
        $region60: #{tpu_custom_call.1} parent=23 // pred_fallthru
          _
        // Predicated region
        $region61: #{tpu_custom_call.1} parent=23 // pred_check
          %p651 = pneg %p306
        $region62: #{tpu_custom_call.1} parent=23 // pred_check_branch
          %653 = sbr.rel (%p651) target = $region64
        $region63: #{tpu_custom_call.1} parent=23 // pred_region
          %s654 = sand.u32 %s40, 1
          %s655 = scalar_lea.sflag [#allocation14], %s654
          %s656 = sand.u32 %s296, 1
          %s657 = smul.addr %s656, 2
          %s658 = scalar_lea.vmem [#allocation15], %s657
          %s660 = ssub.s32 32, 32
          %661 = vsyncadd %s655, %s660
          %s662 = smul.addr %s48, 2
          %s663 = smul.addr %s662, 16
          %s664 = scalar_lea.hbm %s9, %s663
          %s666 = sshll.u32 %s658, 4
          %s667 = int_to_ptr.vmem [resolvable:$true] %s666
          %669 = dma.hbm_to_vmem [thread:$0]  %s664, 32, %s667, %s655
        $region64: #{tpu_custom_call.1} parent=23 // pred_fallthru
          _
        // Predicated region
        $region65: #{tpu_custom_call.1} parent=23 // pred_check
          %p670 = pneg %p332
        $region66: #{tpu_custom_call.1} parent=23 // pred_check_branch
          %672 = sbr.rel (%p670) target = $region68
        $region67: #{tpu_custom_call.1} parent=23 // pred_region
          %s673 = sand.u32 %s322, 1
          %s674 = scalar_lea.sflag [#allocation17], %s673
          %s675 = sand.u32 %s322, 1
          %s676 = smul.addr %s675, 128
          %s677 = scalar_lea.vmem [#allocation16], %s676
          %s679 = ssub.s32 2048, 2048
          %680 = vsyncadd %s674, %s679
          %s681 = smul.addr %s48, 32
          %s682 = smul.addr %s681, 64
          %s683 = scalar_lea.hbm %s10, %s682
          %s684 = sshll.u32 %s677, 4
          %s685 = int_to_ptr.vmem [resolvable:$true] %s684
          %690 = dma.hbm_to_vmem [thread:$0]  %s683, 2048, %s685, %s674, 64, 64, 4
        $region68: #{tpu_custom_call.1} parent=23 // pred_fallthru
          _
        // Predicated region
        $region69: #{tpu_custom_call.1} parent=23 // pred_check
          %p691 = pneg %p358
        $region70: #{tpu_custom_call.1} parent=23 // pred_check_branch
          %693 = sbr.rel (%p691) target = $region72
        $region71: #{tpu_custom_call.1} parent=23 // pred_region
          %p694 = scmp.lt.s32.totalorder %s48, 1
          %s695 = scalar_select %p694, %s48, 1
          %s696 = scalar_lea.vmem %s11, %s695
        $region72: #{tpu_custom_call.1} parent=23 // pred_fallthru
          _
        // Predicated region
        $region73: #{tpu_custom_call.1} parent=23 // pred_check
          %p697 = pneg %p384
        $region74: #{tpu_custom_call.1} parent=23 // pred_check_branch
          %699 = sbr.rel (%p697) target = $region76
        $region75: #{tpu_custom_call.1} parent=23 // pred_region
          %p700 = scmp.lt.s32.totalorder %s48, 1
          %s701 = scalar_select %p700, %s48, 1
          %s702 = smul.addr %s701, 4
          %s703 = scalar_lea.vmem %s12, %s702
        $region76: #{tpu_custom_call.1} parent=23 // pred_fallthru
          _
        // Predicated region
        $region77: #{tpu_custom_call.1} parent=23 // pred_check
          %p704 = pneg %p410
        $region78: #{tpu_custom_call.1} parent=23 // pred_check_branch
          %706 = sbr.rel (%p704) target = $region80
        $region79: #{tpu_custom_call.1} parent=23 // pred_region
          %p707 = scmp.lt.s32.totalorder %s48, 1
          %s708 = scalar_select %p707, %s48, 1
          %s709 = smul.addr %s708, 4
          %s710 = scalar_lea.vmem %s13, %s709
        $region80: #{tpu_custom_call.1} parent=23 // pred_fallthru
          _
      $region24: #{tpu_custom_call.1} parent=5 // pred_fallthru
        _
      %p711 = scmp.le.s32.totalorder 1, %s40
      %p712 = scmp.lt.s32.totalorder %s40, 5
      %p713 = pnand %p711, %p712
      %p714 = pneg %p713
      // Predicated region
      $region81: #{tpu_custom_call.1} parent=5 // pred_check
        _
      $region82: #{tpu_custom_call.1} parent=5 // pred_check_branch
        %716 = sbr.rel (%p713) target = $region84
      $region83: #{tpu_custom_call.1} parent=5 // pred_region
        %s717 = ssub.s32 %s40, 1
        %s718 = sand.u32 %s91, 1
        %s719 = scalar_lea.sflag [#allocation5], %s718
        %s720 = sand.u32 %s91, 1
        %s721 = smul.addr %s720, 8
        %s722 = scalar_lea.vmem [#allocation4], %s721
        // Predicated region
        $region85: #{tpu_custom_call.1} parent=83 // pred_check
          %p723 = pneg %p104
        $region86: #{tpu_custom_call.1} parent=83 // pred_check_branch
          %725 = sbr.rel (%p723) target = $region88
        $region87: #{tpu_custom_call.1} parent=83 // pred_region
          %726 = dma.done %s719, 128
        $region88: #{tpu_custom_call.1} parent=83 // pred_fallthru
          _
        %s727 = sand.u32 %s45, 1
        %s728 = scalar_lea.sflag [#allocation8], %s727
        %s729 = sand.u32 %s143, 1
        %s730 = smul.addr %s729, 16
        %s731 = scalar_lea.vmem [#allocation7], %s730
        // Predicated region
        $region89: #{tpu_custom_call.1} parent=83 // pred_check
          %p732 = pneg %p156
        $region90: #{tpu_custom_call.1} parent=83 // pred_check_branch
          %734 = sbr.rel (%p732) target = $region92
        $region91: #{tpu_custom_call.1} parent=83 // pred_region
          %735 = dma.done %s728, 256
        $region92: #{tpu_custom_call.1} parent=83 // pred_fallthru
          _
        %s736 = sand.u32 %s45, 1
        %s737 = scalar_lea.sflag [#allocation8], %s736
        %s738 = sand.u32 %s169, 1
        %s739 = smul.addr %s738, 384
        %s740 = scalar_lea.vmem [#allocation9], %s739
        // Predicated region
        $region93: #{tpu_custom_call.1} parent=83 // pred_check
          %p741 = pneg %p182
        $region94: #{tpu_custom_call.1} parent=83 // pred_check_branch
          %743 = sbr.rel (%p741) target = $region96
        $region95: #{tpu_custom_call.1} parent=83 // pred_region
          %744 = dma.done %s737, 6144
        $region96: #{tpu_custom_call.1} parent=83 // pred_fallthru
          _
        %s745 = sand.u32 %s45, 1
        %s746 = scalar_lea.sflag [#allocation11], %s745
        %s747 = sand.u32 %s221, 1
        %s748 = smul.addr %s747, 128
        %s749 = scalar_lea.vmem [#allocation10], %s748
        // Predicated region
        $region97: #{tpu_custom_call.1} parent=83 // pred_check
          %p750 = pneg %p234
        $region98: #{tpu_custom_call.1} parent=83 // pred_check_branch
          %752 = sbr.rel (%p750) target = $region100
        $region99: #{tpu_custom_call.1} parent=83 // pred_region
          %753 = dma.done %s746, 2048
        $region100: #{tpu_custom_call.1} parent=83 // pred_fallthru
          _
        %s754 = sand.u32 %s45, 1
        %s755 = scalar_lea.sflag [#allocation11], %s754
        %s756 = sand.u32 %s247, 1
        %s757 = smul.addr %s756, 2
        %s758 = scalar_lea.vmem [#allocation12], %s757
        // Predicated region
        $region101: #{tpu_custom_call.1} parent=83 // pred_check
          %p759 = pneg %p260
        $region102: #{tpu_custom_call.1} parent=83 // pred_check_branch
          %761 = sbr.rel (%p759) target = $region104
        $region103: #{tpu_custom_call.1} parent=83 // pred_region
          %762 = dma.done %s755, 32
        $region104: #{tpu_custom_call.1} parent=83 // pred_fallthru
          _
        %s763 = sand.u32 %s45, 1
        %s764 = scalar_lea.sflag [#allocation14], %s763
        %s765 = sand.u32 %s273, 1
        %s766 = smul.addr %s765, 128
        %s767 = scalar_lea.vmem [#allocation13], %s766
        // Predicated region
        $region105: #{tpu_custom_call.1} parent=83 // pred_check
          %p768 = pneg %p286
        $region106: #{tpu_custom_call.1} parent=83 // pred_check_branch
          %770 = sbr.rel (%p768) target = $region108
        $region107: #{tpu_custom_call.1} parent=83 // pred_region
          %771 = dma.done %s764, 2048
        $region108: #{tpu_custom_call.1} parent=83 // pred_fallthru
          _
        %s772 = sand.u32 %s45, 1
        %s773 = scalar_lea.sflag [#allocation14], %s772
        %s774 = sand.u32 %s299, 1
        %s775 = smul.addr %s774, 2
        %s776 = scalar_lea.vmem [#allocation15], %s775
        // Predicated region
        $region109: #{tpu_custom_call.1} parent=83 // pred_check
          %p777 = pneg %p312
        $region110: #{tpu_custom_call.1} parent=83 // pred_check_branch
          %779 = sbr.rel (%p777) target = $region112
        $region111: #{tpu_custom_call.1} parent=83 // pred_region
          %780 = dma.done %s773, 32
        $region112: #{tpu_custom_call.1} parent=83 // pred_fallthru
          _
        %s781 = sand.u32 %s325, 1
        %s782 = scalar_lea.sflag [#allocation17], %s781
        %s783 = sand.u32 %s325, 1
        %s784 = smul.addr %s783, 128
        %s785 = scalar_lea.vmem [#allocation16], %s784
        // Predicated region
        $region113: #{tpu_custom_call.1} parent=83 // pred_check
          %p786 = pneg %p338
        $region114: #{tpu_custom_call.1} parent=83 // pred_check_branch
          %788 = sbr.rel (%p786) target = $region116
        $region115: #{tpu_custom_call.1} parent=83 // pred_region
          %789 = dma.done %s782, 2048
        $region116: #{tpu_custom_call.1} parent=83 // pred_fallthru
          _
        %p790 = scmp.lt.s32.totalorder %s49, 1
        %s791 = scalar_select %p790, %s49, 1
        %s792 = smul.addr %s791, 8
        %s793 = scalar_lea.vmem %s0, %s792
        %p794 = pneg %p78
        %p795 = pneg %p75
        %s796 = sand.u32 %s91, 1
        %s797 = scalar_lea.sflag [#allocation5], %s796
        %s798 = sand.u32 %s91, 1
        %s799 = smul.addr %s798, 8
        %s800 = scalar_lea.vmem [#allocation4], %s799
        %p801 = pneg %p104
        %p802 = pneg %p101
        %p803 = scmp.lt.s32.totalorder %s49, 1
        %s804 = scalar_select %p803, %s49, 1
        %s805 = smul.addr %s804, 2
        %s806 = smul.addr %s805, 8
        %s807 = scalar_lea.vmem %s2, %s806
        %p808 = pneg %p130
        %p809 = pneg %p127
        %s810 = sand.u32 %s45, 1
        %s811 = scalar_lea.sflag [#allocation8], %s810
        %s812 = sand.u32 %s143, 1
        %s813 = smul.addr %s812, 16
        %s814 = scalar_lea.vmem [#allocation7], %s813
        %p815 = pneg %p156
        %p816 = pneg %p153
        %s817 = sand.u32 %s45, 1
        %s818 = scalar_lea.sflag [#allocation8], %s817
        %s819 = sand.u32 %s169, 1
        %s820 = smul.addr %s819, 384
        %s821 = scalar_lea.vmem [#allocation9], %s820
        %p822 = pneg %p182
        %p823 = pneg %p179
        %p824 = scmp.lt.s32.totalorder %s50, 1
        %s825 = scalar_select %p824, %s50, 1
        %s826 = smul.addr %s825, 8
        %s827 = scalar_lea.vmem %s5, %s826
        %p828 = pneg %p208
        %p829 = pneg %p205
        %s830 = sand.u32 %s45, 1
        %s831 = scalar_lea.sflag [#allocation11], %s830
        %s832 = sand.u32 %s221, 1
        %s833 = smul.addr %s832, 128
        %s834 = scalar_lea.vmem [#allocation10], %s833
        %p835 = pneg %p234
        %p836 = pneg %p231
        %s837 = sand.u32 %s45, 1
        %s838 = scalar_lea.sflag [#allocation11], %s837
        %s839 = sand.u32 %s247, 1
        %s840 = smul.addr %s839, 2
        %s841 = scalar_lea.vmem [#allocation12], %s840
        %p842 = pneg %p260
        %p843 = pneg %p257
        %s844 = sand.u32 %s45, 1
        %s845 = scalar_lea.sflag [#allocation14], %s844
        %s846 = sand.u32 %s273, 1
        %s847 = smul.addr %s846, 128
        %s848 = scalar_lea.vmem [#allocation13], %s847
        %p849 = pneg %p286
        %p850 = pneg %p283
        %s851 = sand.u32 %s45, 1
        %s852 = scalar_lea.sflag [#allocation14], %s851
        %s853 = sand.u32 %s299, 1
        %s854 = smul.addr %s853, 2
        %s855 = scalar_lea.vmem [#allocation15], %s854
        %p856 = pneg %p312
        %p857 = pneg %p309
        %s858 = sand.u32 %s325, 1
        %s859 = scalar_lea.sflag [#allocation17], %s858
        %s860 = sand.u32 %s325, 1
        %s861 = smul.addr %s860, 128
        %s862 = scalar_lea.vmem [#allocation16], %s861
        %p863 = pneg %p338
        %p864 = pneg %p335
        %p865 = scmp.lt.s32.totalorder %s50, 1
        %s866 = scalar_select %p865, %s50, 1
        %s867 = scalar_lea.vmem %s11, %s866
        %p868 = pneg %p364
        %p869 = pneg %p361
        %p870 = scmp.lt.s32.totalorder %s50, 1
        %s871 = scalar_select %p870, %s50, 1
        %s872 = smul.addr %s871, 4
        %s873 = scalar_lea.vmem %s12, %s872
        %p874 = pneg %p390
        %p875 = pneg %p387
        %p876 = scmp.lt.s32.totalorder %s50, 1
        %s877 = scalar_select %p876, %s50, 1
        %s878 = smul.addr %s877, 4
        %s879 = scalar_lea.vmem %s13, %s878
        %p880 = pneg %p416
        %p881 = pneg %p413
        %p882 = pneg %p437
        %p883 = pneg %p434
        %p884 = pneg %p458
        %p885 = pneg %p455
        %p886 = pneg %p484
        %p887 = pneg %p481
        %s888 = sand.u32 %s471, 1
        %s889 = scalar_lea.sflag [#allocation6], %s888
        %s890 = sand.u32 %s471, 1
        %s891 = smul.addr %s890, 8
        %s892 = scalar_lea.vmem [#allocation18], %s891
        %p893 = scmp.lt.s32.totalorder %s49, 1
        %s894 = scalar_select %p893, %s49, 1
        %s895 = smul.addr %s894, 8
        %s896 = scalar_lea.vmem %s0, %s895
        %p897 = scmp.lt.s32.totalorder %s49, 1
        %s898 = scalar_select %p897, %s49, 1
        %s899 = smul.addr %s898, 2
        %s900 = smul.addr %s899, 8
        %s901 = scalar_lea.vmem %s2, %s900
        %p902 = scmp.lt.s32.totalorder %s50, 1
        %s903 = scalar_select %p902, %s50, 1
        %s904 = smul.addr %s903, 8
        %s905 = scalar_lea.vmem %s5, %s904
        %p906 = scmp.lt.s32.totalorder %s50, 1
        %s907 = scalar_select %p906, %s50, 1
        %s908 = scalar_lea.vmem %s11, %s907
        %p909 = scmp.lt.s32.totalorder %s50, 1
        %s910 = scalar_select %p909, %s50, 1
        %s911 = smul.addr %s910, 4
        %s912 = scalar_lea.vmem %s12, %s911
        %p913 = scmp.lt.s32.totalorder %s50, 1
        %s914 = scalar_select %p913, %s50, 1
        %s915 = smul.addr %s914, 4
        %s916 = scalar_lea.vmem %s13, %s915
        %p918 = scmp.eq.s32.totalorder %s50, 0
        // Predicated region
        $region117: #{tpu_custom_call.1} parent=83 // pred_check
          %p919 = pneg %p918
        $region118: #{tpu_custom_call.1} parent=83 // pred_check_branch
          %921 = sbr.rel (%p919) target = $region120
        $region119: #{tpu_custom_call.1} parent=83 // pred_region
          %v922 = vld [vmem:[%s896] sm:$0xff]
          %923 = vst [vmem:[#allocation2] sm:$0xff] %v922
        $region120: #{tpu_custom_call.1} parent=83 // pred_fallthru
          _
        %v924 = vld [vmem:[%s722] sm:$0xff]
        %v925 = vld [vmem:[%s905] sm:$0x3f]
        %v926 = vld [vmem:[%s758] sm:$0x3]
        %v927 = vld [vmem:[%s912] sm:$0x7]
        %v928 = vld [vmem:[%s916] sm:$0x7]
        %v929 = vld [vmem:[#allocation2] sm:$0xff]
        %v930 = vadd.f32 %v929, %v924
        %v931 = vpack.c.bf16 %v930, %v930
        %v932 = vpack.c.bf16 %v929, %v929
        %v933 = vld [vmem:[%s740] sm:$0xf]
        %v934 = vld [vmem:[%s740 + $0x4] sm:$0xf]
        %v935 = vld [vmem:[%s740 + $0x8] sm:$0xf]
        %v936 = vld [vmem:[%s740 + $0xc] sm:$0xf]
        %v937 = vld [vmem:[%s740 + $0x10] sm:$0xf]
        %v938 = vld [vmem:[%s740 + $0x14] sm:$0xf]
        %v939 = vld [vmem:[%s740 + $0x18] sm:$0xf]
        %v940 = vld [vmem:[%s740 + $0x1c] sm:$0xf]
        %v941 = vld [vmem:[%s740 + $0x20] sm:$0xf]
        %v942 = vld [vmem:[%s740 + $0x24] sm:$0xf]
        %v943 = vld [vmem:[%s740 + $0x28] sm:$0xf]
        %v944 = vld [vmem:[%s740 + $0x2c] sm:$0xf]
        %v945 = vld [vmem:[%s740 + $0x30] sm:$0xf]
        %v946 = vld [vmem:[%s740 + $0x34] sm:$0xf]
        %v947 = vld [vmem:[%s740 + $0x38] sm:$0xf]
        %v948 = vld [vmem:[%s740 + $0x3c] sm:$0xf]
        %v949 = vlaneseq
        %v950 = vshrl.u32 %v949, 7
        %v951 = vsub.s32 0, %v950
        %v952 = vrot.slane %v925, %v951
        %v969 = vunpack.c.l.b16 %v933
        %v970 = vunpack.c.l.b16 %v934
        %v971 = vunpack.c.l.b16 %v935
        %v972 = vunpack.c.l.b16 %v936
        %v973 = vunpack.c.l.b16 %v937
        %v974 = vunpack.c.l.b16 %v938
        %v975 = vunpack.c.l.b16 %v939
        %v976 = vunpack.c.l.b16 %v940
        %v977 = vunpack.c.l.b16 %v941
        %v978 = vunpack.c.l.b16 %v942
        %v979 = vunpack.c.l.b16 %v943
        %v980 = vunpack.c.l.b16 %v944
        %v981 = vunpack.c.l.b16 %v945
        %v982 = vunpack.c.l.b16 %v946
        %v983 = vunpack.c.l.b16 %v947
        %v984 = vunpack.c.l.b16 %v948
        %v985 = vpack.c.b16 %v970, %v969
        %v986 = vpack.c.b16 %v972, %v971
        %v987 = vpack.c.b16 %v974, %v973
        %v988 = vpack.c.b16 %v976, %v975
        %v989 = vpack.c.b16 %v978, %v977
        %v990 = vpack.c.b16 %v980, %v979
        %v991 = vpack.c.b16 %v982, %v981
        %v992 = vpack.c.b16 %v984, %v983
        %1001 = vmatprep.subr.bf16.mxu0 0
        %1002 = vmatpush1.bf16.msra.mxu0 %v992
        %1003 = vmatprep.subr.bf16.mxu0 0
        %1004 = vmatpush1.bf16.msra.mxu0 %v991
        %1005 = vmatprep.subr.bf16.mxu0 0
        %1006 = vmatpush1.bf16.msra.mxu0 %v990
        %1007 = vmatprep.subr.bf16.mxu0 0
        %1008 = vmatpush1.bf16.msra.mxu0 %v989
        %1009 = vmatprep.subr.bf16.mxu0 0
        %1010 = vmatpush1.bf16.msra.mxu0 %v988
        %1011 = vmatprep.subr.bf16.mxu0 0
        %1012 = vmatpush1.bf16.msra.mxu0 %v987
        %1013 = vmatprep.subr.bf16.mxu0 0
        %1014 = vmatpush1.bf16.msra.mxu0 %v986
        %1015 = vmatprep.subr.bf16.mxu0 0
        %1016 = vmatpush1.bf16.msra.mxu0 %v985
        %1017 = vmatprep.subr.bf16.mxu0 0
        %1018 = vmatpush2.bf16.msra.mxu0 0
        %1019 = vmatprep.subr.bf16.mxu0 0
        %1020 = vmatpush2.bf16.msra.mxu0 0
        %1021 = vmatprep.subr.bf16.mxu0 0
        %1022 = vmatpush2.bf16.msra.mxu0 0
        %1023 = vmatprep.subr.bf16.mxu0 0
        %1024 = vmatpush2.bf16.msra.mxu0 0
        %1025 = vmatprep.subr.bf16.mxu0 0
        %1026 = vmatpush2.bf16.msra.mxu0 0
        %1027 = vmatprep.subr.bf16.mxu0 0
        %1028 = vmatpush2.bf16.msra.mxu0 0
        %1029 = vmatprep.subr.bf16.mxu0 0
        %1030 = vmatpush2.bf16.msra.mxu0 0
        %1031 = vmatprep.subr.bf16.mxu0 0
        %1032 = vmatpush2.bf16.msra.mxu0 0
        %1033 = vmatprep.mubr.bf16.mxu0 0
        %1034 = vmatmul.mubr.bf16.gmra.mxu0 %v931
        %v1035 = vpop.f32.mrf.mxu0
        %v1036 = vadd.f32 %v952, %v1035
        %v1037 = vpop.f32.mrf.mxu0
        %v1038 = vpop.f32.mrf.mxu0
        %v1039 = vpop.f32.mrf.mxu0
        %1040 = vdwg.mxu0
        %s1041 = scalar_lea.vmem %s740, 64 [#allocation9]
        %v1042 = vld [vmem:[%s1041] sm:$0xf]
        %v1043 = vld [vmem:[%s1041 + $0x4] sm:$0xf]
        %v1044 = vld [vmem:[%s1041 + $0x8] sm:$0xf]
        %v1045 = vld [vmem:[%s1041 + $0xc] sm:$0xf]
        %v1046 = vld [vmem:[%s1041 + $0x10] sm:$0xf]
        %v1047 = vld [vmem:[%s1041 + $0x14] sm:$0xf]
        %v1048 = vld [vmem:[%s1041 + $0x18] sm:$0xf]
        %v1049 = vld [vmem:[%s1041 + $0x1c] sm:$0xf]
        %v1050 = vld [vmem:[%s1041 + $0x20] sm:$0xf]
        %v1051 = vld [vmem:[%s1041 + $0x24] sm:$0xf]
        %v1052 = vld [vmem:[%s1041 + $0x28] sm:$0xf]
        %v1053 = vld [vmem:[%s1041 + $0x2c] sm:$0xf]
        %v1054 = vld [vmem:[%s1041 + $0x30] sm:$0xf]
        %v1055 = vld [vmem:[%s1041 + $0x34] sm:$0xf]
        %v1056 = vld [vmem:[%s1041 + $0x38] sm:$0xf]
        %v1057 = vld [vmem:[%s1041 + $0x3c] sm:$0xf]
        %v1058 = vlaneseq
        %v1059 = vshrl.u32 %v1058, 7
        %v1060 = vsub.s32 1, %v1059
        %v1061 = vrot.slane %v925, %v1060
        %v1078 = vunpack.c.l.b16 %v1042
        %v1079 = vunpack.c.l.b16 %v1043
        %v1080 = vunpack.c.l.b16 %v1044
        %v1081 = vunpack.c.l.b16 %v1045
        %v1082 = vunpack.c.l.b16 %v1046
        %v1083 = vunpack.c.l.b16 %v1047
        %v1084 = vunpack.c.l.b16 %v1048
        %v1085 = vunpack.c.l.b16 %v1049
        %v1086 = vunpack.c.l.b16 %v1050
        %v1087 = vunpack.c.l.b16 %v1051
        %v1088 = vunpack.c.l.b16 %v1052
        %v1089 = vunpack.c.l.b16 %v1053
        %v1090 = vunpack.c.l.b16 %v1054
        %v1091 = vunpack.c.l.b16 %v1055
        %v1092 = vunpack.c.l.b16 %v1056
        %v1093 = vunpack.c.l.b16 %v1057
        %v1094 = vpack.c.b16 %v1079, %v1078
        %v1095 = vpack.c.b16 %v1081, %v1080
        %v1096 = vpack.c.b16 %v1083, %v1082
        %v1097 = vpack.c.b16 %v1085, %v1084
        %v1098 = vpack.c.b16 %v1087, %v1086
        %v1099 = vpack.c.b16 %v1089, %v1088
        %v1100 = vpack.c.b16 %v1091, %v1090
        %v1101 = vpack.c.b16 %v1093, %v1092
        %1110 = vmatprep.subr.bf16.mxu0 0
        %1111 = vmatpush1.bf16.msra.mxu0 %v1101
        %1112 = vmatprep.subr.bf16.mxu0 0
        %1113 = vmatpush1.bf16.msra.mxu0 %v1100
        %1114 = vmatprep.subr.bf16.mxu0 0
        %1115 = vmatpush1.bf16.msra.mxu0 %v1099
        %1116 = vmatprep.subr.bf16.mxu0 0
        %1117 = vmatpush1.bf16.msra.mxu0 %v1098
        %1118 = vmatprep.subr.bf16.mxu0 0
        %1119 = vmatpush1.bf16.msra.mxu0 %v1097
        %1120 = vmatprep.subr.bf16.mxu0 0
        %1121 = vmatpush1.bf16.msra.mxu0 %v1096
        %1122 = vmatprep.subr.bf16.mxu0 0
        %1123 = vmatpush1.bf16.msra.mxu0 %v1095
        %1124 = vmatprep.subr.bf16.mxu0 0
        %1125 = vmatpush1.bf16.msra.mxu0 %v1094
        %1126 = vmatprep.subr.bf16.mxu0 0
        %1127 = vmatpush2.bf16.msra.mxu0 0
        %1128 = vmatprep.subr.bf16.mxu0 0
        %1129 = vmatpush2.bf16.msra.mxu0 0
        %1130 = vmatprep.subr.bf16.mxu0 0
        %1131 = vmatpush2.bf16.msra.mxu0 0
        %1132 = vmatprep.subr.bf16.mxu0 0
        %1133 = vmatpush2.bf16.msra.mxu0 0
        %1134 = vmatprep.subr.bf16.mxu0 0
        %1135 = vmatpush2.bf16.msra.mxu0 0
        %1136 = vmatprep.subr.bf16.mxu0 0
        %1137 = vmatpush2.bf16.msra.mxu0 0
        %1138 = vmatprep.subr.bf16.mxu0 0
        %1139 = vmatpush2.bf16.msra.mxu0 0
        %1140 = vmatprep.subr.bf16.mxu0 0
        %1141 = vmatpush2.bf16.msra.mxu0 0
        %1142 = vmatprep.mubr.bf16.mxu0 0
        %1143 = vmatmul.mubr.bf16.gmra.mxu0 %v931
        %v1144 = vpop.f32.mrf.mxu0
        %v1145 = vadd.f32 %v1061, %v1144
        %v1146 = vpop.f32.mrf.mxu0
        %v1147 = vpop.f32.mrf.mxu0
        %v1148 = vpop.f32.mrf.mxu0
        %1149 = vdwg.mxu0
        %s1150 = scalar_lea.vmem %s740, 128 [#allocation9]
        %v1151 = vld [vmem:[%s1150] sm:$0xf]
        %v1152 = vld [vmem:[%s1150 + $0x4] sm:$0xf]
        %v1153 = vld [vmem:[%s1150 + $0x8] sm:$0xf]
        %v1154 = vld [vmem:[%s1150 + $0xc] sm:$0xf]
        %v1155 = vld [vmem:[%s1150 + $0x10] sm:$0xf]
        %v1156 = vld [vmem:[%s1150 + $0x14] sm:$0xf]
        %v1157 = vld [vmem:[%s1150 + $0x18] sm:$0xf]
        %v1158 = vld [vmem:[%s1150 + $0x1c] sm:$0xf]
        %v1159 = vld [vmem:[%s1150 + $0x20] sm:$0xf]
        %v1160 = vld [vmem:[%s1150 + $0x24] sm:$0xf]
        %v1161 = vld [vmem:[%s1150 + $0x28] sm:$0xf]
        %v1162 = vld [vmem:[%s1150 + $0x2c] sm:$0xf]
        %v1163 = vld [vmem:[%s1150 + $0x30] sm:$0xf]
        %v1164 = vld [vmem:[%s1150 + $0x34] sm:$0xf]
        %v1165 = vld [vmem:[%s1150 + $0x38] sm:$0xf]
        %v1166 = vld [vmem:[%s1150 + $0x3c] sm:$0xf]
        %v1167 = vlaneseq
        %v1168 = vshrl.u32 %v1167, 7
        %v1169 = vsub.s32 2, %v1168
        %v1170 = vrot.slane %v925, %v1169
        %v1187 = vunpack.c.l.b16 %v1151
        %v1188 = vunpack.c.l.b16 %v1152
        %v1189 = vunpack.c.l.b16 %v1153
        %v1190 = vunpack.c.l.b16 %v1154
        %v1191 = vunpack.c.l.b16 %v1155
        %v1192 = vunpack.c.l.b16 %v1156
        %v1193 = vunpack.c.l.b16 %v1157
        %v1194 = vunpack.c.l.b16 %v1158
        %v1195 = vunpack.c.l.b16 %v1159
        %v1196 = vunpack.c.l.b16 %v1160
        %v1197 = vunpack.c.l.b16 %v1161
        %v1198 = vunpack.c.l.b16 %v1162
        %v1199 = vunpack.c.l.b16 %v1163
        %v1200 = vunpack.c.l.b16 %v1164
        %v1201 = vunpack.c.l.b16 %v1165
        %v1202 = vunpack.c.l.b16 %v1166
        %v1203 = vpack.c.b16 %v1188, %v1187
        %v1204 = vpack.c.b16 %v1190, %v1189
        %v1205 = vpack.c.b16 %v1192, %v1191
        %v1206 = vpack.c.b16 %v1194, %v1193
        %v1207 = vpack.c.b16 %v1196, %v1195
        %v1208 = vpack.c.b16 %v1198, %v1197
        %v1209 = vpack.c.b16 %v1200, %v1199
        %v1210 = vpack.c.b16 %v1202, %v1201
        %1219 = vmatprep.subr.bf16.mxu0 0
        %1220 = vmatpush1.bf16.msra.mxu0 %v1210
        %1221 = vmatprep.subr.bf16.mxu0 0
        %1222 = vmatpush1.bf16.msra.mxu0 %v1209
        %1223 = vmatprep.subr.bf16.mxu0 0
        %1224 = vmatpush1.bf16.msra.mxu0 %v1208
        %1225 = vmatprep.subr.bf16.mxu0 0
        %1226 = vmatpush1.bf16.msra.mxu0 %v1207
        %1227 = vmatprep.subr.bf16.mxu0 0
        %1228 = vmatpush1.bf16.msra.mxu0 %v1206
        %1229 = vmatprep.subr.bf16.mxu0 0
        %1230 = vmatpush1.bf16.msra.mxu0 %v1205
        %1231 = vmatprep.subr.bf16.mxu0 0
        %1232 = vmatpush1.bf16.msra.mxu0 %v1204
        %1233 = vmatprep.subr.bf16.mxu0 0
        %1234 = vmatpush1.bf16.msra.mxu0 %v1203
        %1235 = vmatprep.subr.bf16.mxu0 0
        %1236 = vmatpush2.bf16.msra.mxu0 0
        %1237 = vmatprep.subr.bf16.mxu0 0
        %1238 = vmatpush2.bf16.msra.mxu0 0
        %1239 = vmatprep.subr.bf16.mxu0 0
        %1240 = vmatpush2.bf16.msra.mxu0 0
        %1241 = vmatprep.subr.bf16.mxu0 0
        %1242 = vmatpush2.bf16.msra.mxu0 0
        %1243 = vmatprep.subr.bf16.mxu0 0
        %1244 = vmatpush2.bf16.msra.mxu0 0
        %1245 = vmatprep.subr.bf16.mxu0 0
        %1246 = vmatpush2.bf16.msra.mxu0 0
        %1247 = vmatprep.subr.bf16.mxu0 0
        %1248 = vmatpush2.bf16.msra.mxu0 0
        %1249 = vmatprep.subr.bf16.mxu0 0
        %1250 = vmatpush2.bf16.msra.mxu0 0
        %1251 = vmatprep.mubr.bf16.mxu0 0
        %1252 = vmatmul.mubr.bf16.gmra.mxu0 %v932
        %v1253 = vpop.f32.mrf.mxu0
        %v1254 = vadd.f32 %v1170, %v1253
        %v1255 = vpop.f32.mrf.mxu0
        %v1256 = vpop.f32.mrf.mxu0
        %v1257 = vpop.f32.mrf.mxu0
        %1258 = vdwg.mxu0
        %v1259 = vpack.c.bf16 %v1036, %v1036
        %v1260 = vpack.c.bf16 %v1145, %v1145
        %v1261 = vpack.c.bf16 %v1254, %v1254
        %vm1262 = vcmask 261120
        %v1264 = vsel %vm1262, %v1259, 0
        %v1267 = vsel %vm1262, %v1260, 0
        %1269 = vmatprep.subr.bf16.mxu0 0
        %1270 = vmatpush1.bf16.xpose.msra.mxu0 0
        %1271 = vmatprep.subr.bf16.mxu0 0
        %1272 = vmatpush1.bf16.xpose.msra.mxu0 0
        %1273 = vmatprep.subr.bf16.mxu0 0
        %1274 = vmatpush1.bf16.xpose.msra.mxu0 0
        %1275 = vmatprep.subr.bf16.mxu0 0
        %1276 = vmatpush1.bf16.xpose.msra.mxu0 0
        %1277 = vmatprep.subr.bf16.mxu0 0
        %1278 = vmatpush1.bf16.xpose.msra.mxu0 0
        %1279 = vmatprep.subr.bf16.mxu0 0
        %1280 = vmatpush1.bf16.xpose.msra.mxu0 0
        %1281 = vmatprep.subr.bf16.mxu0 0
        %1282 = vmatpush1.bf16.xpose.msra.mxu0 0
        %1283 = vmatprep.subr.bf16.mxu0 0
        %1284 = vmatpush1.bf16.xpose.msra.mxu0 %v1267
        %1285 = vmatprep.subr.bf16.mxu0 0
        %1286 = vmatpush2.bf16.xpose.msra.mxu0 0
        %1287 = vmatprep.subr.bf16.mxu0 0
        %1288 = vmatpush2.bf16.xpose.msra.mxu0 0
        %1289 = vmatprep.subr.bf16.mxu0 0
        %1290 = vmatpush2.bf16.xpose.msra.mxu0 0
        %1291 = vmatprep.subr.bf16.mxu0 0
        %1292 = vmatpush2.bf16.xpose.msra.mxu0 0
        %1293 = vmatprep.subr.bf16.mxu0 0
        %1294 = vmatpush2.bf16.xpose.msra.mxu0 0
        %1295 = vmatprep.subr.bf16.mxu0 0
        %1296 = vmatpush2.bf16.xpose.msra.mxu0 0
        %1297 = vmatprep.subr.bf16.mxu0 0
        %1298 = vmatpush2.bf16.xpose.msra.mxu0 0
        %1299 = vmatprep.subr.bf16.mxu0 0
        %1300 = vmatpush2.bf16.xpose.msra.mxu0 0
        %1301 = vmatprep.mubr.bf16.mxu0 0
        %1302 = vmatmul.mubr.bf16.gmra.mxu0 %v1264
        %v1303 = vpop.f32.mrf.mxu0
        %v1304 = vadd.f32 0.0, %v1303
        %v1305 = vpop.f32.mrf.mxu0
        %v1306 = vpop.f32.mrf.mxu0
        %v1307 = vpop.f32.mrf.mxu0
        %1308 = vdwg.mxu0
        %vm1309 = vcmask 64512
        %v1310 = vsel %vm1309, %v1304, -inf
        %1311 = vmax.xlane.f32.xlu0 %v1310
        %v1312 = vpop.xlane.xlu0 %1311
        %v1313 = vsub.f32 %v1304, %v1312
        %v1314 = vmul.f32 %v1313, 1.442695
        %v1315 = vpow.pop %v1314
        %v1316 = vsel %vm1309, %v1315, 0.0
        %1317 = vadd.xlane.f32.xlu0 %v1316
        %v1318 = vpop.xlane.xlu0 %1317
        %v1319 = vrcp.pop %v1318
        %v1320 = vmul.f32 %v1315, %v1319
        %v1321 = vpack.c.bf16 %v1320, %v1320
        %v1323 = vsel %vm1309, %v1321, 0
        %vm1325 = vcmask 1043456
        %v1327 = vsel %vm1325, %v1261, 0
        %1329 = vmatprep.subr.bf16.mxu0 0
        %1330 = vmatpush1.bf16.msra.mxu0 0
        %1331 = vmatprep.subr.bf16.mxu0 0
        %1332 = vmatpush1.bf16.msra.mxu0 0
        %1333 = vmatprep.subr.bf16.mxu0 0
        %1334 = vmatpush1.bf16.msra.mxu0 0
        %1335 = vmatprep.subr.bf16.mxu0 0
        %1336 = vmatpush1.bf16.msra.mxu0 0
        %1337 = vmatprep.subr.bf16.mxu0 0
        %1338 = vmatpush1.bf16.msra.mxu0 0
        %1339 = vmatprep.subr.bf16.mxu0 0
        %1340 = vmatpush1.bf16.msra.mxu0 0
        %1341 = vmatprep.subr.bf16.mxu0 0
        %1342 = vmatpush1.bf16.msra.mxu0 0
        %1343 = vmatprep.subr.bf16.mxu0 0
        %1344 = vmatpush1.bf16.msra.mxu0 %v1327
        %1345 = vmatprep.subr.bf16.mxu0 0
        %1346 = vmatpush2.bf16.msra.mxu0 0
        %1347 = vmatprep.subr.bf16.mxu0 0
        %1348 = vmatpush2.bf16.msra.mxu0 0
        %1349 = vmatprep.subr.bf16.mxu0 0
        %1350 = vmatpush2.bf16.msra.mxu0 0
        %1351 = vmatprep.subr.bf16.mxu0 0
        %1352 = vmatpush2.bf16.msra.mxu0 0
        %1353 = vmatprep.subr.bf16.mxu0 0
        %1354 = vmatpush2.bf16.msra.mxu0 0
        %1355 = vmatprep.subr.bf16.mxu0 0
        %1356 = vmatpush2.bf16.msra.mxu0 0
        %1357 = vmatprep.subr.bf16.mxu0 0
        %1358 = vmatpush2.bf16.msra.mxu0 0
        %1359 = vmatprep.subr.bf16.mxu0 0
        %1360 = vmatpush2.bf16.msra.mxu0 0
        %1361 = vmatprep.mubr.bf16.mxu0 0
        %1362 = vmatmul.mubr.bf16.gmra.mxu0 %v1323
        %v1363 = vpop.f32.mrf.mxu0
        %v1364 = vadd.f32 0.0, %v1363
        %v1365 = vpop.f32.mrf.mxu0
        %v1366 = vpop.f32.mrf.mxu0
        %v1367 = vpop.f32.mrf.mxu0
        %1368 = vdwg.mxu0
        %1369 = vst.msk [vmem:[#allocation3] sm:$0xff] %vm1262, %v1364
        %1371 = vrot.lane.b32.xlu0 %v1259, 96
        %v1372 = vpop.permute.xlu0 %1371
        %1374 = vrot.lane.b32.xlu0 %v1260, 96
        %v1375 = vpop.permute.xlu0 %1374
        %v1377 = vsel %vm1262, %v1372, 0
        %v1380 = vsel %vm1262, %v1375, 0
        %1382 = vmatprep.subr.bf16.mxu0 0
        %1383 = vmatpush1.bf16.xpose.msra.mxu0 0
        %1384 = vmatprep.subr.bf16.mxu0 0
        %1385 = vmatpush1.bf16.xpose.msra.mxu0 0
        %1386 = vmatprep.subr.bf16.mxu0 0
        %1387 = vmatpush1.bf16.xpose.msra.mxu0 0
        %1388 = vmatprep.subr.bf16.mxu0 0
        %1389 = vmatpush1.bf16.xpose.msra.mxu0 0
        %1390 = vmatprep.subr.bf16.mxu0 0
        %1391 = vmatpush1.bf16.xpose.msra.mxu0 0
        %1392 = vmatprep.subr.bf16.mxu0 0
        %1393 = vmatpush1.bf16.xpose.msra.mxu0 0
        %1394 = vmatprep.subr.bf16.mxu0 0
        %1395 = vmatpush1.bf16.xpose.msra.mxu0 0
        %1396 = vmatprep.subr.bf16.mxu0 0
        %1397 = vmatpush1.bf16.xpose.msra.mxu0 %v1380
        %1398 = vmatprep.subr.bf16.mxu0 0
        %1399 = vmatpush2.bf16.xpose.msra.mxu0 0
        %1400 = vmatprep.subr.bf16.mxu0 0
        %1401 = vmatpush2.bf16.xpose.msra.mxu0 0
        %1402 = vmatprep.subr.bf16.mxu0 0
        %1403 = vmatpush2.bf16.xpose.msra.mxu0 0
        %1404 = vmatprep.subr.bf16.mxu0 0
        %1405 = vmatpush2.bf16.xpose.msra.mxu0 0
        %1406 = vmatprep.subr.bf16.mxu0 0
        %1407 = vmatpush2.bf16.xpose.msra.mxu0 0
        %1408 = vmatprep.subr.bf16.mxu0 0
        %1409 = vmatpush2.bf16.xpose.msra.mxu0 0
        %1410 = vmatprep.subr.bf16.mxu0 0
        %1411 = vmatpush2.bf16.xpose.msra.mxu0 0
        %1412 = vmatprep.subr.bf16.mxu0 0
        %1413 = vmatpush2.bf16.xpose.msra.mxu0 0
        %1414 = vmatprep.mubr.bf16.mxu0 0
        %1415 = vmatmul.mubr.bf16.gmra.mxu0 %v1377
        %v1416 = vpop.f32.mrf.mxu0
        %v1417 = vadd.f32 0.0, %v1416
        %v1418 = vpop.f32.mrf.mxu0
        %v1419 = vpop.f32.mrf.mxu0
        %v1420 = vpop.f32.mrf.mxu0
        %1421 = vdwg.mxu0
        %v1422 = vsel %vm1309, %v1417, -inf
        %1423 = vmax.xlane.f32.xlu0 %v1422
        %v1424 = vpop.xlane.xlu0 %1423
        %v1425 = vsub.f32 %v1417, %v1424
        %v1426 = vmul.f32 %v1425, 1.442695
        %v1427 = vpow.pop %v1426
        %v1428 = vsel %vm1309, %v1427, 0.0
        %1429 = vadd.xlane.f32.xlu0 %v1428
        %v1430 = vpop.xlane.xlu0 %1429
        %v1431 = vrcp.pop %v1430
        %v1432 = vmul.f32 %v1427, %v1431
        %v1433 = vpack.c.bf16 %v1432, %v1432
        %1435 = vrot.lane.b32.xlu0 %v1261, 96
        %v1436 = vpop.permute.xlu0 %1435
        %v1438 = vsel %vm1309, %v1433, 0
        %v1441 = vsel %vm1325, %v1436, 0
        %1443 = vmatprep.subr.bf16.mxu0 0
        %1444 = vmatpush1.bf16.msra.mxu0 0
        %1445 = vmatprep.subr.bf16.mxu0 0
        %1446 = vmatpush1.bf16.msra.mxu0 0
        %1447 = vmatprep.subr.bf16.mxu0 0
        %1448 = vmatpush1.bf16.msra.mxu0 0
        %1449 = vmatprep.subr.bf16.mxu0 0
        %1450 = vmatpush1.bf16.msra.mxu0 0
        %1451 = vmatprep.subr.bf16.mxu0 0
        %1452 = vmatpush1.bf16.msra.mxu0 0
        %1453 = vmatprep.subr.bf16.mxu0 0
        %1454 = vmatpush1.bf16.msra.mxu0 0
        %1455 = vmatprep.subr.bf16.mxu0 0
        %1456 = vmatpush1.bf16.msra.mxu0 0
        %1457 = vmatprep.subr.bf16.mxu0 0
        %1458 = vmatpush1.bf16.msra.mxu0 %v1441
        %1459 = vmatprep.subr.bf16.mxu0 0
        %1460 = vmatpush2.bf16.msra.mxu0 0
        %1461 = vmatprep.subr.bf16.mxu0 0
        %1462 = vmatpush2.bf16.msra.mxu0 0
        %1463 = vmatprep.subr.bf16.mxu0 0
        %1464 = vmatpush2.bf16.msra.mxu0 0
        %1465 = vmatprep.subr.bf16.mxu0 0
        %1466 = vmatpush2.bf16.msra.mxu0 0
        %1467 = vmatprep.subr.bf16.mxu0 0
        %1468 = vmatpush2.bf16.msra.mxu0 0
        %1469 = vmatprep.subr.bf16.mxu0 0
        %1470 = vmatpush2.bf16.msra.mxu0 0
        %1471 = vmatprep.subr.bf16.mxu0 0
        %1472 = vmatpush2.bf16.msra.mxu0 0
        %1473 = vmatprep.subr.bf16.mxu0 0
        %1474 = vmatpush2.bf16.msra.mxu0 0
        %1475 = vmatprep.mubr.bf16.mxu0 0
        %1476 = vmatmul.mubr.bf16.gmra.mxu0 %v1438
        %v1477 = vpop.f32.mrf.mxu0
        %v1478 = vadd.f32 0.0, %v1477
        %v1479 = vpop.f32.mrf.mxu0
        %v1480 = vpop.f32.mrf.mxu0
        %v1481 = vpop.f32.mrf.mxu0
        %1482 = vdwg.mxu0
        %1484 = vrot.lane.b32.xlu0 %v1478, 32
        %v1485 = vpop.permute.xlu0 %1484
        %vm1487 = vcmask 523520
        %1488 = vst.msk [vmem:[#allocation3] sm:$0xff] %vm1487, %v1485
        %1489 = vrot.lane.b32.xlu0 %v1259, 64
        %v1490 = vpop.permute.xlu0 %1489
        %1491 = vrot.lane.b32.xlu0 %v1260, 64
        %v1492 = vpop.permute.xlu0 %1491
        %v1494 = vsel %vm1262, %v1490, 0
        %v1497 = vsel %vm1262, %v1492, 0
        %1499 = vmatprep.subr.bf16.mxu0 0
        %1500 = vmatpush1.bf16.xpose.msra.mxu0 0
        %1501 = vmatprep.subr.bf16.mxu0 0
        %1502 = vmatpush1.bf16.xpose.msra.mxu0 0
        %1503 = vmatprep.subr.bf16.mxu0 0
        %1504 = vmatpush1.bf16.xpose.msra.mxu0 0
        %1505 = vmatprep.subr.bf16.mxu0 0
        %1506 = vmatpush1.bf16.xpose.msra.mxu0 0
        %1507 = vmatprep.subr.bf16.mxu0 0
        %1508 = vmatpush1.bf16.xpose.msra.mxu0 0
        %1509 = vmatprep.subr.bf16.mxu0 0
        %1510 = vmatpush1.bf16.xpose.msra.mxu0 0
        %1511 = vmatprep.subr.bf16.mxu0 0
        %1512 = vmatpush1.bf16.xpose.msra.mxu0 0
        %1513 = vmatprep.subr.bf16.mxu0 0
        %1514 = vmatpush1.bf16.xpose.msra.mxu0 %v1497
        %1515 = vmatprep.subr.bf16.mxu0 0
        %1516 = vmatpush2.bf16.xpose.msra.mxu0 0
        %1517 = vmatprep.subr.bf16.mxu0 0
        %1518 = vmatpush2.bf16.xpose.msra.mxu0 0
        %1519 = vmatprep.subr.bf16.mxu0 0
        %1520 = vmatpush2.bf16.xpose.msra.mxu0 0
        %1521 = vmatprep.subr.bf16.mxu0 0
        %1522 = vmatpush2.bf16.xpose.msra.mxu0 0
        %1523 = vmatprep.subr.bf16.mxu0 0
        %1524 = vmatpush2.bf16.xpose.msra.mxu0 0
        %1525 = vmatprep.subr.bf16.mxu0 0
        %1526 = vmatpush2.bf16.xpose.msra.mxu0 0
        %1527 = vmatprep.subr.bf16.mxu0 0
        %1528 = vmatpush2.bf16.xpose.msra.mxu0 0
        %1529 = vmatprep.subr.bf16.mxu0 0
        %1530 = vmatpush2.bf16.xpose.msra.mxu0 0
        %1531 = vmatprep.mubr.bf16.mxu0 0
        %1532 = vmatmul.mubr.bf16.gmra.mxu0 %v1494
        %v1533 = vpop.f32.mrf.mxu0
        %v1534 = vadd.f32 0.0, %v1533
        %v1535 = vpop.f32.mrf.mxu0
        %v1536 = vpop.f32.mrf.mxu0
        %v1537 = vpop.f32.mrf.mxu0
        %1538 = vdwg.mxu0
        %v1539 = vsel %vm1309, %v1534, -inf
        %1540 = vmax.xlane.f32.xlu0 %v1539
        %v1541 = vpop.xlane.xlu0 %1540
        %v1542 = vsub.f32 %v1534, %v1541
        %v1543 = vmul.f32 %v1542, 1.442695
        %v1544 = vpow.pop %v1543
        %v1545 = vsel %vm1309, %v1544, 0.0
        %1546 = vadd.xlane.f32.xlu0 %v1545
        %v1547 = vpop.xlane.xlu0 %1546
        %v1548 = vrcp.pop %v1547
        %v1549 = vmul.f32 %v1544, %v1548
        %v1550 = vpack.c.bf16 %v1549, %v1549
        %1551 = vrot.lane.b32.xlu0 %v1261, 64
        %v1552 = vpop.permute.xlu0 %1551
        %v1554 = vsel %vm1309, %v1550, 0
        %v1557 = vsel %vm1325, %v1552, 0
        %1559 = vmatprep.subr.bf16.mxu0 0
        %1560 = vmatpush1.bf16.msra.mxu0 0
        %1561 = vmatprep.subr.bf16.mxu0 0
        %1562 = vmatpush1.bf16.msra.mxu0 0
        %1563 = vmatprep.subr.bf16.mxu0 0
        %1564 = vmatpush1.bf16.msra.mxu0 0
        %1565 = vmatprep.subr.bf16.mxu0 0
        %1566 = vmatpush1.bf16.msra.mxu0 0
        %1567 = vmatprep.subr.bf16.mxu0 0
        %1568 = vmatpush1.bf16.msra.mxu0 0
        %1569 = vmatprep.subr.bf16.mxu0 0
        %1570 = vmatpush1.bf16.msra.mxu0 0
        %1571 = vmatprep.subr.bf16.mxu0 0
        %1572 = vmatpush1.bf16.msra.mxu0 0
        %1573 = vmatprep.subr.bf16.mxu0 0
        %1574 = vmatpush1.bf16.msra.mxu0 %v1557
        %1575 = vmatprep.subr.bf16.mxu0 0
        %1576 = vmatpush2.bf16.msra.mxu0 0
        %1577 = vmatprep.subr.bf16.mxu0 0
        %1578 = vmatpush2.bf16.msra.mxu0 0
        %1579 = vmatprep.subr.bf16.mxu0 0
        %1580 = vmatpush2.bf16.msra.mxu0 0
        %1581 = vmatprep.subr.bf16.mxu0 0
        %1582 = vmatpush2.bf16.msra.mxu0 0
        %1583 = vmatprep.subr.bf16.mxu0 0
        %1584 = vmatpush2.bf16.msra.mxu0 0
        %1585 = vmatprep.subr.bf16.mxu0 0
        %1586 = vmatpush2.bf16.msra.mxu0 0
        %1587 = vmatprep.subr.bf16.mxu0 0
        %1588 = vmatpush2.bf16.msra.mxu0 0
        %1589 = vmatprep.subr.bf16.mxu0 0
        %1590 = vmatpush2.bf16.msra.mxu0 0
        %1591 = vmatprep.mubr.bf16.mxu0 0
        %1592 = vmatmul.mubr.bf16.gmra.mxu0 %v1554
        %v1593 = vpop.f32.mrf.mxu0
        %v1594 = vadd.f32 0.0, %v1593
        %v1595 = vpop.f32.mrf.mxu0
        %v1596 = vpop.f32.mrf.mxu0
        %v1597 = vpop.f32.mrf.mxu0
        %1598 = vdwg.mxu0
        %1600 = vrot.lane.b32.xlu0 %v1594, 64
        %v1601 = vpop.permute.xlu0 %1600
        %vm1603 = vcmask 785920
        %1604 = vst.msk [vmem:[#allocation3] sm:$0xff] %vm1603, %v1601
        %1605 = vrot.lane.b32.xlu0 %v1259, 32
        %v1606 = vpop.permute.xlu0 %1605
        %1607 = vrot.lane.b32.xlu0 %v1260, 32
        %v1608 = vpop.permute.xlu0 %1607
        %v1610 = vsel %vm1262, %v1606, 0
        %v1613 = vsel %vm1262, %v1608, 0
        %1615 = vmatprep.subr.bf16.mxu0 0
        %1616 = vmatpush1.bf16.xpose.msra.mxu0 0
        %1617 = vmatprep.subr.bf16.mxu0 0
        %1618 = vmatpush1.bf16.xpose.msra.mxu0 0
        %1619 = vmatprep.subr.bf16.mxu0 0
        %1620 = vmatpush1.bf16.xpose.msra.mxu0 0
        %1621 = vmatprep.subr.bf16.mxu0 0
        %1622 = vmatpush1.bf16.xpose.msra.mxu0 0
        %1623 = vmatprep.subr.bf16.mxu0 0
        %1624 = vmatpush1.bf16.xpose.msra.mxu0 0
        %1625 = vmatprep.subr.bf16.mxu0 0
        %1626 = vmatpush1.bf16.xpose.msra.mxu0 0
        %1627 = vmatprep.subr.bf16.mxu0 0
        %1628 = vmatpush1.bf16.xpose.msra.mxu0 0
        %1629 = vmatprep.subr.bf16.mxu0 0
        %1630 = vmatpush1.bf16.xpose.msra.mxu0 %v1613
        %1631 = vmatprep.subr.bf16.mxu0 0
        %1632 = vmatpush2.bf16.xpose.msra.mxu0 0
        %1633 = vmatprep.subr.bf16.mxu0 0
        %1634 = vmatpush2.bf16.xpose.msra.mxu0 0
        %1635 = vmatprep.subr.bf16.mxu0 0
        %1636 = vmatpush2.bf16.xpose.msra.mxu0 0
        %1637 = vmatprep.subr.bf16.mxu0 0
        %1638 = vmatpush2.bf16.xpose.msra.mxu0 0
        %1639 = vmatprep.subr.bf16.mxu0 0
        %1640 = vmatpush2.bf16.xpose.msra.mxu0 0
        %1641 = vmatprep.subr.bf16.mxu0 0
        %1642 = vmatpush2.bf16.xpose.msra.mxu0 0
        %1643 = vmatprep.subr.bf16.mxu0 0
        %1644 = vmatpush2.bf16.xpose.msra.mxu0 0
        %1645 = vmatprep.subr.bf16.mxu0 0
        %1646 = vmatpush2.bf16.xpose.msra.mxu0 0
        %1647 = vmatprep.mubr.bf16.mxu0 0
        %1648 = vmatmul.mubr.bf16.gmra.mxu0 %v1610
        %v1649 = vpop.f32.mrf.mxu0
        %v1650 = vadd.f32 0.0, %v1649
        %v1651 = vpop.f32.mrf.mxu0
        %v1652 = vpop.f32.mrf.mxu0
        %v1653 = vpop.f32.mrf.mxu0
        %1654 = vdwg.mxu0
        %v1655 = vsel %vm1309, %v1650, -inf
        %1656 = vmax.xlane.f32.xlu0 %v1655
        %v1657 = vpop.xlane.xlu0 %1656
        %v1658 = vsub.f32 %v1650, %v1657
        %v1659 = vmul.f32 %v1658, 1.442695
        %v1660 = vpow.pop %v1659
        %v1661 = vsel %vm1309, %v1660, 0.0
        %1662 = vadd.xlane.f32.xlu0 %v1661
        %v1663 = vpop.xlane.xlu0 %1662
        %v1664 = vrcp.pop %v1663
        %v1665 = vmul.f32 %v1660, %v1664
        %v1666 = vpack.c.bf16 %v1665, %v1665
        %1667 = vrot.lane.b32.xlu0 %v1261, 32
        %v1668 = vpop.permute.xlu0 %1667
        %v1670 = vsel %vm1309, %v1666, 0
        %v1673 = vsel %vm1325, %v1668, 0
        %1675 = vmatprep.subr.bf16.mxu0 0
        %1676 = vmatpush1.bf16.msra.mxu0 0
        %1677 = vmatprep.subr.bf16.mxu0 0
        %1678 = vmatpush1.bf16.msra.mxu0 0
        %1679 = vmatprep.subr.bf16.mxu0 0
        %1680 = vmatpush1.bf16.msra.mxu0 0
        %1681 = vmatprep.subr.bf16.mxu0 0
        %1682 = vmatpush1.bf16.msra.mxu0 0
        %1683 = vmatprep.subr.bf16.mxu0 0
        %1684 = vmatpush1.bf16.msra.mxu0 0
        %1685 = vmatprep.subr.bf16.mxu0 0
        %1686 = vmatpush1.bf16.msra.mxu0 0
        %1687 = vmatprep.subr.bf16.mxu0 0
        %1688 = vmatpush1.bf16.msra.mxu0 0
        %1689 = vmatprep.subr.bf16.mxu0 0
        %1690 = vmatpush1.bf16.msra.mxu0 %v1673
        %1691 = vmatprep.subr.bf16.mxu0 0
        %1692 = vmatpush2.bf16.msra.mxu0 0
        %1693 = vmatprep.subr.bf16.mxu0 0
        %1694 = vmatpush2.bf16.msra.mxu0 0
        %1695 = vmatprep.subr.bf16.mxu0 0
        %1696 = vmatpush2.bf16.msra.mxu0 0
        %1697 = vmatprep.subr.bf16.mxu0 0
        %1698 = vmatpush2.bf16.msra.mxu0 0
        %1699 = vmatprep.subr.bf16.mxu0 0
        %1700 = vmatpush2.bf16.msra.mxu0 0
        %1701 = vmatprep.subr.bf16.mxu0 0
        %1702 = vmatpush2.bf16.msra.mxu0 0
        %1703 = vmatprep.subr.bf16.mxu0 0
        %1704 = vmatpush2.bf16.msra.mxu0 0
        %1705 = vmatprep.subr.bf16.mxu0 0
        %1706 = vmatpush2.bf16.msra.mxu0 0
        %1707 = vmatprep.mubr.bf16.mxu0 0
        %1708 = vmatmul.mubr.bf16.gmra.mxu0 %v1670
        %v1709 = vpop.f32.mrf.mxu0
        %v1710 = vadd.f32 0.0, %v1709
        %v1711 = vpop.f32.mrf.mxu0
        %v1712 = vpop.f32.mrf.mxu0
        %v1713 = vpop.f32.mrf.mxu0
        %1714 = vdwg.mxu0
        %1716 = vrot.lane.b32.xlu0 %v1710, 96
        %v1717 = vpop.permute.xlu0 %1716
        %vm1719 = vcmask 1048320
        %1720 = vst.msk [vmem:[#allocation3] sm:$0xff] %vm1719, %v1717
        %v1721 = vld [vmem:[#allocation3] sm:$0xff]
        %v1722 = vld [vmem:[%s749] sm:$0xf]
        %v1723 = vld [vmem:[%s749 + $0x4] sm:$0xf]
        %v1724 = vld [vmem:[%s749 + $0x8] sm:$0xf]
        %v1725 = vld [vmem:[%s749 + $0xc] sm:$0xf]
        %v1726 = vld [vmem:[%s749 + $0x10] sm:$0xf]
        %v1727 = vld [vmem:[%s749 + $0x14] sm:$0xf]
        %v1728 = vld [vmem:[%s749 + $0x18] sm:$0xf]
        %v1729 = vld [vmem:[%s749 + $0x1c] sm:$0xf]
        %v1730 = vld [vmem:[%s749 + $0x20] sm:$0xf]
        %v1731 = vld [vmem:[%s749 + $0x24] sm:$0xf]
        %v1732 = vld [vmem:[%s749 + $0x28] sm:$0xf]
        %v1733 = vld [vmem:[%s749 + $0x2c] sm:$0xf]
        %v1734 = vld [vmem:[%s749 + $0x30] sm:$0xf]
        %v1735 = vld [vmem:[%s749 + $0x34] sm:$0xf]
        %v1736 = vld [vmem:[%s749 + $0x38] sm:$0xf]
        %v1737 = vld [vmem:[%s749 + $0x3c] sm:$0xf]
        %v1738 = vpack.c.bf16 %v1721, %v1721
        %v1739 = vlaneseq
        %v1740 = vshrl.u32 %v1739, 7
        %v1741 = vsub.s32 0, %v1740
        %v1742 = vrot.slane %v926, %v1741
        %v1759 = vunpack.c.l.b16 %v1722
        %v1760 = vunpack.c.l.b16 %v1723
        %v1761 = vunpack.c.l.b16 %v1724
        %v1762 = vunpack.c.l.b16 %v1725
        %v1763 = vunpack.c.l.b16 %v1726
        %v1764 = vunpack.c.l.b16 %v1727
        %v1765 = vunpack.c.l.b16 %v1728
        %v1766 = vunpack.c.l.b16 %v1729
        %v1767 = vunpack.c.l.b16 %v1730
        %v1768 = vunpack.c.l.b16 %v1731
        %v1769 = vunpack.c.l.b16 %v1732
        %v1770 = vunpack.c.l.b16 %v1733
        %v1771 = vunpack.c.l.b16 %v1734
        %v1772 = vunpack.c.l.b16 %v1735
        %v1773 = vunpack.c.l.b16 %v1736
        %v1774 = vunpack.c.l.b16 %v1737
        %v1775 = vpack.c.b16 %v1760, %v1759
        %v1776 = vpack.c.b16 %v1762, %v1761
        %v1777 = vpack.c.b16 %v1764, %v1763
        %v1778 = vpack.c.b16 %v1766, %v1765
        %v1779 = vpack.c.b16 %v1768, %v1767
        %v1780 = vpack.c.b16 %v1770, %v1769
        %v1781 = vpack.c.b16 %v1772, %v1771
        %v1782 = vpack.c.b16 %v1774, %v1773
        %1791 = vmatprep.subr.bf16.mxu0 0
        %1792 = vmatpush1.bf16.msra.mxu0 %v1782
        %1793 = vmatprep.subr.bf16.mxu0 0
        %1794 = vmatpush1.bf16.msra.mxu0 %v1781
        %1795 = vmatprep.subr.bf16.mxu0 0
        %1796 = vmatpush1.bf16.msra.mxu0 %v1780
        %1797 = vmatprep.subr.bf16.mxu0 0
        %1798 = vmatpush1.bf16.msra.mxu0 %v1779
        %1799 = vmatprep.subr.bf16.mxu0 0
        %1800 = vmatpush1.bf16.msra.mxu0 %v1778
        %1801 = vmatprep.subr.bf16.mxu0 0
        %1802 = vmatpush1.bf16.msra.mxu0 %v1777
        %1803 = vmatprep.subr.bf16.mxu0 0
        %1804 = vmatpush1.bf16.msra.mxu0 %v1776
        %1805 = vmatprep.subr.bf16.mxu0 0
        %1806 = vmatpush1.bf16.msra.mxu0 %v1775
        %1807 = vmatprep.subr.bf16.mxu0 0
        %1808 = vmatpush2.bf16.msra.mxu0 0
        %1809 = vmatprep.subr.bf16.mxu0 0
        %1810 = vmatpush2.bf16.msra.mxu0 0
        %1811 = vmatprep.subr.bf16.mxu0 0
        %1812 = vmatpush2.bf16.msra.mxu0 0
        %1813 = vmatprep.subr.bf16.mxu0 0
        %1814 = vmatpush2.bf16.msra.mxu0 0
        %1815 = vmatprep.subr.bf16.mxu0 0
        %1816 = vmatpush2.bf16.msra.mxu0 0
        %1817 = vmatprep.subr.bf16.mxu0 0
        %1818 = vmatpush2.bf16.msra.mxu0 0
        %1819 = vmatprep.subr.bf16.mxu0 0
        %1820 = vmatpush2.bf16.msra.mxu0 0
        %1821 = vmatprep.subr.bf16.mxu0 0
        %1822 = vmatpush2.bf16.msra.mxu0 0
        %1823 = vmatprep.mubr.bf16.mxu0 0
        %1824 = vmatmul.mubr.bf16.gmra.mxu0 %v1738
        %v1825 = vpop.f32.mrf.mxu0
        %v1826 = vadd.f32 %v1742, %v1825
        %v1827 = vpop.f32.mrf.mxu0
        %v1828 = vpop.f32.mrf.mxu0
        %v1829 = vpop.f32.mrf.mxu0
        %1830 = vdwg.mxu0
        %v1831 = vadd.f32 %v929, %v1826
        %1832 = vadd.xlane.f32.xlu0 %v1831
        %v1833 = vpop.xlane.xlu0 %1832
        %v1834 = vrcp.pop 128.0
        %v1835 = vmul.f32 %v1833, %v1834
        %v1836 = vsub.f32 %v1831, %v1835
        %v1837 = vmul.f32 %v1836, %v1836
        %1838 = vadd.xlane.f32.xlu0 %v1837
        %v1839 = vpop.xlane.xlu0 %1838
        %v1840 = vmul.f32 %v1839, %v1834
        %v1841 = vadd.f32 %v1840, 1e-05
        %v1842 = vrsqrt.pop %v1841
        %v1843 = vmul.f32 %v1836, %v1842
        %v1844 = vlaneseq
        %v1845 = vshrl.u32 %v1844, 7
        %v1846 = vsub.s32 0, %v1845
        %v1847 = vrot.slane %v927, %v1846
        %v1848 = vmul.f32 %v1843, %v1847
        %v1849 = vlaneseq
        %v1850 = vshrl.u32 %v1849, 7
        %v1851 = vsub.s32 0, %v1850
        %v1852 = vrot.slane %v928, %v1851
        %v1853 = vadd.f32 %v1848, %v1852
        %v1854 = vld [vmem:[%s901] sm:$0xff]
        %v1855 = vld [vmem:[%s901 + $0x8] sm:$0xff]
        %v1856 = vld [vmem:[%s731] sm:$0xff]
        %v1857 = vld [vmem:[%s731 + $0x8] sm:$0xff]
        %v1858 = vadd.f32 %v1854, %v1856
        %v1859 = vadd.f32 %v1855, %v1857
        %v1860 = vpack.c.bf16 %v1859, %v1858
        %v1861 = vadd.f32 %v1853, %v924
        %v1862 = vpack.c.bf16 %v1861, %v1861
        %v1863 = vpack.c.bf16 %v1855, %v1854
        %s1864 = scalar_lea.vmem %s740, 192 [#allocation9]
        %v1865 = vld [vmem:[%s1864] sm:$0xf]
        %v1866 = vld [vmem:[%s1864 + $0x4] sm:$0xf]
        %v1867 = vld [vmem:[%s1864 + $0x8] sm:$0xf]
        %v1868 = vld [vmem:[%s1864 + $0xc] sm:$0xf]
        %v1869 = vld [vmem:[%s1864 + $0x10] sm:$0xf]
        %v1870 = vld [vmem:[%s1864 + $0x14] sm:$0xf]
        %v1871 = vld [vmem:[%s1864 + $0x18] sm:$0xf]
        %v1872 = vld [vmem:[%s1864 + $0x1c] sm:$0xf]
        %v1873 = vld [vmem:[%s1864 + $0x20] sm:$0xf]
        %v1874 = vld [vmem:[%s1864 + $0x24] sm:$0xf]
        %v1875 = vld [vmem:[%s1864 + $0x28] sm:$0xf]
        %v1876 = vld [vmem:[%s1864 + $0x2c] sm:$0xf]
        %v1877 = vld [vmem:[%s1864 + $0x30] sm:$0xf]
        %v1878 = vld [vmem:[%s1864 + $0x34] sm:$0xf]
        %v1879 = vld [vmem:[%s1864 + $0x38] sm:$0xf]
        %v1880 = vld [vmem:[%s1864 + $0x3c] sm:$0xf]
        %v1881 = vlaneseq
        %v1882 = vshrl.u32 %v1881, 7
        %v1883 = vsub.s32 3, %v1882
        %v1884 = vrot.slane %v925, %v1883
        %v1901 = vunpack.c.l.b16 %v1865
        %v1902 = vunpack.c.l.b16 %v1866
        %v1903 = vunpack.c.l.b16 %v1867
        %v1904 = vunpack.c.l.b16 %v1868
        %v1905 = vunpack.c.l.b16 %v1869
        %v1906 = vunpack.c.l.b16 %v1870
        %v1907 = vunpack.c.l.b16 %v1871
        %v1908 = vunpack.c.l.b16 %v1872
        %v1909 = vunpack.c.l.b16 %v1873
        %v1910 = vunpack.c.l.b16 %v1874
        %v1911 = vunpack.c.l.b16 %v1875
        %v1912 = vunpack.c.l.b16 %v1876
        %v1913 = vunpack.c.l.b16 %v1877
        %v1914 = vunpack.c.l.b16 %v1878
        %v1915 = vunpack.c.l.b16 %v1879
        %v1916 = vunpack.c.l.b16 %v1880
        %v1917 = vpack.c.b16 %v1902, %v1901
        %v1918 = vpack.c.b16 %v1904, %v1903
        %v1919 = vpack.c.b16 %v1906, %v1905
        %v1920 = vpack.c.b16 %v1908, %v1907
        %v1921 = vpack.c.b16 %v1910, %v1909
        %v1922 = vpack.c.b16 %v1912, %v1911
        %v1923 = vpack.c.b16 %v1914, %v1913
        %v1924 = vpack.c.b16 %v1916, %v1915
        %1933 = vmatprep.subr.bf16.mxu0 0
        %1934 = vmatpush1.bf16.msra.mxu0 %v1924
        %1935 = vmatprep.subr.bf16.mxu0 0
        %1936 = vmatpush1.bf16.msra.mxu0 %v1923
        %1937 = vmatprep.subr.bf16.mxu0 0
        %1938 = vmatpush1.bf16.msra.mxu0 %v1922
        %1939 = vmatprep.subr.bf16.mxu0 0
        %1940 = vmatpush1.bf16.msra.mxu0 %v1921
        %1941 = vmatprep.subr.bf16.mxu0 0
        %1942 = vmatpush1.bf16.msra.mxu0 %v1920
        %1943 = vmatprep.subr.bf16.mxu0 0
        %1944 = vmatpush1.bf16.msra.mxu0 %v1919
        %1945 = vmatprep.subr.bf16.mxu0 0
        %1946 = vmatpush1.bf16.msra.mxu0 %v1918
        %1947 = vmatprep.subr.bf16.mxu0 0
        %1948 = vmatpush1.bf16.msra.mxu0 %v1917
        %1949 = vmatprep.subr.bf16.mxu0 0
        %1950 = vmatpush2.bf16.msra.mxu0 0
        %1951 = vmatprep.subr.bf16.mxu0 0
        %1952 = vmatpush2.bf16.msra.mxu0 0
        %1953 = vmatprep.subr.bf16.mxu0 0
        %1954 = vmatpush2.bf16.msra.mxu0 0
        %1955 = vmatprep.subr.bf16.mxu0 0
        %1956 = vmatpush2.bf16.msra.mxu0 0
        %1957 = vmatprep.subr.bf16.mxu0 0
        %1958 = vmatpush2.bf16.msra.mxu0 0
        %1959 = vmatprep.subr.bf16.mxu0 0
        %1960 = vmatpush2.bf16.msra.mxu0 0
        %1961 = vmatprep.subr.bf16.mxu0 0
        %1962 = vmatpush2.bf16.msra.mxu0 0
        %1963 = vmatprep.subr.bf16.mxu0 0
        %1964 = vmatpush2.bf16.msra.mxu0 0
        %1965 = vmatprep.mubr.bf16.mxu0 0
        %1966 = vmatmul.mubr.bf16.gmra.mxu0 %v1862
        %v1967 = vpop.f32.mrf.mxu0
        %v1968 = vadd.f32 %v1884, %v1967
        %v1969 = vpop.f32.mrf.mxu0
        %v1970 = vpop.f32.mrf.mxu0
        %v1971 = vpop.f32.mrf.mxu0
        %1972 = vdwg.mxu0
        %s1973 = scalar_lea.vmem %s740, 256 [#allocation9]
        %v1974 = vld [vmem:[%s1973] sm:$0xf]
        %v1975 = vld [vmem:[%s1973 + $0x4] sm:$0xf]
        %v1976 = vld [vmem:[%s1973 + $0x8] sm:$0xf]
        %v1977 = vld [vmem:[%s1973 + $0xc] sm:$0xf]
        %v1978 = vld [vmem:[%s1973 + $0x10] sm:$0xf]
        %v1979 = vld [vmem:[%s1973 + $0x14] sm:$0xf]
        %v1980 = vld [vmem:[%s1973 + $0x18] sm:$0xf]
        %v1981 = vld [vmem:[%s1973 + $0x1c] sm:$0xf]
        %v1982 = vld [vmem:[%s1973 + $0x20] sm:$0xf]
        %v1983 = vld [vmem:[%s1973 + $0x24] sm:$0xf]
        %v1984 = vld [vmem:[%s1973 + $0x28] sm:$0xf]
        %v1985 = vld [vmem:[%s1973 + $0x2c] sm:$0xf]
        %v1986 = vld [vmem:[%s1973 + $0x30] sm:$0xf]
        %v1987 = vld [vmem:[%s1973 + $0x34] sm:$0xf]
        %v1988 = vld [vmem:[%s1973 + $0x38] sm:$0xf]
        %v1989 = vld [vmem:[%s1973 + $0x3c] sm:$0xf]
        %v1990 = vlaneseq
        %v1991 = vshrl.u32 %v1990, 7
        %v1992 = vsub.s32 4, %v1991
        %v1993 = vrot.slane %v925, %v1992
        %v2010 = vunpack.c.l.b16 %v1974
        %v2011 = vunpack.c.l.b16 %v1975
        %v2012 = vunpack.c.l.b16 %v1976
        %v2013 = vunpack.c.l.b16 %v1977
        %v2014 = vunpack.c.l.b16 %v1978
        %v2015 = vunpack.c.l.b16 %v1979
        %v2016 = vunpack.c.l.b16 %v1980
        %v2017 = vunpack.c.l.b16 %v1981
        %v2018 = vunpack.c.l.b16 %v1982
        %v2019 = vunpack.c.l.b16 %v1983
        %v2020 = vunpack.c.l.b16 %v1984
        %v2021 = vunpack.c.l.b16 %v1985
        %v2022 = vunpack.c.l.b16 %v1986
        %v2023 = vunpack.c.l.b16 %v1987
        %v2024 = vunpack.c.l.b16 %v1988
        %v2025 = vunpack.c.l.b16 %v1989
        %v2026 = vpack.c.b16 %v2011, %v2010
        %v2027 = vpack.c.b16 %v2013, %v2012
        %v2028 = vpack.c.b16 %v2015, %v2014
        %v2029 = vpack.c.b16 %v2017, %v2016
        %v2030 = vpack.c.b16 %v2019, %v2018
        %v2031 = vpack.c.b16 %v2021, %v2020
        %v2032 = vpack.c.b16 %v2023, %v2022
        %v2033 = vpack.c.b16 %v2025, %v2024
        %2042 = vmatprep.subr.bf16.mxu0 0
        %2043 = vmatpush1.bf16.msra.mxu0 %v2033
        %2044 = vmatprep.subr.bf16.mxu0 0
        %2045 = vmatpush1.bf16.msra.mxu0 %v2032
        %2046 = vmatprep.subr.bf16.mxu0 0
        %2047 = vmatpush1.bf16.msra.mxu0 %v2031
        %2048 = vmatprep.subr.bf16.mxu0 0
        %2049 = vmatpush1.bf16.msra.mxu0 %v2030
        %2050 = vmatprep.subr.bf16.mxu0 0
        %2051 = vmatpush1.bf16.msra.mxu0 %v2029
        %2052 = vmatprep.subr.bf16.mxu0 0
        %2053 = vmatpush1.bf16.msra.mxu0 %v2028
        %2054 = vmatprep.subr.bf16.mxu0 0
        %2055 = vmatpush1.bf16.msra.mxu0 %v2027
        %2056 = vmatprep.subr.bf16.mxu0 0
        %2057 = vmatpush1.bf16.msra.mxu0 %v2026
        %2058 = vmatprep.subr.bf16.mxu0 0
        %2059 = vmatpush2.bf16.msra.mxu0 0
        %2060 = vmatprep.subr.bf16.mxu0 0
        %2061 = vmatpush2.bf16.msra.mxu0 0
        %2062 = vmatprep.subr.bf16.mxu0 0
        %2063 = vmatpush2.bf16.msra.mxu0 0
        %2064 = vmatprep.subr.bf16.mxu0 0
        %2065 = vmatpush2.bf16.msra.mxu0 0
        %2066 = vmatprep.subr.bf16.mxu0 0
        %2067 = vmatpush2.bf16.msra.mxu0 0
        %2068 = vmatprep.subr.bf16.mxu0 0
        %2069 = vmatpush2.bf16.msra.mxu0 0
        %2070 = vmatprep.subr.bf16.mxu0 0
        %2071 = vmatpush2.bf16.msra.mxu0 0
        %2072 = vmatprep.subr.bf16.mxu0 0
        %2073 = vmatpush2.bf16.msra.mxu0 0
        %2074 = vmatprep.mubr.bf16.mxu0 0
        %2075 = vmatmul.mubr.bf16.gmra.mxu0 %v1860
        %v2076 = vpop.f32.mrf.mxu0
        %v2077 = vadd.f32 %v1993, %v2076
        %v2078 = vpop.f32.mrf.mxu0
        %v2079 = vpop.f32.mrf.mxu0
        %v2080 = vadd.f32 %v1993, %v2079
        %v2081 = vpop.f32.mrf.mxu0
        %2082 = vdwg.mxu0
        %s2083 = scalar_lea.vmem %s740, 320 [#allocation9]
        %v2084 = vld [vmem:[%s2083] sm:$0xf]
        %v2085 = vld [vmem:[%s2083 + $0x4] sm:$0xf]
        %v2086 = vld [vmem:[%s2083 + $0x8] sm:$0xf]
        %v2087 = vld [vmem:[%s2083 + $0xc] sm:$0xf]
        %v2088 = vld [vmem:[%s2083 + $0x10] sm:$0xf]
        %v2089 = vld [vmem:[%s2083 + $0x14] sm:$0xf]
        %v2090 = vld [vmem:[%s2083 + $0x18] sm:$0xf]
        %v2091 = vld [vmem:[%s2083 + $0x1c] sm:$0xf]
        %v2092 = vld [vmem:[%s2083 + $0x20] sm:$0xf]
        %v2093 = vld [vmem:[%s2083 + $0x24] sm:$0xf]
        %v2094 = vld [vmem:[%s2083 + $0x28] sm:$0xf]
        %v2095 = vld [vmem:[%s2083 + $0x2c] sm:$0xf]
        %v2096 = vld [vmem:[%s2083 + $0x30] sm:$0xf]
        %v2097 = vld [vmem:[%s2083 + $0x34] sm:$0xf]
        %v2098 = vld [vmem:[%s2083 + $0x38] sm:$0xf]
        %v2099 = vld [vmem:[%s2083 + $0x3c] sm:$0xf]
        %v2100 = vlaneseq
        %v2101 = vshrl.u32 %v2100, 7
        %v2102 = vsub.s32 5, %v2101
        %v2103 = vrot.slane %v925, %v2102
        %v2120 = vunpack.c.l.b16 %v2084
        %v2121 = vunpack.c.l.b16 %v2085
        %v2122 = vunpack.c.l.b16 %v2086
        %v2123 = vunpack.c.l.b16 %v2087
        %v2124 = vunpack.c.l.b16 %v2088
        %v2125 = vunpack.c.l.b16 %v2089
        %v2126 = vunpack.c.l.b16 %v2090
        %v2127 = vunpack.c.l.b16 %v2091
        %v2128 = vunpack.c.l.b16 %v2092
        %v2129 = vunpack.c.l.b16 %v2093
        %v2130 = vunpack.c.l.b16 %v2094
        %v2131 = vunpack.c.l.b16 %v2095
        %v2132 = vunpack.c.l.b16 %v2096
        %v2133 = vunpack.c.l.b16 %v2097
        %v2134 = vunpack.c.l.b16 %v2098
        %v2135 = vunpack.c.l.b16 %v2099
        %v2136 = vpack.c.b16 %v2121, %v2120
        %v2137 = vpack.c.b16 %v2123, %v2122
        %v2138 = vpack.c.b16 %v2125, %v2124
        %v2139 = vpack.c.b16 %v2127, %v2126
        %v2140 = vpack.c.b16 %v2129, %v2128
        %v2141 = vpack.c.b16 %v2131, %v2130
        %v2142 = vpack.c.b16 %v2133, %v2132
        %v2143 = vpack.c.b16 %v2135, %v2134
        %2152 = vmatprep.subr.bf16.mxu0 0
        %2153 = vmatpush1.bf16.msra.mxu0 %v2143
        %2154 = vmatprep.subr.bf16.mxu0 0
        %2155 = vmatpush1.bf16.msra.mxu0 %v2142
        %2156 = vmatprep.subr.bf16.mxu0 0
        %2157 = vmatpush1.bf16.msra.mxu0 %v2141
        %2158 = vmatprep.subr.bf16.mxu0 0
        %2159 = vmatpush1.bf16.msra.mxu0 %v2140
        %2160 = vmatprep.subr.bf16.mxu0 0
        %2161 = vmatpush1.bf16.msra.mxu0 %v2139
        %2162 = vmatprep.subr.bf16.mxu0 0
        %2163 = vmatpush1.bf16.msra.mxu0 %v2138
        %2164 = vmatprep.subr.bf16.mxu0 0
        %2165 = vmatpush1.bf16.msra.mxu0 %v2137
        %2166 = vmatprep.subr.bf16.mxu0 0
        %2167 = vmatpush1.bf16.msra.mxu0 %v2136
        %2168 = vmatprep.subr.bf16.mxu0 0
        %2169 = vmatpush2.bf16.msra.mxu0 0
        %2170 = vmatprep.subr.bf16.mxu0 0
        %2171 = vmatpush2.bf16.msra.mxu0 0
        %2172 = vmatprep.subr.bf16.mxu0 0
        %2173 = vmatpush2.bf16.msra.mxu0 0
        %2174 = vmatprep.subr.bf16.mxu0 0
        %2175 = vmatpush2.bf16.msra.mxu0 0
        %2176 = vmatprep.subr.bf16.mxu0 0
        %2177 = vmatpush2.bf16.msra.mxu0 0
        %2178 = vmatprep.subr.bf16.mxu0 0
        %2179 = vmatpush2.bf16.msra.mxu0 0
        %2180 = vmatprep.subr.bf16.mxu0 0
        %2181 = vmatpush2.bf16.msra.mxu0 0
        %2182 = vmatprep.subr.bf16.mxu0 0
        %2183 = vmatpush2.bf16.msra.mxu0 0
        %2184 = vmatprep.mubr.bf16.mxu0 0
        %2185 = vmatmul.mubr.bf16.gmra.mxu0 %v1863
        %v2186 = vpop.f32.mrf.mxu0
        %v2187 = vadd.f32 %v2103, %v2186
        %v2188 = vpop.f32.mrf.mxu0
        %v2189 = vpop.f32.mrf.mxu0
        %v2190 = vadd.f32 %v2103, %v2189
        %v2191 = vpop.f32.mrf.mxu0
        %2192 = vdwg.mxu0
        %v2193 = vpack.c.bf16 %v1968, %v1968
        %v2194 = vpack.c.bf16 %v2080, %v2077
        %v2195 = vpack.c.bf16 %v2190, %v2187
        %v2197 = vsel %vm1262, %v2193, 0
        %v2200 = vsel %vm1262, %v2194, 0
        %2202 = vmatprep.subr.bf16.mxu0 0
        %2203 = vmatpush1.bf16.xpose.msra.mxu0 0
        %2204 = vmatprep.subr.bf16.mxu0 0
        %2205 = vmatpush1.bf16.xpose.msra.mxu0 0
        %2206 = vmatprep.subr.bf16.mxu0 0
        %2207 = vmatpush1.bf16.xpose.msra.mxu0 0
        %2208 = vmatprep.subr.bf16.mxu0 0
        %2209 = vmatpush1.bf16.xpose.msra.mxu0 0
        %2210 = vmatprep.subr.bf16.mxu0 0
        %2211 = vmatpush1.bf16.xpose.msra.mxu0 0
        %2212 = vmatprep.subr.bf16.mxu0 0
        %2213 = vmatpush1.bf16.xpose.msra.mxu0 0
        %2214 = vmatprep.subr.bf16.mxu0 0
        %2215 = vmatpush1.bf16.xpose.msra.mxu0 0
        %2216 = vmatprep.subr.bf16.mxu0 0
        %2217 = vmatpush1.bf16.xpose.msra.mxu0 %v2200
        %2218 = vmatprep.subr.bf16.mxu0 0
        %2219 = vmatpush2.bf16.xpose.msra.mxu0 0
        %2220 = vmatprep.subr.bf16.mxu0 0
        %2221 = vmatpush2.bf16.xpose.msra.mxu0 0
        %2222 = vmatprep.subr.bf16.mxu0 0
        %2223 = vmatpush2.bf16.xpose.msra.mxu0 0
        %2224 = vmatprep.subr.bf16.mxu0 0
        %2225 = vmatpush2.bf16.xpose.msra.mxu0 0
        %2226 = vmatprep.subr.bf16.mxu0 0
        %2227 = vmatpush2.bf16.xpose.msra.mxu0 0
        %2228 = vmatprep.subr.bf16.mxu0 0
        %2229 = vmatpush2.bf16.xpose.msra.mxu0 0
        %2230 = vmatprep.subr.bf16.mxu0 0
        %2231 = vmatpush2.bf16.xpose.msra.mxu0 0
        %2232 = vmatprep.subr.bf16.mxu0 0
        %2233 = vmatpush2.bf16.xpose.msra.mxu0 0
        %2234 = vmatprep.mubr.bf16.mxu0 0
        %2235 = vmatmul.mubr.bf16.gmra.mxu0 %v2197
        %v2236 = vpop.f32.mrf.mxu0
        %v2237 = vadd.f32 0.0, %v2236
        %v2238 = vpop.f32.mrf.mxu0
        %v2239 = vpop.f32.mrf.mxu0
        %v2240 = vpop.f32.mrf.mxu0
        %2241 = vdwg.mxu0
        %vm2242 = vcmask 130048
        %v2243 = vsel %vm2242, %v2237, -inf
        %2244 = vmax.xlane.f32.xlu0 %v2243
        %v2245 = vpop.xlane.xlu0 %2244
        %v2246 = vsub.f32 %v2237, %v2245
        %v2247 = vmul.f32 %v2246, 1.442695
        %v2248 = vpow.pop %v2247
        %v2249 = vsel %vm2242, %v2248, 0.0
        %2250 = vadd.xlane.f32.xlu0 %v2249
        %v2251 = vpop.xlane.xlu0 %2250
        %v2252 = vrcp.pop %v2251
        %v2253 = vmul.f32 %v2248, %v2252
        %v2254 = vpack.c.bf16 %v2253, %v2253
        %v2256 = vsel %vm2242, %v2254, 0
        %2258 = vmatprep.subr.bf16.mxu0 0
        %2259 = vmatpush1.bf16.msra.mxu0 0
        %2260 = vmatprep.subr.bf16.mxu0 0
        %2261 = vmatpush1.bf16.msra.mxu0 0
        %2262 = vmatprep.subr.bf16.mxu0 0
        %2263 = vmatpush1.bf16.msra.mxu0 0
        %2264 = vmatprep.subr.bf16.mxu0 0
        %2265 = vmatpush1.bf16.msra.mxu0 0
        %2266 = vmatprep.subr.bf16.mxu0 0
        %2267 = vmatpush1.bf16.msra.mxu0 0
        %2268 = vmatprep.subr.bf16.mxu0 0
        %2269 = vmatpush1.bf16.msra.mxu0 0
        %2270 = vmatprep.subr.bf16.mxu0 0
        %2271 = vmatpush1.bf16.msra.mxu0 0
        %2272 = vmatprep.subr.bf16.mxu0 0
        %2273 = vmatpush1.bf16.msra.mxu0 %v2195
        %2274 = vmatprep.subr.bf16.mxu0 0
        %2275 = vmatpush2.bf16.msra.mxu0 0
        %2276 = vmatprep.subr.bf16.mxu0 0
        %2277 = vmatpush2.bf16.msra.mxu0 0
        %2278 = vmatprep.subr.bf16.mxu0 0
        %2279 = vmatpush2.bf16.msra.mxu0 0
        %2280 = vmatprep.subr.bf16.mxu0 0
        %2281 = vmatpush2.bf16.msra.mxu0 0
        %2282 = vmatprep.subr.bf16.mxu0 0
        %2283 = vmatpush2.bf16.msra.mxu0 0
        %2284 = vmatprep.subr.bf16.mxu0 0
        %2285 = vmatpush2.bf16.msra.mxu0 0
        %2286 = vmatprep.subr.bf16.mxu0 0
        %2287 = vmatpush2.bf16.msra.mxu0 0
        %2288 = vmatprep.subr.bf16.mxu0 0
        %2289 = vmatpush2.bf16.msra.mxu0 0
        %2290 = vmatprep.mubr.bf16.mxu0 0
        %2291 = vmatmul.mubr.bf16.gmra.mxu0 %v2256
        %v2292 = vpop.f32.mrf.mxu0
        %v2293 = vadd.f32 0.0, %v2292
        %v2294 = vpop.f32.mrf.mxu0
        %v2295 = vpop.f32.mrf.mxu0
        %v2296 = vpop.f32.mrf.mxu0
        %2297 = vdwg.mxu0
        %2298 = vst.msk [vmem:[#allocation3] sm:$0xff] %vm1262, %v2293
        %2300 = vrot.lane.b32.xlu0 %v2193, 96
        %v2301 = vpop.permute.xlu0 %2300
        %2303 = vrot.lane.b32.xlu0 %v2194, 96
        %v2304 = vpop.permute.xlu0 %2303
        %v2306 = vsel %vm1262, %v2301, 0
        %v2309 = vsel %vm1262, %v2304, 0
        %2311 = vmatprep.subr.bf16.mxu0 0
        %2312 = vmatpush1.bf16.xpose.msra.mxu0 0
        %2313 = vmatprep.subr.bf16.mxu0 0
        %2314 = vmatpush1.bf16.xpose.msra.mxu0 0
        %2315 = vmatprep.subr.bf16.mxu0 0
        %2316 = vmatpush1.bf16.xpose.msra.mxu0 0
        %2317 = vmatprep.subr.bf16.mxu0 0
        %2318 = vmatpush1.bf16.xpose.msra.mxu0 0
        %2319 = vmatprep.subr.bf16.mxu0 0
        %2320 = vmatpush1.bf16.xpose.msra.mxu0 0
        %2321 = vmatprep.subr.bf16.mxu0 0
        %2322 = vmatpush1.bf16.xpose.msra.mxu0 0
        %2323 = vmatprep.subr.bf16.mxu0 0
        %2324 = vmatpush1.bf16.xpose.msra.mxu0 0
        %2325 = vmatprep.subr.bf16.mxu0 0
        %2326 = vmatpush1.bf16.xpose.msra.mxu0 %v2309
        %2327 = vmatprep.subr.bf16.mxu0 0
        %2328 = vmatpush2.bf16.xpose.msra.mxu0 0
        %2329 = vmatprep.subr.bf16.mxu0 0
        %2330 = vmatpush2.bf16.xpose.msra.mxu0 0
        %2331 = vmatprep.subr.bf16.mxu0 0
        %2332 = vmatpush2.bf16.xpose.msra.mxu0 0
        %2333 = vmatprep.subr.bf16.mxu0 0
        %2334 = vmatpush2.bf16.xpose.msra.mxu0 0
        %2335 = vmatprep.subr.bf16.mxu0 0
        %2336 = vmatpush2.bf16.xpose.msra.mxu0 0
        %2337 = vmatprep.subr.bf16.mxu0 0
        %2338 = vmatpush2.bf16.xpose.msra.mxu0 0
        %2339 = vmatprep.subr.bf16.mxu0 0
        %2340 = vmatpush2.bf16.xpose.msra.mxu0 0
        %2341 = vmatprep.subr.bf16.mxu0 0
        %2342 = vmatpush2.bf16.xpose.msra.mxu0 0
        %2343 = vmatprep.mubr.bf16.mxu0 0
        %2344 = vmatmul.mubr.bf16.gmra.mxu0 %v2306
        %v2345 = vpop.f32.mrf.mxu0
        %v2346 = vadd.f32 0.0, %v2345
        %v2347 = vpop.f32.mrf.mxu0
        %v2348 = vpop.f32.mrf.mxu0
        %v2349 = vpop.f32.mrf.mxu0
        %2350 = vdwg.mxu0
        %v2351 = vsel %vm2242, %v2346, -inf
        %2352 = vmax.xlane.f32.xlu0 %v2351
        %v2353 = vpop.xlane.xlu0 %2352
        %v2354 = vsub.f32 %v2346, %v2353
        %v2355 = vmul.f32 %v2354, 1.442695
        %v2356 = vpow.pop %v2355
        %v2357 = vsel %vm2242, %v2356, 0.0
        %2358 = vadd.xlane.f32.xlu0 %v2357
        %v2359 = vpop.xlane.xlu0 %2358
        %v2360 = vrcp.pop %v2359
        %v2361 = vmul.f32 %v2356, %v2360
        %v2362 = vpack.c.bf16 %v2361, %v2361
        %2364 = vrot.lane.b32.xlu0 %v2195, 96
        %v2365 = vpop.permute.xlu0 %2364
        %v2368 = vsel %vm2242, %v2362, 0
        %2370 = vmatprep.subr.bf16.mxu0 0
        %2371 = vmatpush1.bf16.msra.mxu0 0
        %2372 = vmatprep.subr.bf16.mxu0 0
        %2373 = vmatpush1.bf16.msra.mxu0 0
        %2374 = vmatprep.subr.bf16.mxu0 0
        %2375 = vmatpush1.bf16.msra.mxu0 0
        %2376 = vmatprep.subr.bf16.mxu0 0
        %2377 = vmatpush1.bf16.msra.mxu0 0
        %2378 = vmatprep.subr.bf16.mxu0 0
        %2379 = vmatpush1.bf16.msra.mxu0 0
        %2380 = vmatprep.subr.bf16.mxu0 0
        %2381 = vmatpush1.bf16.msra.mxu0 0
        %2382 = vmatprep.subr.bf16.mxu0 0
        %2383 = vmatpush1.bf16.msra.mxu0 0
        %2384 = vmatprep.subr.bf16.mxu0 0
        %2385 = vmatpush1.bf16.msra.mxu0 %v2365
        %2386 = vmatprep.subr.bf16.mxu0 0
        %2387 = vmatpush2.bf16.msra.mxu0 0
        %2388 = vmatprep.subr.bf16.mxu0 0
        %2389 = vmatpush2.bf16.msra.mxu0 0
        %2390 = vmatprep.subr.bf16.mxu0 0
        %2391 = vmatpush2.bf16.msra.mxu0 0
        %2392 = vmatprep.subr.bf16.mxu0 0
        %2393 = vmatpush2.bf16.msra.mxu0 0
        %2394 = vmatprep.subr.bf16.mxu0 0
        %2395 = vmatpush2.bf16.msra.mxu0 0
        %2396 = vmatprep.subr.bf16.mxu0 0
        %2397 = vmatpush2.bf16.msra.mxu0 0
        %2398 = vmatprep.subr.bf16.mxu0 0
        %2399 = vmatpush2.bf16.msra.mxu0 0
        %2400 = vmatprep.subr.bf16.mxu0 0
        %2401 = vmatpush2.bf16.msra.mxu0 0
        %2402 = vmatprep.mubr.bf16.mxu0 0
        %2403 = vmatmul.mubr.bf16.gmra.mxu0 %v2368
        %v2404 = vpop.f32.mrf.mxu0
        %v2405 = vadd.f32 0.0, %v2404
        %v2406 = vpop.f32.mrf.mxu0
        %v2407 = vpop.f32.mrf.mxu0
        %v2408 = vpop.f32.mrf.mxu0
        %2409 = vdwg.mxu0
        %2411 = vrot.lane.b32.xlu0 %v2405, 32
        %v2412 = vpop.permute.xlu0 %2411
        %2414 = vst.msk [vmem:[#allocation3] sm:$0xff] %vm1487, %v2412
        %2415 = vrot.lane.b32.xlu0 %v2193, 64
        %v2416 = vpop.permute.xlu0 %2415
        %2417 = vrot.lane.b32.xlu0 %v2194, 64
        %v2418 = vpop.permute.xlu0 %2417
        %v2420 = vsel %vm1262, %v2416, 0
        %v2423 = vsel %vm1262, %v2418, 0
        %2425 = vmatprep.subr.bf16.mxu0 0
        %2426 = vmatpush1.bf16.xpose.msra.mxu0 0
        %2427 = vmatprep.subr.bf16.mxu0 0
        %2428 = vmatpush1.bf16.xpose.msra.mxu0 0
        %2429 = vmatprep.subr.bf16.mxu0 0
        %2430 = vmatpush1.bf16.xpose.msra.mxu0 0
        %2431 = vmatprep.subr.bf16.mxu0 0
        %2432 = vmatpush1.bf16.xpose.msra.mxu0 0
        %2433 = vmatprep.subr.bf16.mxu0 0
        %2434 = vmatpush1.bf16.xpose.msra.mxu0 0
        %2435 = vmatprep.subr.bf16.mxu0 0
        %2436 = vmatpush1.bf16.xpose.msra.mxu0 0
        %2437 = vmatprep.subr.bf16.mxu0 0
        %2438 = vmatpush1.bf16.xpose.msra.mxu0 0
        %2439 = vmatprep.subr.bf16.mxu0 0
        %2440 = vmatpush1.bf16.xpose.msra.mxu0 %v2423
        %2441 = vmatprep.subr.bf16.mxu0 0
        %2442 = vmatpush2.bf16.xpose.msra.mxu0 0
        %2443 = vmatprep.subr.bf16.mxu0 0
        %2444 = vmatpush2.bf16.xpose.msra.mxu0 0
        %2445 = vmatprep.subr.bf16.mxu0 0
        %2446 = vmatpush2.bf16.xpose.msra.mxu0 0
        %2447 = vmatprep.subr.bf16.mxu0 0
        %2448 = vmatpush2.bf16.xpose.msra.mxu0 0
        %2449 = vmatprep.subr.bf16.mxu0 0
        %2450 = vmatpush2.bf16.xpose.msra.mxu0 0
        %2451 = vmatprep.subr.bf16.mxu0 0
        %2452 = vmatpush2.bf16.xpose.msra.mxu0 0
        %2453 = vmatprep.subr.bf16.mxu0 0
        %2454 = vmatpush2.bf16.xpose.msra.mxu0 0
        %2455 = vmatprep.subr.bf16.mxu0 0
        %2456 = vmatpush2.bf16.xpose.msra.mxu0 0
        %2457 = vmatprep.mubr.bf16.mxu0 0
        %2458 = vmatmul.mubr.bf16.gmra.mxu0 %v2420
        %v2459 = vpop.f32.mrf.mxu0
        %v2460 = vadd.f32 0.0, %v2459
        %v2461 = vpop.f32.mrf.mxu0
        %v2462 = vpop.f32.mrf.mxu0
        %v2463 = vpop.f32.mrf.mxu0
        %2464 = vdwg.mxu0
        %v2465 = vsel %vm2242, %v2460, -inf
        %2466 = vmax.xlane.f32.xlu0 %v2465
        %v2467 = vpop.xlane.xlu0 %2466
        %v2468 = vsub.f32 %v2460, %v2467
        %v2469 = vmul.f32 %v2468, 1.442695
        %v2470 = vpow.pop %v2469
        %v2471 = vsel %vm2242, %v2470, 0.0
        %2472 = vadd.xlane.f32.xlu0 %v2471
        %v2473 = vpop.xlane.xlu0 %2472
        %v2474 = vrcp.pop %v2473
        %v2475 = vmul.f32 %v2470, %v2474
        %v2476 = vpack.c.bf16 %v2475, %v2475
        %2477 = vrot.lane.b32.xlu0 %v2195, 64
        %v2478 = vpop.permute.xlu0 %2477
        %v2481 = vsel %vm2242, %v2476, 0
        %2483 = vmatprep.subr.bf16.mxu0 0
        %2484 = vmatpush1.bf16.msra.mxu0 0
        %2485 = vmatprep.subr.bf16.mxu0 0
        %2486 = vmatpush1.bf16.msra.mxu0 0
        %2487 = vmatprep.subr.bf16.mxu0 0
        %2488 = vmatpush1.bf16.msra.mxu0 0
        %2489 = vmatprep.subr.bf16.mxu0 0
        %2490 = vmatpush1.bf16.msra.mxu0 0
        %2491 = vmatprep.subr.bf16.mxu0 0
        %2492 = vmatpush1.bf16.msra.mxu0 0
        %2493 = vmatprep.subr.bf16.mxu0 0
        %2494 = vmatpush1.bf16.msra.mxu0 0
        %2495 = vmatprep.subr.bf16.mxu0 0
        %2496 = vmatpush1.bf16.msra.mxu0 0
        %2497 = vmatprep.subr.bf16.mxu0 0
        %2498 = vmatpush1.bf16.msra.mxu0 %v2478
        %2499 = vmatprep.subr.bf16.mxu0 0
        %2500 = vmatpush2.bf16.msra.mxu0 0
        %2501 = vmatprep.subr.bf16.mxu0 0
        %2502 = vmatpush2.bf16.msra.mxu0 0
        %2503 = vmatprep.subr.bf16.mxu0 0
        %2504 = vmatpush2.bf16.msra.mxu0 0
        %2505 = vmatprep.subr.bf16.mxu0 0
        %2506 = vmatpush2.bf16.msra.mxu0 0
        %2507 = vmatprep.subr.bf16.mxu0 0
        %2508 = vmatpush2.bf16.msra.mxu0 0
        %2509 = vmatprep.subr.bf16.mxu0 0
        %2510 = vmatpush2.bf16.msra.mxu0 0
        %2511 = vmatprep.subr.bf16.mxu0 0
        %2512 = vmatpush2.bf16.msra.mxu0 0
        %2513 = vmatprep.subr.bf16.mxu0 0
        %2514 = vmatpush2.bf16.msra.mxu0 0
        %2515 = vmatprep.mubr.bf16.mxu0 0
        %2516 = vmatmul.mubr.bf16.gmra.mxu0 %v2481
        %v2517 = vpop.f32.mrf.mxu0
        %v2518 = vadd.f32 0.0, %v2517
        %v2519 = vpop.f32.mrf.mxu0
        %v2520 = vpop.f32.mrf.mxu0
        %v2521 = vpop.f32.mrf.mxu0
        %2522 = vdwg.mxu0
        %2524 = vrot.lane.b32.xlu0 %v2518, 64
        %v2525 = vpop.permute.xlu0 %2524
        %2527 = vst.msk [vmem:[#allocation3] sm:$0xff] %vm1603, %v2525
        %2528 = vrot.lane.b32.xlu0 %v2193, 32
        %v2529 = vpop.permute.xlu0 %2528
        %2530 = vrot.lane.b32.xlu0 %v2194, 32
        %v2531 = vpop.permute.xlu0 %2530
        %v2533 = vsel %vm1262, %v2529, 0
        %v2536 = vsel %vm1262, %v2531, 0
        %2538 = vmatprep.subr.bf16.mxu0 0
        %2539 = vmatpush1.bf16.xpose.msra.mxu0 0
        %2540 = vmatprep.subr.bf16.mxu0 0
        %2541 = vmatpush1.bf16.xpose.msra.mxu0 0
        %2542 = vmatprep.subr.bf16.mxu0 0
        %2543 = vmatpush1.bf16.xpose.msra.mxu0 0
        %2544 = vmatprep.subr.bf16.mxu0 0
        %2545 = vmatpush1.bf16.xpose.msra.mxu0 0
        %2546 = vmatprep.subr.bf16.mxu0 0
        %2547 = vmatpush1.bf16.xpose.msra.mxu0 0
        %2548 = vmatprep.subr.bf16.mxu0 0
        %2549 = vmatpush1.bf16.xpose.msra.mxu0 0
        %2550 = vmatprep.subr.bf16.mxu0 0
        %2551 = vmatpush1.bf16.xpose.msra.mxu0 0
        %2552 = vmatprep.subr.bf16.mxu0 0
        %2553 = vmatpush1.bf16.xpose.msra.mxu0 %v2536
        %2554 = vmatprep.subr.bf16.mxu0 0
        %2555 = vmatpush2.bf16.xpose.msra.mxu0 0
        %2556 = vmatprep.subr.bf16.mxu0 0
        %2557 = vmatpush2.bf16.xpose.msra.mxu0 0
        %2558 = vmatprep.subr.bf16.mxu0 0
        %2559 = vmatpush2.bf16.xpose.msra.mxu0 0
        %2560 = vmatprep.subr.bf16.mxu0 0
        %2561 = vmatpush2.bf16.xpose.msra.mxu0 0
        %2562 = vmatprep.subr.bf16.mxu0 0
        %2563 = vmatpush2.bf16.xpose.msra.mxu0 0
        %2564 = vmatprep.subr.bf16.mxu0 0
        %2565 = vmatpush2.bf16.xpose.msra.mxu0 0
        %2566 = vmatprep.subr.bf16.mxu0 0
        %2567 = vmatpush2.bf16.xpose.msra.mxu0 0
        %2568 = vmatprep.subr.bf16.mxu0 0
        %2569 = vmatpush2.bf16.xpose.msra.mxu0 0
        %2570 = vmatprep.mubr.bf16.mxu0 0
        %2571 = vmatmul.mubr.bf16.gmra.mxu0 %v2533
        %v2572 = vpop.f32.mrf.mxu0
        %v2573 = vadd.f32 0.0, %v2572
        %v2574 = vpop.f32.mrf.mxu0
        %v2575 = vpop.f32.mrf.mxu0
        %v2576 = vpop.f32.mrf.mxu0
        %2577 = vdwg.mxu0
        %v2578 = vsel %vm2242, %v2573, -inf
        %2579 = vmax.xlane.f32.xlu0 %v2578
        %v2580 = vpop.xlane.xlu0 %2579
        %v2581 = vsub.f32 %v2573, %v2580
        %v2582 = vmul.f32 %v2581, 1.442695
        %v2583 = vpow.pop %v2582
        %v2584 = vsel %vm2242, %v2583, 0.0
        %2585 = vadd.xlane.f32.xlu0 %v2584
        %v2586 = vpop.xlane.xlu0 %2585
        %v2587 = vrcp.pop %v2586
        %v2588 = vmul.f32 %v2583, %v2587
        %v2589 = vpack.c.bf16 %v2588, %v2588
        %2590 = vrot.lane.b32.xlu0 %v2195, 32
        %v2591 = vpop.permute.xlu0 %2590
        %v2594 = vsel %vm2242, %v2589, 0
        %2596 = vmatprep.subr.bf16.mxu0 0
        %2597 = vmatpush1.bf16.msra.mxu0 0
        %2598 = vmatprep.subr.bf16.mxu0 0
        %2599 = vmatpush1.bf16.msra.mxu0 0
        %2600 = vmatprep.subr.bf16.mxu0 0
        %2601 = vmatpush1.bf16.msra.mxu0 0
        %2602 = vmatprep.subr.bf16.mxu0 0
        %2603 = vmatpush1.bf16.msra.mxu0 0
        %2604 = vmatprep.subr.bf16.mxu0 0
        %2605 = vmatpush1.bf16.msra.mxu0 0
        %2606 = vmatprep.subr.bf16.mxu0 0
        %2607 = vmatpush1.bf16.msra.mxu0 0
        %2608 = vmatprep.subr.bf16.mxu0 0
        %2609 = vmatpush1.bf16.msra.mxu0 0
        %2610 = vmatprep.subr.bf16.mxu0 0
        %2611 = vmatpush1.bf16.msra.mxu0 %v2591
        %2612 = vmatprep.subr.bf16.mxu0 0
        %2613 = vmatpush2.bf16.msra.mxu0 0
        %2614 = vmatprep.subr.bf16.mxu0 0
        %2615 = vmatpush2.bf16.msra.mxu0 0
        %2616 = vmatprep.subr.bf16.mxu0 0
        %2617 = vmatpush2.bf16.msra.mxu0 0
        %2618 = vmatprep.subr.bf16.mxu0 0
        %2619 = vmatpush2.bf16.msra.mxu0 0
        %2620 = vmatprep.subr.bf16.mxu0 0
        %2621 = vmatpush2.bf16.msra.mxu0 0
        %2622 = vmatprep.subr.bf16.mxu0 0
        %2623 = vmatpush2.bf16.msra.mxu0 0
        %2624 = vmatprep.subr.bf16.mxu0 0
        %2625 = vmatpush2.bf16.msra.mxu0 0
        %2626 = vmatprep.subr.bf16.mxu0 0
        %2627 = vmatpush2.bf16.msra.mxu0 0
        %2628 = vmatprep.mubr.bf16.mxu0 0
        %2629 = vmatmul.mubr.bf16.gmra.mxu0 %v2594
        %v2630 = vpop.f32.mrf.mxu0
        %v2631 = vadd.f32 0.0, %v2630
        %v2632 = vpop.f32.mrf.mxu0
        %v2633 = vpop.f32.mrf.mxu0
        %v2634 = vpop.f32.mrf.mxu0
        %2635 = vdwg.mxu0
        %2637 = vrot.lane.b32.xlu0 %v2631, 96
        %v2638 = vpop.permute.xlu0 %2637
        %2640 = vst.msk [vmem:[#allocation3] sm:$0xff] %vm1719, %v2638
        %v2641 = vld [vmem:[#allocation3] sm:$0xff]
        %s2642 = scalar_lea.vmem %s749, 64 [#allocation10]
        %v2643 = vld [vmem:[%s2642] sm:$0xf]
        %v2644 = vld [vmem:[%s2642 + $0x4] sm:$0xf]
        %v2645 = vld [vmem:[%s2642 + $0x8] sm:$0xf]
        %v2646 = vld [vmem:[%s2642 + $0xc] sm:$0xf]
        %v2647 = vld [vmem:[%s2642 + $0x10] sm:$0xf]
        %v2648 = vld [vmem:[%s2642 + $0x14] sm:$0xf]
        %v2649 = vld [vmem:[%s2642 + $0x18] sm:$0xf]
        %v2650 = vld [vmem:[%s2642 + $0x1c] sm:$0xf]
        %v2651 = vld [vmem:[%s2642 + $0x20] sm:$0xf]
        %v2652 = vld [vmem:[%s2642 + $0x24] sm:$0xf]
        %v2653 = vld [vmem:[%s2642 + $0x28] sm:$0xf]
        %v2654 = vld [vmem:[%s2642 + $0x2c] sm:$0xf]
        %v2655 = vld [vmem:[%s2642 + $0x30] sm:$0xf]
        %v2656 = vld [vmem:[%s2642 + $0x34] sm:$0xf]
        %v2657 = vld [vmem:[%s2642 + $0x38] sm:$0xf]
        %v2658 = vld [vmem:[%s2642 + $0x3c] sm:$0xf]
        %v2659 = vpack.c.bf16 %v2641, %v2641
        %v2660 = vlaneseq
        %v2661 = vshrl.u32 %v2660, 7
        %v2662 = vsub.s32 1, %v2661
        %v2663 = vrot.slane %v926, %v2662
        %v2680 = vunpack.c.l.b16 %v2643
        %v2681 = vunpack.c.l.b16 %v2644
        %v2682 = vunpack.c.l.b16 %v2645
        %v2683 = vunpack.c.l.b16 %v2646
        %v2684 = vunpack.c.l.b16 %v2647
        %v2685 = vunpack.c.l.b16 %v2648
        %v2686 = vunpack.c.l.b16 %v2649
        %v2687 = vunpack.c.l.b16 %v2650
        %v2688 = vunpack.c.l.b16 %v2651
        %v2689 = vunpack.c.l.b16 %v2652
        %v2690 = vunpack.c.l.b16 %v2653
        %v2691 = vunpack.c.l.b16 %v2654
        %v2692 = vunpack.c.l.b16 %v2655
        %v2693 = vunpack.c.l.b16 %v2656
        %v2694 = vunpack.c.l.b16 %v2657
        %v2695 = vunpack.c.l.b16 %v2658
        %v2696 = vpack.c.b16 %v2681, %v2680
        %v2697 = vpack.c.b16 %v2683, %v2682
        %v2698 = vpack.c.b16 %v2685, %v2684
        %v2699 = vpack.c.b16 %v2687, %v2686
        %v2700 = vpack.c.b16 %v2689, %v2688
        %v2701 = vpack.c.b16 %v2691, %v2690
        %v2702 = vpack.c.b16 %v2693, %v2692
        %v2703 = vpack.c.b16 %v2695, %v2694
        %2712 = vmatprep.subr.bf16.mxu0 0
        %2713 = vmatpush1.bf16.msra.mxu0 %v2703
        %2714 = vmatprep.subr.bf16.mxu0 0
        %2715 = vmatpush1.bf16.msra.mxu0 %v2702
        %2716 = vmatprep.subr.bf16.mxu0 0
        %2717 = vmatpush1.bf16.msra.mxu0 %v2701
        %2718 = vmatprep.subr.bf16.mxu0 0
        %2719 = vmatpush1.bf16.msra.mxu0 %v2700
        %2720 = vmatprep.subr.bf16.mxu0 0
        %2721 = vmatpush1.bf16.msra.mxu0 %v2699
        %2722 = vmatprep.subr.bf16.mxu0 0
        %2723 = vmatpush1.bf16.msra.mxu0 %v2698
        %2724 = vmatprep.subr.bf16.mxu0 0
        %2725 = vmatpush1.bf16.msra.mxu0 %v2697
        %2726 = vmatprep.subr.bf16.mxu0 0
        %2727 = vmatpush1.bf16.msra.mxu0 %v2696
        %2728 = vmatprep.subr.bf16.mxu0 0
        %2729 = vmatpush2.bf16.msra.mxu0 0
        %2730 = vmatprep.subr.bf16.mxu0 0
        %2731 = vmatpush2.bf16.msra.mxu0 0
        %2732 = vmatprep.subr.bf16.mxu0 0
        %2733 = vmatpush2.bf16.msra.mxu0 0
        %2734 = vmatprep.subr.bf16.mxu0 0
        %2735 = vmatpush2.bf16.msra.mxu0 0
        %2736 = vmatprep.subr.bf16.mxu0 0
        %2737 = vmatpush2.bf16.msra.mxu0 0
        %2738 = vmatprep.subr.bf16.mxu0 0
        %2739 = vmatpush2.bf16.msra.mxu0 0
        %2740 = vmatprep.subr.bf16.mxu0 0
        %2741 = vmatpush2.bf16.msra.mxu0 0
        %2742 = vmatprep.subr.bf16.mxu0 0
        %2743 = vmatpush2.bf16.msra.mxu0 0
        %2744 = vmatprep.mubr.bf16.mxu0 0
        %2745 = vmatmul.mubr.bf16.gmra.mxu0 %v2659
        %v2746 = vpop.f32.mrf.mxu0
        %v2747 = vadd.f32 %v2663, %v2746
        %v2748 = vpop.f32.mrf.mxu0
        %v2749 = vpop.f32.mrf.mxu0
        %v2750 = vpop.f32.mrf.mxu0
        %2751 = vdwg.mxu0
        %v2752 = vadd.f32 %v1853, %v2747
        %2753 = vadd.xlane.f32.xlu0 %v2752
        %v2754 = vpop.xlane.xlu0 %2753
        %v2755 = vmul.f32 %v2754, %v1834
        %v2756 = vsub.f32 %v2752, %v2755
        %v2757 = vmul.f32 %v2756, %v2756
        %2758 = vadd.xlane.f32.xlu0 %v2757
        %v2759 = vpop.xlane.xlu0 %2758
        %v2760 = vmul.f32 %v2759, %v1834
        %v2761 = vadd.f32 %v2760, 1e-05
        %v2762 = vrsqrt.pop %v2761
        %v2763 = vmul.f32 %v2756, %v2762
        %v2764 = vlaneseq
        %v2765 = vshrl.u32 %v2764, 7
        %v2766 = vsub.s32 1, %v2765
        %v2767 = vrot.slane %v927, %v2766
        %v2768 = vmul.f32 %v2763, %v2767
        %v2769 = vlaneseq
        %v2770 = vshrl.u32 %v2769, 7
        %v2771 = vsub.s32 1, %v2770
        %v2772 = vrot.slane %v928, %v2771
        %v2773 = vadd.f32 %v2768, %v2772
        %v2774 = vpack.c.bf16 %v2773, %v2773
        %v2775 = vld [vmem:[%s767] sm:$0xff]
        %v2776 = vld [vmem:[%s767 + $0x8] sm:$0xff]
        %v2777 = vld [vmem:[%s767 + $0x10] sm:$0xff]
        %v2778 = vld [vmem:[%s767 + $0x18] sm:$0xff]
        %v2779 = vld [vmem:[%s767 + $0x20] sm:$0xff]
        %v2780 = vld [vmem:[%s767 + $0x28] sm:$0xff]
        %v2781 = vld [vmem:[%s767 + $0x30] sm:$0xff]
        %v2782 = vld [vmem:[%s767 + $0x38] sm:$0xff]
        %v2783 = vld [vmem:[%s767 + $0x40] sm:$0xff]
        %v2784 = vld [vmem:[%s767 + $0x48] sm:$0xff]
        %v2785 = vld [vmem:[%s767 + $0x50] sm:$0xff]
        %v2786 = vld [vmem:[%s767 + $0x58] sm:$0xff]
        %v2787 = vld [vmem:[%s767 + $0x60] sm:$0xff]
        %v2788 = vld [vmem:[%s767 + $0x68] sm:$0xff]
        %v2789 = vld [vmem:[%s767 + $0x70] sm:$0xff]
        %v2790 = vld [vmem:[%s767 + $0x78] sm:$0xff]
        %v2791 = vld [vmem:[%s776] sm:$0x3]
        %v2793 = vlaneseq
        %v2794 = vshrl.u32 %v2793, 7
        %v2795 = vsub.s32 0, %v2794
        %v2796 = vrot.slane %v2791, %v2795
        %v2797 = vlaneseq
        %v2798 = vshrl.u32 %v2797, 7
        %v2799 = vsub.s32 1, %v2798
        %v2800 = vrot.slane %v2791, %v2799
        %v2819 = vunpack.c.l.b16 %v2775
        %v2820 = vunpack.c.h.b16 %v2775
        %v2821 = vunpack.c.l.b16 %v2776
        %v2822 = vunpack.c.h.b16 %v2776
        %v2823 = vunpack.c.l.b16 %v2777
        %v2824 = vunpack.c.h.b16 %v2777
        %v2825 = vunpack.c.l.b16 %v2778
        %v2826 = vunpack.c.h.b16 %v2778
        %v2827 = vunpack.c.l.b16 %v2779
        %v2828 = vunpack.c.h.b16 %v2779
        %v2829 = vunpack.c.l.b16 %v2780
        %v2830 = vunpack.c.h.b16 %v2780
        %v2831 = vunpack.c.l.b16 %v2781
        %v2832 = vunpack.c.h.b16 %v2781
        %v2833 = vunpack.c.l.b16 %v2782
        %v2834 = vunpack.c.h.b16 %v2782
        %v2835 = vunpack.c.l.b16 %v2783
        %v2836 = vunpack.c.h.b16 %v2783
        %v2837 = vunpack.c.l.b16 %v2784
        %v2838 = vunpack.c.h.b16 %v2784
        %v2839 = vunpack.c.l.b16 %v2785
        %v2840 = vunpack.c.h.b16 %v2785
        %v2841 = vunpack.c.l.b16 %v2786
        %v2842 = vunpack.c.h.b16 %v2786
        %v2843 = vunpack.c.l.b16 %v2787
        %v2844 = vunpack.c.h.b16 %v2787
        %v2845 = vunpack.c.l.b16 %v2788
        %v2846 = vunpack.c.h.b16 %v2788
        %v2847 = vunpack.c.l.b16 %v2789
        %v2848 = vunpack.c.h.b16 %v2789
        %v2849 = vunpack.c.l.b16 %v2790
        %v2850 = vunpack.c.h.b16 %v2790
        %v2851 = vpack.c.b16 %v2821, %v2819
        %v2852 = vpack.c.b16 %v2822, %v2820
        %v2853 = vpack.c.b16 %v2825, %v2823
        %v2854 = vpack.c.b16 %v2826, %v2824
        %v2855 = vpack.c.b16 %v2829, %v2827
        %v2856 = vpack.c.b16 %v2830, %v2828
        %v2857 = vpack.c.b16 %v2833, %v2831
        %v2858 = vpack.c.b16 %v2834, %v2832
        %v2859 = vpack.c.b16 %v2837, %v2835
        %v2860 = vpack.c.b16 %v2838, %v2836
        %v2861 = vpack.c.b16 %v2841, %v2839
        %v2862 = vpack.c.b16 %v2842, %v2840
        %v2863 = vpack.c.b16 %v2845, %v2843
        %v2864 = vpack.c.b16 %v2846, %v2844
        %v2865 = vpack.c.b16 %v2849, %v2847
        %v2866 = vpack.c.b16 %v2850, %v2848
        %2883 = vmatprep.subr.bf16.mxu0 %v2866
        %2884 = vmatpush1.bf16.msra.mxu0 %v2865
        %2885 = vmatprep.subr.bf16.mxu0 %v2864
        %2886 = vmatpush1.bf16.msra.mxu0 %v2863
        %2887 = vmatprep.subr.bf16.mxu0 %v2862
        %2888 = vmatpush1.bf16.msra.mxu0 %v2861
        %2889 = vmatprep.subr.bf16.mxu0 %v2860
        %2890 = vmatpush1.bf16.msra.mxu0 %v2859
        %2891 = vmatprep.subr.bf16.mxu0 %v2858
        %2892 = vmatpush1.bf16.msra.mxu0 %v2857
        %2893 = vmatprep.subr.bf16.mxu0 %v2856
        %2894 = vmatpush1.bf16.msra.mxu0 %v2855
        %2895 = vmatprep.subr.bf16.mxu0 %v2854
        %2896 = vmatpush1.bf16.msra.mxu0 %v2853
        %2897 = vmatprep.subr.bf16.mxu0 %v2852
        %2898 = vmatpush1.bf16.msra.mxu0 %v2851
        %2899 = vmatprep.subr.bf16.mxu0 0
        %2900 = vmatpush2.bf16.msra.mxu0 0
        %2901 = vmatprep.subr.bf16.mxu0 0
        %2902 = vmatpush2.bf16.msra.mxu0 0
        %2903 = vmatprep.subr.bf16.mxu0 0
        %2904 = vmatpush2.bf16.msra.mxu0 0
        %2905 = vmatprep.subr.bf16.mxu0 0
        %2906 = vmatpush2.bf16.msra.mxu0 0
        %2907 = vmatprep.subr.bf16.mxu0 0
        %2908 = vmatpush2.bf16.msra.mxu0 0
        %2909 = vmatprep.subr.bf16.mxu0 0
        %2910 = vmatpush2.bf16.msra.mxu0 0
        %2911 = vmatprep.subr.bf16.mxu0 0
        %2912 = vmatpush2.bf16.msra.mxu0 0
        %2913 = vmatprep.subr.bf16.mxu0 0
        %2914 = vmatpush2.bf16.msra.mxu0 0
        %2915 = vmatprep.mubr.bf16.mxu0 0
        %2916 = vmatmul.mubr.bf16.gmra.mxu0 %v2774
        %v2917 = vpop.f32.mrf.mxu0
        %v2918 = vadd.f32 %v2796, %v2917
        %v2919 = vpop.f32.mrf.mxu0
        %v2920 = vadd.f32 %v2800, %v2919
        %v2921 = vpop.f32.mrf.mxu0
        %v2922 = vpop.f32.mrf.mxu0
        %2923 = vdwg.mxu0
        %v2924 = vmax.f32 %v2918, 0.0
        %v2925 = vmax.f32 %v2920, 0.0
        %v2926 = vld [vmem:[%s785] sm:$0xf]
        %v2927 = vld [vmem:[%s785 + $0x4] sm:$0xf]
        %v2928 = vld [vmem:[%s785 + $0x8] sm:$0xf]
        %v2929 = vld [vmem:[%s785 + $0xc] sm:$0xf]
        %v2930 = vld [vmem:[%s785 + $0x10] sm:$0xf]
        %v2931 = vld [vmem:[%s785 + $0x14] sm:$0xf]
        %v2932 = vld [vmem:[%s785 + $0x18] sm:$0xf]
        %v2933 = vld [vmem:[%s785 + $0x1c] sm:$0xf]
        %v2934 = vld [vmem:[%s785 + $0x20] sm:$0xf]
        %v2935 = vld [vmem:[%s785 + $0x24] sm:$0xf]
        %v2936 = vld [vmem:[%s785 + $0x28] sm:$0xf]
        %v2937 = vld [vmem:[%s785 + $0x2c] sm:$0xf]
        %v2938 = vld [vmem:[%s785 + $0x30] sm:$0xf]
        %v2939 = vld [vmem:[%s785 + $0x34] sm:$0xf]
        %v2940 = vld [vmem:[%s785 + $0x38] sm:$0xf]
        %v2941 = vld [vmem:[%s785 + $0x3c] sm:$0xf]
        %v2942 = vld [vmem:[%s785 + $0x40] sm:$0xf]
        %v2943 = vld [vmem:[%s785 + $0x44] sm:$0xf]
        %v2944 = vld [vmem:[%s785 + $0x48] sm:$0xf]
        %v2945 = vld [vmem:[%s785 + $0x4c] sm:$0xf]
        %v2946 = vld [vmem:[%s785 + $0x50] sm:$0xf]
        %v2947 = vld [vmem:[%s785 + $0x54] sm:$0xf]
        %v2948 = vld [vmem:[%s785 + $0x58] sm:$0xf]
        %v2949 = vld [vmem:[%s785 + $0x5c] sm:$0xf]
        %v2950 = vld [vmem:[%s785 + $0x60] sm:$0xf]
        %v2951 = vld [vmem:[%s785 + $0x64] sm:$0xf]
        %v2952 = vld [vmem:[%s785 + $0x68] sm:$0xf]
        %v2953 = vld [vmem:[%s785 + $0x6c] sm:$0xf]
        %v2954 = vld [vmem:[%s785 + $0x70] sm:$0xf]
        %v2955 = vld [vmem:[%s785 + $0x74] sm:$0xf]
        %v2956 = vld [vmem:[%s785 + $0x78] sm:$0xf]
        %v2957 = vld [vmem:[%s785 + $0x7c] sm:$0xf]
        %v2958 = vpack.c.bf16 %v2924, %v2924
        %v2959 = vpack.c.bf16 %v2925, %v2925
        %v2960 = vld [vmem:[%s908] sm:$0x1]
        %v2962 = vlaneseq
        %v2963 = vshrl.u32 %v2962, 7
        %v2964 = vsub.s32 0, %v2963
        %v2965 = vrot.slane %v2960, %v2964
        %v2999 = vunpack.c.l.b16 %v2926
        %v3000 = vunpack.c.l.b16 %v2927
        %v3001 = vunpack.c.l.b16 %v2928
        %v3002 = vunpack.c.l.b16 %v2929
        %v3003 = vunpack.c.l.b16 %v2930
        %v3004 = vunpack.c.l.b16 %v2931
        %v3005 = vunpack.c.l.b16 %v2932
        %v3006 = vunpack.c.l.b16 %v2933
        %v3007 = vunpack.c.l.b16 %v2934
        %v3008 = vunpack.c.l.b16 %v2935
        %v3009 = vunpack.c.l.b16 %v2936
        %v3010 = vunpack.c.l.b16 %v2937
        %v3011 = vunpack.c.l.b16 %v2938
        %v3012 = vunpack.c.l.b16 %v2939
        %v3013 = vunpack.c.l.b16 %v2940
        %v3014 = vunpack.c.l.b16 %v2941
        %v3015 = vunpack.c.l.b16 %v2942
        %v3016 = vunpack.c.l.b16 %v2943
        %v3017 = vunpack.c.l.b16 %v2944
        %v3018 = vunpack.c.l.b16 %v2945
        %v3019 = vunpack.c.l.b16 %v2946
        %v3020 = vunpack.c.l.b16 %v2947
        %v3021 = vunpack.c.l.b16 %v2948
        %v3022 = vunpack.c.l.b16 %v2949
        %v3023 = vunpack.c.l.b16 %v2950
        %v3024 = vunpack.c.l.b16 %v2951
        %v3025 = vunpack.c.l.b16 %v2952
        %v3026 = vunpack.c.l.b16 %v2953
        %v3027 = vunpack.c.l.b16 %v2954
        %v3028 = vunpack.c.l.b16 %v2955
        %v3029 = vunpack.c.l.b16 %v2956
        %v3030 = vunpack.c.l.b16 %v2957
        %v3031 = vpack.c.b16 %v3000, %v2999
        %v3032 = vpack.c.b16 %v3002, %v3001
        %v3033 = vpack.c.b16 %v3004, %v3003
        %v3034 = vpack.c.b16 %v3006, %v3005
        %v3035 = vpack.c.b16 %v3008, %v3007
        %v3036 = vpack.c.b16 %v3010, %v3009
        %v3037 = vpack.c.b16 %v3012, %v3011
        %v3038 = vpack.c.b16 %v3014, %v3013
        %v3039 = vpack.c.b16 %v3016, %v3015
        %v3040 = vpack.c.b16 %v3018, %v3017
        %v3041 = vpack.c.b16 %v3020, %v3019
        %v3042 = vpack.c.b16 %v3022, %v3021
        %v3043 = vpack.c.b16 %v3024, %v3023
        %v3044 = vpack.c.b16 %v3026, %v3025
        %v3045 = vpack.c.b16 %v3028, %v3027
        %v3046 = vpack.c.b16 %v3030, %v3029
        %3063 = vmatprep.subr.bf16.mxu0 0
        %3064 = vmatpush1.bf16.msra.mxu0 %v3038
        %3065 = vmatprep.subr.bf16.mxu0 0
        %3066 = vmatpush1.bf16.msra.mxu0 %v3037
        %3067 = vmatprep.subr.bf16.mxu0 0
        %3068 = vmatpush1.bf16.msra.mxu0 %v3036
        %3069 = vmatprep.subr.bf16.mxu0 0
        %3070 = vmatpush1.bf16.msra.mxu0 %v3035
        %3071 = vmatprep.subr.bf16.mxu0 0
        %3072 = vmatpush1.bf16.msra.mxu0 %v3034
        %3073 = vmatprep.subr.bf16.mxu0 0
        %3074 = vmatpush1.bf16.msra.mxu0 %v3033
        %3075 = vmatprep.subr.bf16.mxu0 0
        %3076 = vmatpush1.bf16.msra.mxu0 %v3032
        %3077 = vmatprep.subr.bf16.mxu0 0
        %3078 = vmatpush1.bf16.msra.mxu0 %v3031
        %3079 = vmatprep.subr.bf16.mxu0 0
        %3080 = vmatpush2.bf16.msra.mxu0 %v3046
        %3081 = vmatprep.subr.bf16.mxu0 0
        %3082 = vmatpush2.bf16.msra.mxu0 %v3045
        %3083 = vmatprep.subr.bf16.mxu0 0
        %3084 = vmatpush2.bf16.msra.mxu0 %v3044
        %3085 = vmatprep.subr.bf16.mxu0 0
        %3086 = vmatpush2.bf16.msra.mxu0 %v3043
        %3087 = vmatprep.subr.bf16.mxu0 0
        %3088 = vmatpush2.bf16.msra.mxu0 %v3042
        %3089 = vmatprep.subr.bf16.mxu0 0
        %3090 = vmatpush2.bf16.msra.mxu0 %v3041
        %3091 = vmatprep.subr.bf16.mxu0 0
        %3092 = vmatpush2.bf16.msra.mxu0 %v3040
        %3093 = vmatprep.subr.bf16.mxu0 0
        %3094 = vmatpush2.bf16.msra.mxu0 %v3039
        %3095 = vmatprep.mubr.bf16.mxu0 %v2959
        %3096 = vmatmul.mubr.bf16.gmra.mxu0 %v2958
        %v3097 = vpop.f32.mrf.mxu0
        %v3098 = vadd.f32 %v2965, %v3097
        %v3099 = vpop.f32.mrf.mxu0
        %v3100 = vpop.f32.mrf.mxu0
        %v3101 = vpop.f32.mrf.mxu0
        %3102 = vdwg.mxu0
        %v3103 = vadd.f32 %v2773, %v3098
        %3104 = vadd.xlane.f32.xlu0 %v3103
        %v3105 = vpop.xlane.xlu0 %3104
        %v3106 = vmul.f32 %v3105, %v1834
        %v3107 = vsub.f32 %v3103, %v3106
        %v3108 = vmul.f32 %v3107, %v3107
        %3109 = vadd.xlane.f32.xlu0 %v3108
        %v3110 = vpop.xlane.xlu0 %3109
        %v3111 = vmul.f32 %v3110, %v1834
        %v3112 = vadd.f32 %v3111, 1e-05
        %v3113 = vrsqrt.pop %v3112
        %v3114 = vmul.f32 %v3107, %v3113
        %v3115 = vlaneseq
        %v3116 = vshrl.u32 %v3115, 7
        %v3117 = vsub.s32 2, %v3116
        %v3118 = vrot.slane %v927, %v3117
        %v3119 = vmul.f32 %v3114, %v3118
        %v3120 = vlaneseq
        %v3121 = vshrl.u32 %v3120, 7
        %v3122 = vsub.s32 2, %v3121
        %v3123 = vrot.slane %v928, %v3122
        %v3124 = vadd.f32 %v3119, %v3123
        %3125 = vst [vmem:[#allocation2] sm:$0xff] %v3124
        %p3126 = scmp.eq.s32.totalorder %s50, 1
        // Predicated region
        $region121: #{tpu_custom_call.1} parent=83 // pred_check
          %p3127 = pneg %p3126
        $region122: #{tpu_custom_call.1} parent=83 // pred_check_branch
          %3129 = sbr.rel (%p3127) target = $region124
        $region123: #{tpu_custom_call.1} parent=83 // pred_region
          %v3130 = vld [vmem:[%s14] sm:$0x1]
          %v3131 = vld [vmem:[%s15] sm:$0x1]
          %3132 = vadd.xlane.f32.xlu0 %v3124
          %v3133 = vpop.xlane.xlu0 %3132
          %v3134 = vmul.f32 %v3133, %v1834
          %v3135 = vsub.f32 %v3124, %v3134
          %v3136 = vmul.f32 %v3135, %v3135
          %3137 = vadd.xlane.f32.xlu0 %v3136
          %v3138 = vpop.xlane.xlu0 %3137
          %v3139 = vmul.f32 %v3138, %v1834
          %v3140 = vadd.f32 %v3139, 1e-05
          %v3141 = vrsqrt.pop %v3140
          %v3142 = vmul.f32 %v3135, %v3141
          %v3144 = vlaneseq
          %v3145 = vshrl.u32 %v3144, 7
          %v3146 = vsub.s32 0, %v3145
          %v3147 = vrot.slane %v3130, %v3146
          %v3149 = vmul.f32 %v3142, %v3147
          %v3151 = vlaneseq
          %v3152 = vshrl.u32 %v3151, 7
          %v3153 = vsub.s32 0, %v3152
          %v3154 = vrot.slane %v3131, %v3153
          %v3156 = vadd.f32 %v3149, %v3154
          %3157 = vst [vmem:[%s892] sm:$0xff] %v3156
        $region124: #{tpu_custom_call.1} parent=83 // pred_fallthru
          _
        %s3158 = sand.u32 %s471, 1
        %s3159 = scalar_lea.sflag [#allocation6], %s3158
        %s3160 = sand.u32 %s471, 1
        %s3161 = smul.addr %s3160, 8
        %s3162 = scalar_lea.vmem [#allocation18], %s3161
        // Predicated region
        $region125: #{tpu_custom_call.1} parent=83 // pred_check
          %p3163 = pneg %p481
        $region126: #{tpu_custom_call.1} parent=83 // pred_check_branch
          %3165 = sbr.rel (%p3163) target = $region128
        $region127: #{tpu_custom_call.1} parent=83 // pred_region
          %s3167 = ssub.s32 128, 128
          %3168 = vsyncadd %s3159, %s3167
          %s3169 = smul.addr %s49, 128
          %s3170 = scalar_lea.hbm %s16, %s3169
          %s3172 = sshll.u32 %s3162, 4
          %s3173 = int_to_ptr.vmem [resolvable:$true] %s3172
          %3175 = dma.vmem_to_hbm [thread:$0]  %s3173, 128, %s3170, %s3159
        $region128: #{tpu_custom_call.1} parent=83 // pred_fallthru
          _
      $region84: #{tpu_custom_call.1} parent=5 // pred_fallthru
        _
      %p3176 = scmp.le.s32.totalorder 2, %s40
      // Predicated region
      $region129: #{tpu_custom_call.1} parent=5 // pred_check
        %p3177 = pneg %p3176
      $region130: #{tpu_custom_call.1} parent=5 // pred_check_branch
        %3179 = sbr.rel (%p3177) target = $region132
      $region131: #{tpu_custom_call.1} parent=5 // pred_region
        %s3180 = ssub.s32 %s40, 2
        // Predicated region
        $region133: #{tpu_custom_call.1} parent=131 // pred_check
          %p3181 = pneg %p487
        $region134: #{tpu_custom_call.1} parent=131 // pred_check_branch
          %3183 = sbr.rel (%p3181) target = $region136
        $region135: #{tpu_custom_call.1} parent=131 // pred_region
          %s3184 = sand.u32 %s472, 1
          %s3185 = scalar_lea.sflag [#allocation6], %s3184
          %s3186 = sand.u32 %s472, 1
          %s3187 = smul.addr %s3186, 8
          %s3188 = scalar_lea.vmem [#allocation18], %s3187
          %3189 = dma.done %s3185, 128
        $region136: #{tpu_custom_call.1} parent=131 // pred_fallthru
          _
      $region132: #{tpu_custom_call.1} parent=5 // pred_fallthru
        _
    $region6: #{tpu_custom_call.1} parent=1 // loop_footer
      %s44 = sadd.s32 1, %s40
    $region7: #{tpu_custom_call.1} parent=1 // loop_footer_branch
      %39 = sbr.rel target = $region3
    $region8: #{tpu_custom_call.1} parent=1 // loop_exit
      _
    %3190 = vsyncpa [#allocation5], 1
    %s3191 = scalar_lea.sflag [#allocation5], 1
    %3192 = vsyncpa %s3191, 1
    %3193 = vsyncpa [#allocation8], 1
    %s3194 = scalar_lea.sflag [#allocation8], 1
    %3195 = vsyncpa %s3194, 1
    %3196 = vsyncpa [#allocation11], 1
    %s3197 = scalar_lea.sflag [#allocation11], 1
    %3198 = vsyncpa %s3197, 1
    %3199 = vsyncpa [#allocation14], 1
    %s3200 = scalar_lea.sflag [#allocation14], 1
    %3201 = vsyncpa %s3200, 1
    %3202 = vsyncpa [#allocation17], 1
    %s3203 = scalar_lea.sflag [#allocation17], 1
    %3204 = vsyncpa %s3203, 1
    %3205 = vsyncpa [#allocation6], 1
    %s3206 = scalar_lea.sflag [#allocation6], 1
    %3207 = vsyncpa %s3206, 1

</llo_original>
